<compile_context>
chip_gen: v7x
topology: tpu7x:2x2x1
jax: 0.10.0
libtpu: 0.0.40
codegen_flags: <defaults>
</compile_context>

<pallas_src>
import functools

import jax
import jax.numpy as jnp
import numpy as np
from jax.experimental import pallas as pl
from jax.experimental.pallas import tpu as pltpu


def _vmem_limit_bytes():
    try:
        cap = pltpu.get_tpu_info().vmem_capacity_bytes
    except Exception:
        cap = 64 * 1024 * 1024
    return int(cap * 0.7)


# ----------------------------- Pallas kernel --------------------------------

def residual_block_kernel(*refs, H, W, Cin, C, has_ds):
    if has_ds:
        (x_ref, w1, s1, b1, w2, s2, b2, w3, s3, b3,
         wd, sd, bd, o_ref, h1pad, col) = refs
    else:
        (x_ref, w1, s1, b1, w2, s2, b2, w3, s3, b3,
         o_ref, h1pad, col) = refs

    x2d = x_ref[0]                                      # (H*W, Cin) bf16

    # conv1: 1x1 + BN + ReLU  (bf16 MXU operands, f32 accumulate, f32 VPU math)
    h1 = jnp.dot(x2d, w1[...], preferred_element_type=jnp.float32)
    h1 = jnp.maximum(h1 * s1[...] + b1[...], 0.0)       # (H*W, C) f32
    h1b = h1.astype(jnp.bfloat16).reshape(H, W, C)      # single cast to bf16

    # Zero-padded conv1 output in a bf16 VMEM scratch.  Only the 1-px border is
    # (re)written each step; the interior is fully overwritten below.
    zrow = jnp.zeros((1, W + 2, C), jnp.bfloat16)
    zcol = jnp.zeros((H, 1, C), jnp.bfloat16)
    h1pad[pl.ds(0, 1), :, :] = zrow                     # top pad row
    h1pad[pl.ds(H + 1, 1), :, :] = zrow                 # bottom pad row
    h1pad[pl.ds(1, H), pl.ds(0, 1), :] = zcol           # left pad column
    h1pad[pl.ds(1, H), pl.ds(W + 1, 1), :] = zcol       # right pad column
    h1pad[pl.ds(1, H), pl.ds(1, W), :] = h1b            # interior

    # conv2: 3x3, stride 1, as ONE matmul over a concatenated-tap im2col slab.
    # col[:, t*C:(t+1)*C] holds tap t = di*3+dj; w2 is pre-reshaped to (9*C, C).
    for di in range(3):
        for dj in range(3):
            t = di * 3 + dj
            tap = h1pad[pl.ds(di, H), pl.ds(dj, W), :]  # (H, W, C) bf16
            col[:, pl.ds(t * C, C)] = tap.reshape(H * W, C)
    h2 = jnp.dot(col[...], w2[...], preferred_element_type=jnp.float32)
    h2 = jnp.maximum(h2 * s2[...] + b2[...], 0.0)       # (H*W, C) f32

    # conv3: 1x1 + BN (no ReLU)
    h3 = jnp.dot(h2.astype(jnp.bfloat16), w3[...],
                 preferred_element_type=jnp.float32)
    h3 = h3 * s3[...] + b3[...]

    # residual path
    if has_ds:
        res = jnp.dot(x2d, wd[...], preferred_element_type=jnp.float32)
        res = res * sd[...] + bd[...]
    else:
        res = x2d.astype(jnp.float32)                   # identity (Cin==C)

    o_ref[0] = jnp.maximum(h3 + res, 0.0).astype(o_ref.dtype)


# ------------------------------ wrapper --------------------------------------

def residual_block50(x_nchw, params, *, stride=1):
    N, Cin, H, W = x_nchw.shape
    C = params["w1"].shape[1]
    has_ds = "wd" in params
    if stride != 1:
        # TODO(synk): stride>1 needs strided im2col row selection; not implemented.
        raise NotImplementedError("residual_block50 kernel supports stride=1 only")
    if not has_ds:
        assert Cin == C, "identity residual needs Cin == C"

    # Channels-last slab layout (N, H*W, C); bf16 activations on the wire.
    # TODO(synk): keep NHWC across the whole network and drop these transposes.
    x = jnp.transpose(x_nchw, (0, 2, 3, 1)).reshape(N, H * W, Cin)
    x = x.astype(jnp.bfloat16)

    args = [x,
            params["w1"], params["s1"], params["b1"],
            params["w2"], params["s2"], params["b2"],
            params["w3"], params["s3"], params["b3"]]
    in_specs = [
        pl.BlockSpec((1, H * W, Cin), lambda n: (n, 0, 0)),
        pl.BlockSpec((Cin, C), lambda n: (0, 0)),
        pl.BlockSpec((1, C), lambda n: (0, 0)),
        pl.BlockSpec((1, C), lambda n: (0, 0)),
        pl.BlockSpec((9 * C, C), lambda n: (0, 0)),
        pl.BlockSpec((1, C), lambda n: (0, 0)),
        pl.BlockSpec((1, C), lambda n: (0, 0)),
        pl.BlockSpec((C, C), lambda n: (0, 0)),
        pl.BlockSpec((1, C), lambda n: (0, 0)),
        pl.BlockSpec((1, C), lambda n: (0, 0)),
    ]
    if has_ds:
        args += [params["wd"], params["sd"], params["bd"]]
        in_specs += [
            pl.BlockSpec((Cin, C), lambda n: (0, 0)),
            pl.BlockSpec((1, C), lambda n: (0, 0)),
            pl.BlockSpec((1, C), lambda n: (0, 0)),
        ]

    kernel = functools.partial(residual_block_kernel, H=H, W=W, Cin=Cin, C=C,
                               has_ds=has_ds)
    out = pl.pallas_call(
        kernel,
        out_shape=jax.ShapeDtypeStruct((N, H * W, C), jnp.float32),
        grid=(N,),
        in_specs=in_specs,
        out_specs=pl.BlockSpec((1, H * W, C), lambda n: (n, 0, 0)),
        scratch_shapes=[pltpu.VMEM((H + 2, W + 2, C), jnp.bfloat16),   # padded conv1 out
                        pltpu.VMEM((H * W, 9 * C), jnp.bfloat16)],     # im2col slab
        compiler_params=pltpu.CompilerParams(
            dimension_semantics=("parallel",),
            vmem_limit_bytes=_vmem_limit_bytes()),
    )(*args)
    out = out.reshape(N, H, W, C)
    return jnp.transpose(out, (0, 3, 1, 2))              # back to NCHW


# ------------------------ parameters / reference ------------------------------

def init_raw_params(key, cin, cout, has_ds):
    ks = jax.random.split(key, 12)

    def conv_w(k, co, ci, kh, kw):
        fan_in = ci * kh * kw
        return jax.random.normal(k, (co, ci, kh, kw), jnp.float32) * np.sqrt(2.0 / fan_in)

    def conv_b(k, co):
        return 0.05 * jax.random.normal(k, (co,), jnp.float32)

    def bn(k, co):
        k1, k2, k3, k4 = jax.random.split(k, 4)
        gamma = 1.0 + 0.1 * jax.random.normal(k1, (co,), jnp.float32)
        beta = 0.1 * jax.random.normal(k2, (co,), jnp.float32)
        mean = 0.1 * jax.random.normal(k3, (co,), jnp.float32)
        var = 0.5 + jax.random.uniform(k4, (co,), jnp.float32)
        return gamma, beta, mean, var

    raw = {
        "w1": conv_w(ks[0], cout, cin, 1, 1), "bc1": conv_b(ks[1], cout), "bn1": bn(ks[2], cout),
        "w2": conv_w(ks[3], cout, cout, 3, 3), "bc2": conv_b(ks[4], cout), "bn2": bn(ks[5], cout),
        "w3": conv_w(ks[6], cout, cout, 1, 1), "bc3": conv_b(ks[7], cout), "bn3": bn(ks[8], cout),
    }
    if has_ds:
        raw["wd"] = conv_w(ks[9], cout, cin, 1, 1)
        raw["bcd"] = conv_b(ks[10], cout)
        raw["bnd"] = bn(ks[11], cout)
    return raw


def pack_params(raw, has_ds):
    """PyTorch-layout weights -> kernel layout; fold conv-bias + BN (eval mode)."""
    def fold(bc, bn_p, eps=1e-5):
        gamma, beta, mean, var = bn_p
        scale = gamma / jnp.sqrt(var + eps)
        bias = beta + scale * (bc - mean)
        return scale.reshape(1, -1), bias.reshape(1, -1)

    cout = raw["w1"].shape[0]
    s1, b1 = fold(raw["bc1"], raw["bn1"])
    s2, b2 = fold(raw["bc2"], raw["bn2"])
    s3, b3 = fold(raw["bc3"], raw["bn3"])
    p = {
        "w1": raw["w1"][:, :, 0, 0].T.astype(jnp.bfloat16),                    # (Cin, C)
        "s1": s1, "b1": b1,
        # (O,I,3,3) -> (kh,kw,I,O) -> (9*C, C): row index = (kh*3+kw)*C + cin
        "w2": jnp.transpose(raw["w2"], (2, 3, 1, 0)).reshape(9 * cout, cout)
              .astype(jnp.bfloat16),
        "s2": s2, "b2": b2,
        "w3": raw["w3"][:, :, 0, 0].T.astype(jnp.bfloat16),                    # (C, C)
        "s3": s3, "b3": b3,
    }
    if has_ds:
        sd, bd = fold(raw["bcd"], raw["bnd"])
        p["wd"] = raw["wd"][:, :, 0, 0].T.astype(jnp.bfloat16)                 # (Cin, C)
        p["sd"] = sd
        p["bd"] = bd
    return p


def _conv(x, w, b, stride, pad):
    out = jax.lax.conv_general_dilated(
        x, w, (stride, stride), ((pad, pad), (pad, pad)),
        dimension_numbers=("NCHW", "OIHW", "NCHW"))
    return out + b[None, :, None, None]


def _bn(x, gamma, beta, mean, var, eps=1e-5):
    s = (gamma / jnp.sqrt(var + eps))[None, :, None, None]
    return (x - mean[None, :, None, None]) * s + beta[None, :, None, None]


def reference_block(x, raw, stride, has_ds):
    h = jax.nn.relu(_bn(_conv(x, raw["w1"], raw["bc1"], 1, 0), *raw["bn1"]))
    h = jax.nn.relu(_bn(_conv(h, raw["w2"], raw["bc2"], stride, 1), *raw["bn2"]))
    h = _bn(_conv(h, raw["w3"], raw["bc3"], 1, 0), *raw["bn3"])
    if has_ds:
        res = _bn(_conv(x, raw["wd"], raw["bcd"], stride, 0), *raw["bnd"])
    else:
        res = x
    return jax.nn.relu(h + res)


# --------------------------------- main ---------------------------------------

if __name__ == "__main__":
    key = jax.random.PRNGKey(0)
    k_x1, k_x2, k_p1, k_p2 = jax.random.split(key, 4)

    # Case A: module defaults (stride=1, downsample=None) -> Cin == Cout.
    N, Cin, H, W = 2, 32, 16, 16
    C = 32
    x = jax.random.normal(k_x1, (N, Cin, H, W), jnp.float32)
    raw = init_raw_params(k_p1, Cin, C, has_ds=False)
    params = pack_params(raw, has_ds=False)

    fwd = jax.jit(functools.partial(residual_block50, stride=1))
    out = jax.block_until_ready(fwd(x, params))
    ref = reference_block(x, raw, stride=1, has_ds=False)
    assert out.shape == (N, C, H, W), out.shape
    assert bool(jnp.all(jnp.isfinite(out)))
    assert float(jnp.mean(jnp.abs(out - ref))) < 0.05
    assert float(jnp.max(jnp.abs(out - ref))) < 0.5

    # Case B: downsample path (1x1 conv + BN), Cin != Cout, lane-dense C=128.
    Cin2, C2 = 64, 128
    x2 = jax.random.normal(k_x2, (N, Cin2, H, W), jnp.float32)
    raw2 = init_raw_params(k_p2, Cin2, C2, has_ds=True)
    params2 = pack_params(raw2, has_ds=True)
    fwd2 = jax.jit(functools.partial(residual_block50, stride=1))
    out2 = jax.block_until_ready(fwd2(x2, params2))
    ref2 = reference_block(x2, raw2, stride=1, has_ds=True)
    assert out2.shape == (N, C2, H, W), out2.shape
    assert bool(jnp.all(jnp.isfinite(out2)))
    assert float(jnp.mean(jnp.abs(out2 - ref2))) < 0.05
    assert float(jnp.max(jnp.abs(out2 - ref2))) < 0.5

    print("KERNEL_OK")
</pallas_src>

<mosaic_0001>
module attributes {stable_mosaic.version = 11 : i64} {
  func.func @residual_block_kernel(%arg0: i32, %arg1: memref<1x256x32xbf16, #tpu.memory_space<vmem>>, %arg2: memref<32x32xbf16, #tpu.memory_space<vmem>>, %arg3: memref<1x32xf32, #tpu.memory_space<vmem>>, %arg4: memref<1x32xf32, #tpu.memory_space<vmem>>, %arg5: memref<288x32xbf16, #tpu.memory_space<vmem>>, %arg6: memref<1x32xf32, #tpu.memory_space<vmem>>, %arg7: memref<1x32xf32, #tpu.memory_space<vmem>>, %arg8: memref<32x32xbf16, #tpu.memory_space<vmem>>, %arg9: memref<1x32xf32, #tpu.memory_space<vmem>>, %arg10: memref<1x32xf32, #tpu.memory_space<vmem>>, %arg11: memref<1x256x32xf32, #tpu.memory_space<vmem>>, %arg12: memref<18x18x32xbf16, #tpu.memory_space<vmem>>, %arg13: memref<256x288xbf16, #tpu.memory_space<vmem>>) attributes {dimension_semantics = [#tpu.dimension_semantics<parallel>], iteration_bounds = array<i64: 2>, scalar_prefetch = 0 : i64, scratch_operands = 2 : i64, tpu.core_type = #tpu.core_type<tc>, window_params = [{transform_indices = @transform_0, window_bounds = array<i64: 1, 256, 32>}, {pipeline_mode = #tpu.pipeline_mode<synchronous>, transform_indices = @transform_1, window_bounds = array<i64: 32, 32>}, {pipeline_mode = #tpu.pipeline_mode<synchronous>, transform_indices = @transform_2, window_bounds = array<i64: 1, 32>}, {pipeline_mode = #tpu.pipeline_mode<synchronous>, transform_indices = @transform_3, window_bounds = array<i64: 1, 32>}, {pipeline_mode = #tpu.pipeline_mode<synchronous>, transform_indices = @transform_4, window_bounds = array<i64: 288, 32>}, {pipeline_mode = #tpu.pipeline_mode<synchronous>, transform_indices = @transform_5, window_bounds = array<i64: 1, 32>}, {pipeline_mode = #tpu.pipeline_mode<synchronous>, transform_indices = @transform_6, window_bounds = array<i64: 1, 32>}, {pipeline_mode = #tpu.pipeline_mode<synchronous>, transform_indices = @transform_7, window_bounds = array<i64: 32, 32>}, {pipeline_mode = #tpu.pipeline_mode<synchronous>, transform_indices = @transform_8, window_bounds = array<i64: 1, 32>}, {pipeline_mode = #tpu.pipeline_mode<synchronous>, transform_indices = @transform_9, window_bounds = array<i64: 1, 32>}, {transform_indices = @transform_10, window_bounds = array<i64: 1, 256, 32>}]} {
    %c0 = arith.constant 0 : index
    %c0_0 = arith.constant 0 : index
    %c0_1 = arith.constant 0 : index
    %0 = vector.load %arg1[%c0, %c0_0, %c0_1] : memref<1x256x32xbf16, #tpu.memory_space<vmem>>, vector<1x256x32xbf16>
    %1 = vector.shape_cast %0 : vector<1x256x32xbf16> to vector<256x32xbf16>
    %c0_2 = arith.constant 0 : index
    %c0_3 = arith.constant 0 : index
    %2 = vector.load %arg2[%c0_2, %c0_3] : memref<32x32xbf16, #tpu.memory_space<vmem>>, vector<32x32xbf16>
    %cst = arith.constant dense<0.000000e+00> : vector<256x32xf32>
    %3 = tpu.matmul %1, %2, %cst {dimension_numbers = #tpu.dot_dimension_numbers<[1], [0], [0], [1], [0, 0, 1, 1], [], []>} : vector<256x32xbf16>, vector<32x32xbf16>, vector<256x32xf32> -> vector<256x32xf32>
    %c0_4 = arith.constant 0 : index
    %c0_5 = arith.constant 0 : index
    %4 = vector.load %arg3[%c0_4, %c0_5] : memref<1x32xf32, #tpu.memory_space<vmem>>, vector<1x32xf32>
    %5 = vector.broadcast %4 : vector<1x32xf32> to vector<256x32xf32>
    %6 = arith.mulf %3, %5 : vector<256x32xf32>
    %c0_6 = arith.constant 0 : index
    %c0_7 = arith.constant 0 : index
    %7 = vector.load %arg4[%c0_6, %c0_7] : memref<1x32xf32, #tpu.memory_space<vmem>>, vector<1x32xf32>
    %8 = vector.broadcast %7 : vector<1x32xf32> to vector<256x32xf32>
    %9 = arith.addf %6, %8 : vector<256x32xf32>
    %cst_8 = arith.constant 0.000000e+00 : f32
    %10 = vector.broadcast %cst_8 : f32 to vector<256x32xf32>
    %11 = arith.maximumf %9, %10 : vector<256x32xf32>
    %12 = arith.truncf %11 : vector<256x32xf32> to vector<256x32xbf16>
    %13 = vector.shape_cast %12 : vector<256x32xbf16> to vector<16x16x32xbf16>
    %cst_9 = arith.constant 0.000000e+00 : bf16
    %14 = vector.broadcast %cst_9 : bf16 to vector<1x18x32xbf16>
    %cst_10 = arith.constant 0.000000e+00 : bf16
    %15 = vector.broadcast %cst_10 : bf16 to vector<16x1x32xbf16>
    %c0_11 = arith.constant 0 : index
    %c0_12 = arith.constant 0 : index
    %c0_13 = arith.constant 0 : index
    %16 = vector.load %arg12[%c0_11, %c0_12, %c0_13] : memref<18x18x32xbf16, #tpu.memory_space<vmem>>, vector<1x18x32xbf16>
    tpu.vector_store %arg12[%c0_11, %c0_12, %c0_13], %14 {strides = array<i32>} : memref<18x18x32xbf16, #tpu.memory_space<vmem>>, vector<1x18x32xbf16>,
    %c17 = arith.constant 17 : index
    %c0_14 = arith.constant 0 : index
    %c0_15 = arith.constant 0 : index
    %17 = vector.load %arg12[%c17, %c0_14, %c0_15] : memref<18x18x32xbf16, #tpu.memory_space<vmem>>, vector<1x18x32xbf16>
    tpu.vector_store %arg12[%c17, %c0_14, %c0_15], %14 {strides = array<i32>} : memref<18x18x32xbf16, #tpu.memory_space<vmem>>, vector<1x18x32xbf16>,
    %c1 = arith.constant 1 : index
    %c0_16 = arith.constant 0 : index
    %c0_17 = arith.constant 0 : index
    %18 = vector.load %arg12[%c1, %c0_16, %c0_17] : memref<18x18x32xbf16, #tpu.memory_space<vmem>>, vector<16x1x32xbf16>
    tpu.vector_store %arg12[%c1, %c0_16, %c0_17], %15 {strides = array<i32>} : memref<18x18x32xbf16, #tpu.memory_space<vmem>>, vector<16x1x32xbf16>,
    %c1_18 = arith.constant 1 : index
    %c17_19 = arith.constant 17 : index
    %c0_20 = arith.constant 0 : index
    %19 = vector.load %arg12[%c1_18, %c17_19, %c0_20] : memref<18x18x32xbf16, #tpu.memory_space<vmem>>, vector<16x1x32xbf16>
    tpu.vector_store %arg12[%c1_18, %c17_19, %c0_20], %15 {strides = array<i32>} : memref<18x18x32xbf16, #tpu.memory_space<vmem>>, vector<16x1x32xbf16>,
    %c1_21 = arith.constant 1 : index
    %c1_22 = arith.constant 1 : index
    %c0_23 = arith.constant 0 : index
    %20 = vector.load %arg12[%c1_21, %c1_22, %c0_23] : memref<18x18x32xbf16, #tpu.memory_space<vmem>>, vector<16x16x32xbf16>
    tpu.vector_store %arg12[%c1_21, %c1_22, %c0_23], %13 {strides = array<i32>} : memref<18x18x32xbf16, #tpu.memory_space<vmem>>, vector<16x16x32xbf16>,
    %c0_24 = arith.constant 0 : index
    %c0_25 = arith.constant 0 : index
    %c0_26 = arith.constant 0 : index
    %21 = vector.load %arg12[%c0_24, %c0_25, %c0_26] : memref<18x18x32xbf16, #tpu.memory_space<vmem>>, vector<16x16x32xbf16>
    %22 = vector.shape_cast %21 : vector<16x16x32xbf16> to vector<256x32xbf16>
    %c0_27 = arith.constant 0 : index
    %c0_28 = arith.constant 0 : index
    %23 = vector.load %arg13[%c0_27, %c0_28] : memref<256x288xbf16, #tpu.memory_space<vmem>>, vector<256x32xbf16>
    tpu.vector_store %arg13[%c0_27, %c0_28], %22 {strides = array<i32>} : memref<256x288xbf16, #tpu.memory_space<vmem>>, vector<256x32xbf16>,
    %c0_29 = arith.constant 0 : index
    %c1_30 = arith.constant 1 : index
    %c0_31 = arith.constant 0 : index
    %24 = vector.load %arg12[%c0_29, %c1_30, %c0_31] : memref<18x18x32xbf16, #tpu.memory_space<vmem>>, vector<16x16x32xbf16>
    %25 = vector.shape_cast %24 : vector<16x16x32xbf16> to vector<256x32xbf16>
    %c0_32 = arith.constant 0 : index
    %c32 = arith.constant 32 : index
    %26 = vector.load %arg13[%c0_32, %c32] : memref<256x288xbf16, #tpu.memory_space<vmem>>, vector<256x32xbf16>
    tpu.vector_store %arg13[%c0_32, %c32], %25 {strides = array<i32>} : memref<256x288xbf16, #tpu.memory_space<vmem>>, vector<256x32xbf16>,
    %c0_33 = arith.constant 0 : index
    %c2 = arith.constant 2 : index
    %c0_34 = arith.constant 0 : index
    %27 = vector.load %arg12[%c0_33, %c2, %c0_34] : memref<18x18x32xbf16, #tpu.memory_space<vmem>>, vector<16x16x32xbf16>
    %28 = vector.shape_cast %27 : vector<16x16x32xbf16> to vector<256x32xbf16>
    %c0_35 = arith.constant 0 : index
    %c64 = arith.constant 64 : index
    %29 = vector.load %arg13[%c0_35, %c64] : memref<256x288xbf16, #tpu.memory_space<vmem>>, vector<256x32xbf16>
    tpu.vector_store %arg13[%c0_35, %c64], %28 {strides = array<i32>} : memref<256x288xbf16, #tpu.memory_space<vmem>>, vector<256x32xbf16>,
    %c1_36 = arith.constant 1 : index
    %c0_37 = arith.constant 0 : index
    %c0_38 = arith.constant 0 : index
    %30 = vector.load %arg12[%c1_36, %c0_37, %c0_38] : memref<18x18x32xbf16, #tpu.memory_space<vmem>>, vector<16x16x32xbf16>
    %31 = vector.shape_cast %30 : vector<16x16x32xbf16> to vector<256x32xbf16>
    %c0_39 = arith.constant 0 : index
    %c96 = arith.constant 96 : index
    %32 = vector.load %arg13[%c0_39, %c96] : memref<256x288xbf16, #tpu.memory_space<vmem>>, vector<256x32xbf16>
    tpu.vector_store %arg13[%c0_39, %c96], %31 {strides = array<i32>} : memref<256x288xbf16, #tpu.memory_space<vmem>>, vector<256x32xbf16>,
    %c1_40 = arith.constant 1 : index
    %c1_41 = arith.constant 1 : index
    %c0_42 = arith.constant 0 : index
    %33 = vector.load %arg12[%c1_40, %c1_41, %c0_42] : memref<18x18x32xbf16, #tpu.memory_space<vmem>>, vector<16x16x32xbf16>
    %34 = vector.shape_cast %33 : vector<16x16x32xbf16> to vector<256x32xbf16>
    %c0_43 = arith.constant 0 : index
    %c128 = arith.constant 128 : index
    %35 = vector.load %arg13[%c0_43, %c128] : memref<256x288xbf16, #tpu.memory_space<vmem>>, vector<256x32xbf16>
    tpu.vector_store %arg13[%c0_43, %c128], %34 {strides = array<i32>} : memref<256x288xbf16, #tpu.memory_space<vmem>>, vector<256x32xbf16>,
    %c1_44 = arith.constant 1 : index
    %c2_45 = arith.constant 2 : index
    %c0_46 = arith.constant 0 : index
    %36 = vector.load %arg12[%c1_44, %c2_45, %c0_46] : memref<18x18x32xbf16, #tpu.memory_space<vmem>>, vector<16x16x32xbf16>
    %37 = vector.shape_cast %36 : vector<16x16x32xbf16> to vector<256x32xbf16>
    %c0_47 = arith.constant 0 : index
    %c160 = arith.constant 160 : index
    %38 = vector.load %arg13[%c0_47, %c160] : memref<256x288xbf16, #tpu.memory_space<vmem>>, vector<256x32xbf16>
    tpu.vector_store %arg13[%c0_47, %c160], %37 {strides = array<i32>} : memref<256x288xbf16, #tpu.memory_space<vmem>>, vector<256x32xbf16>,
    %c2_48 = arith.constant 2 : index
    %c0_49 = arith.constant 0 : index
    %c0_50 = arith.constant 0 : index
    %39 = vector.load %arg12[%c2_48, %c0_49, %c0_50] : memref<18x18x32xbf16, #tpu.memory_space<vmem>>, vector<16x16x32xbf16>
    %40 = vector.shape_cast %39 : vector<16x16x32xbf16> to vector<256x32xbf16>
    %c0_51 = arith.constant 0 : index
    %c192 = arith.constant 192 : index
    %41 = vector.load %arg13[%c0_51, %c192] : memref<256x288xbf16, #tpu.memory_space<vmem>>, vector<256x32xbf16>
    tpu.vector_store %arg13[%c0_51, %c192], %40 {strides = array<i32>} : memref<256x288xbf16, #tpu.memory_space<vmem>>, vector<256x32xbf16>,
    %c2_52 = arith.constant 2 : index
    %c1_53 = arith.constant 1 : index
    %c0_54 = arith.constant 0 : index
    %42 = vector.load %arg12[%c2_52, %c1_53, %c0_54] : memref<18x18x32xbf16, #tpu.memory_space<vmem>>, vector<16x16x32xbf16>
    %43 = vector.shape_cast %42 : vector<16x16x32xbf16> to vector<256x32xbf16>
    %c0_55 = arith.constant 0 : index
    %c224 = arith.constant 224 : index
    %44 = vector.load %arg13[%c0_55, %c224] : memref<256x288xbf16, #tpu.memory_space<vmem>>, vector<256x32xbf16>
    tpu.vector_store %arg13[%c0_55, %c224], %43 {strides = array<i32>} : memref<256x288xbf16, #tpu.memory_space<vmem>>, vector<256x32xbf16>,
    %c2_56 = arith.constant 2 : index
    %c2_57 = arith.constant 2 : index
    %c0_58 = arith.constant 0 : index
    %45 = vector.load %arg12[%c2_56, %c2_57, %c0_58] : memref<18x18x32xbf16, #tpu.memory_space<vmem>>, vector<16x16x32xbf16>
    %46 = vector.shape_cast %45 : vector<16x16x32xbf16> to vector<256x32xbf16>
    %c0_59 = arith.constant 0 : index
    %c256 = arith.constant 256 : index
    %47 = vector.load %arg13[%c0_59, %c256] : memref<256x288xbf16, #tpu.memory_space<vmem>>, vector<256x32xbf16>
    tpu.vector_store %arg13[%c0_59, %c256], %46 {strides = array<i32>} : memref<256x288xbf16, #tpu.memory_space<vmem>>, vector<256x32xbf16>,
    %c0_60 = arith.constant 0 : index
    %c0_61 = arith.constant 0 : index
    %48 = vector.load %arg13[%c0_60, %c0_61] : memref<256x288xbf16, #tpu.memory_space<vmem>>, vector<256x288xbf16>
    %c0_62 = arith.constant 0 : index
    %c0_63 = arith.constant 0 : index
    %49 = vector.load %arg5[%c0_62, %c0_63] : memref<288x32xbf16, #tpu.memory_space<vmem>>, vector<288x32xbf16>
    %cst_64 = arith.constant dense<0.000000e+00> : vector<256x32xf32>
    %50 = tpu.matmul %48, %49, %cst_64 {dimension_numbers = #tpu.dot_dimension_numbers<[1], [0], [0], [1], [0, 0, 1, 1], [], []>} : vector<256x288xbf16>, vector<288x32xbf16>, vector<256x32xf32> -> vector<256x32xf32>
    %c0_65 = arith.constant 0 : index
    %c0_66 = arith.constant 0 : index
    %51 = vector.load %arg6[%c0_65, %c0_66] : memref<1x32xf32, #tpu.memory_space<vmem>>, vector<1x32xf32>
    %52 = vector.broadcast %51 : vector<1x32xf32> to vector<256x32xf32>
    %53 = arith.mulf %50, %52 : vector<256x32xf32>
    %c0_67 = arith.constant 0 : index
    %c0_68 = arith.constant 0 : index
    %54 = vector.load %arg7[%c0_67, %c0_68] : memref<1x32xf32, #tpu.memory_space<vmem>>, vector<1x32xf32>
    %55 = vector.broadcast %54 : vector<1x32xf32> to vector<256x32xf32>
    %56 = arith.addf %53, %55 : vector<256x32xf32>
    %cst_69 = arith.constant 0.000000e+00 : f32
    %57 = vector.broadcast %cst_69 : f32 to vector<256x32xf32>
    %58 = arith.maximumf %56, %57 : vector<256x32xf32>
    %59 = arith.truncf %58 : vector<256x32xf32> to vector<256x32xbf16>
    %c0_70 = arith.constant 0 : index
    %c0_71 = arith.constant 0 : index
    %60 = vector.load %arg8[%c0_70, %c0_71] : memref<32x32xbf16, #tpu.memory_space<vmem>>, vector<32x32xbf16>
    %cst_72 = arith.constant dense<0.000000e+00> : vector<256x32xf32>
    %61 = tpu.matmul %59, %60, %cst_72 {dimension_numbers = #tpu.dot_dimension_numbers<[1], [0], [0], [1], [0, 0, 1, 1], [], []>} : vector<256x32xbf16>, vector<32x32xbf16>, vector<256x32xf32> -> vector<256x32xf32>
    %c0_73 = arith.constant 0 : index
    %c0_74 = arith.constant 0 : index
    %62 = vector.load %arg9[%c0_73, %c0_74] : memref<1x32xf32, #tpu.memory_space<vmem>>, vector<1x32xf32>
    %63 = vector.broadcast %62 : vector<1x32xf32> to vector<256x32xf32>
    %64 = arith.mulf %61, %63 : vector<256x32xf32>
    %c0_75 = arith.constant 0 : index
    %c0_76 = arith.constant 0 : index
    %65 = vector.load %arg10[%c0_75, %c0_76] : memref<1x32xf32, #tpu.memory_space<vmem>>, vector<1x32xf32>
    %66 = vector.broadcast %65 : vector<1x32xf32> to vector<256x32xf32>
    %67 = arith.addf %64, %66 : vector<256x32xf32>
    %68 = arith.extf %1 : vector<256x32xbf16> to vector<256x32xf32>
    %69 = arith.addf %67, %68 : vector<256x32xf32>
    %cst_77 = arith.constant 0.000000e+00 : f32
    %70 = vector.broadcast %cst_77 : f32 to vector<256x32xf32>
    %71 = arith.maximumf %69, %70 : vector<256x32xf32>
    %c0_78 = arith.constant 0 : index
    %c0_79 = arith.constant 0 : index
    %c0_80 = arith.constant 0 : index
    %72 = vector.load %arg11[%c0_78, %c0_79, %c0_80] : memref<1x256x32xf32, #tpu.memory_space<vmem>>, vector<1x256x32xf32>
    %73 = vector.shape_cast %72 : vector<1x256x32xf32> to vector<256x32xf32>
    %74 = vector.shape_cast %71 : vector<256x32xf32> to vector<1x256x32xf32>
    tpu.vector_store %arg11[%c0_78, %c0_79, %c0_80], %74 {strides = array<i32>} : memref<1x256x32xf32, #tpu.memory_space<vmem>>, vector<1x256x32xf32>,
    return
  }
  func.func @transform_0(%arg0: i32) -> (i32, i32, i32) {
    %c0_i32 = arith.constant 0 : i32
    %c0_i32_0 = arith.constant 0 : i32
    %c0_i32_1 = arith.constant 0 : i32
    return %arg0, %c0_i32, %c0_i32_0 : i32, i32, i32
  }
  func.func @transform_1(%arg0: i32) -> (i32, i32) {
    %c0_i32 = arith.constant 0 : i32
    %c0_i32_0 = arith.constant 0 : i32
    %c0_i32_1 = arith.constant 0 : i32
    return %c0_i32, %c0_i32_0 : i32, i32
  }
  func.func @transform_2(%arg0: i32) -> (i32, i32) {
    %c0_i32 = arith.constant 0 : i32
    %c0_i32_0 = arith.constant 0 : i32
    %c0_i32_1 = arith.constant 0 : i32
    return %c0_i32, %c0_i32_0 : i32, i32
  }
  func.func @transform_3(%arg0: i32) -> (i32, i32) {
    %c0_i32 = arith.constant 0 : i32
    %c0_i32_0 = arith.constant 0 : i32
    %c0_i32_1 = arith.constant 0 : i32
    return %c0_i32, %c0_i32_0 : i32, i32
  }
  func.func @transform_4(%arg0: i32) -> (i32, i32) {
    %c0_i32 = arith.constant 0 : i32
    %c0_i32_0 = arith.constant 0 : i32
    %c0_i32_1 = arith.constant 0 : i32
    return %c0_i32, %c0_i32_0 : i32, i32
  }
  func.func @transform_5(%arg0: i32) -> (i32, i32) {
    %c0_i32 = arith.constant 0 : i32
    %c0_i32_0 = arith.constant 0 : i32
    %c0_i32_1 = arith.constant 0 : i32
    return %c0_i32, %c0_i32_0 : i32, i32
  }
  func.func @transform_6(%arg0: i32) -> (i32, i32) {
    %c0_i32 = arith.constant 0 : i32
    %c0_i32_0 = arith.constant 0 : i32
    %c0_i32_1 = arith.constant 0 : i32
    return %c0_i32, %c0_i32_0 : i32, i32
  }
  func.func @transform_7(%arg0: i32) -> (i32, i32) {
    %c0_i32 = arith.constant 0 : i32
    %c0_i32_0 = arith.constant 0 : i32
    %c0_i32_1 = arith.constant 0 : i32
    return %c0_i32, %c0_i32_0 : i32, i32
  }
  func.func @transform_8(%arg0: i32) -> (i32, i32) {
    %c0_i32 = arith.constant 0 : i32
    %c0_i32_0 = arith.constant 0 : i32
    %c0_i32_1 = arith.constant 0 : i32
    return %c0_i32, %c0_i32_0 : i32, i32
  }
  func.func @transform_9(%arg0: i32) -> (i32, i32) {
    %c0_i32 = arith.constant 0 : i32
    %c0_i32_0 = arith.constant 0 : i32
    %c0_i32_1 = arith.constant 0 : i32
    return %c0_i32, %c0_i32_0 : i32, i32
  }
  func.func @transform_10(%arg0: i32) -> (i32, i32, i32) {
    %c0_i32 = arith.constant 0 : i32
    %c0_i32_0 = arith.constant 0 : i32
    %c0_i32_1 = arith.constant 0 : i32
    return %arg0, %c0_i32, %c0_i32_0 : i32, i32, i32
  }
}

</mosaic_0001>

<llo_original>
// kernel: residual_block50.1
$region0: #{residual_block50.1}
  #allocation0 [shape = 'u32[]', space=smem, size = 0x4, offset = 0x4, fixed_abs, tag = 'smem constant byte address 0x4 - core index']
  #allocation1 [shape = 'u32[144,128]{1,0:T(1,128)}', space=vmem, size = 0x12000, scoped, tag = 'internal scratch']
  #allocation2 [shape = 'bf16[18,18,32]{2,1,0:T(8,128)(2,1)}', space=vmem, size = 0x1b000, scoped, tag = 'scratch operand']
  #allocation3 [shape = 'bf16[256,288]{1,0:T(16,128)(2,1)}', space=vmem, size = 0x30000, scoped, tag = 'scratch operand']
  %s0 = inlined_call_operand.vmem [shape: bf16[2,256,32], index: 0, kind: input, shape index: {}]
  %s1 = inlined_call_operand.vmem [shape: bf16[32,32], index: 1, kind: input, shape index: {}]
  %s2 = inlined_call_operand.vmem [shape: f32[1,32], index: 2, kind: input, shape index: {}]
  %s3 = inlined_call_operand.vmem [shape: f32[1,32], index: 3, kind: input, shape index: {}]
  %s4 = inlined_call_operand.vmem [shape: bf16[288,32], index: 4, kind: input, shape index: {}]
  %s5 = inlined_call_operand.vmem [shape: f32[1,32], index: 5, kind: input, shape index: {}]
  %s6 = inlined_call_operand.vmem [shape: f32[1,32], index: 6, kind: input, shape index: {}]
  %s7 = inlined_call_operand.vmem [shape: bf16[32,32], index: 7, kind: input, shape index: {}]
  %s8 = inlined_call_operand.vmem [shape: f32[1,32], index: 8, kind: input, shape index: {}]
  %s9 = inlined_call_operand.vmem [shape: f32[1,32], index: 9, kind: input, shape index: {}]
  %s10 = inlined_call_operand.hbm [shape: f32[2,256,32], index: 10, kind: output, shape index: {}]
  %s11 = sld [smem:[#allocation0]]
  $region73: #{residual_block50.1} parent=0
    _
  %s13 = ssub.s32 1, %s11
  %s14 = scalar_select 0, %s13, %s11
  $region1: #{residual_block50.1} parent=0
    #allocation4 [shape = 'u8[262144]{0}', space=vmem, size = 0x40000, scoped, tag = 'output window, operand 0']
    #allocation5 [shape = 's32[2]{0}', space=sflag, size = 0x8, scoped, tag = 'scoped memory for residual_block50.1']
    %15 = vsyncpa [#allocation5], 0
    %s16 = scalar_lea.sflag [#allocation5], 1
    %17 = vsyncpa %s16, 0
    loop: start=0, step=1, limit=4
    $region2: #{residual_block50.1} parent=1 // loop_pre_header
      _
    $region3: #{residual_block50.1} parent=1 // loop_header
      %s19 = sphi 0, %s23
      %p20 = scmp.ge.s32.totalorder %s19, 4
      %s29 = sphi 0, %s31
      %s32 = sphi 0, %s29
      %s33 = sphi 0, %s32
      %s49 = sphi 0, %s33
      %s53 = sphi 0, %s53
      %s55 = sphi 0, %s53
      %s56 = sphi 0, %s55
      %s70 = sphi 0, %s56
      %s74 = sphi 0, %s74
      %s76 = sphi 0, %s74
      %s77 = sphi 0, %s76
      %s91 = sphi 0, %s77
      %s95 = sphi 0, %s95
      %s97 = sphi 0, %s95
      %s98 = sphi 0, %s97
      %s112 = sphi 0, %s98
      %s116 = sphi 0, %s116
      %s118 = sphi 0, %s116
      %s119 = sphi 0, %s118
      %s133 = sphi 0, %s119
      %s137 = sphi 0, %s137
      %s139 = sphi 0, %s137
      %s140 = sphi 0, %s139
      %s154 = sphi 0, %s140
      %s158 = sphi 0, %s158
      %s160 = sphi 0, %s158
      %s161 = sphi 0, %s160
      %s175 = sphi 0, %s161
      %s179 = sphi 0, %s179
      %s181 = sphi 0, %s179
      %s182 = sphi 0, %s181
      %s196 = sphi 0, %s182
      %s200 = sphi 0, %s200
      %s202 = sphi 0, %s200
      %s203 = sphi 0, %s202
      %s217 = sphi 0, %s203
      %s221 = sphi 0, %s221
      %s223 = sphi 0, %s221
      %s224 = sphi 0, %s223
      %s238 = sphi 0, %s224
      %s244 = sphi 0, %s246
      %s247 = sphi 0, %s244
      %s248 = sphi 0, %s247
      %s264 = sphi 0, %s248
    $region4: #{residual_block50.1} parent=1 // loop_header_branch
      %22 = sbr.rel (%p20) target = $region8
    $region5: #{residual_block50.1} parent=1 // loop_body
      %s24 = ssub.s32 %s19, 1
      %s25 = ssub.s32 %s19, 2
      %s26 = sadd.s32 %s19, 1
      %s27 = ssub.s32 %s19, %s26
      %p28 = scmp.eq.s32.totalorder %s27, 0
      %s30 = sadd.s32 %s29, 1
      %s31 = scalar_select %p28, %s29, %s30
      %p34 = pneg %p28
      %p35 = scmp.eq.s32.totalorder %s19, 1
      %p36 = por %p34, %p35
      %p37 = scmp.ne.s32.totalorder %s29, %s32
      %p38 = scmp.eq.s32.totalorder %s19, 0
      %p39 = por %p37, %p38
      %p40 = scmp.ne.s32.totalorder %s29, %s32
      %p41 = scmp.eq.s32.totalorder %s24, 1
      %p42 = por %p40, %p41
      %p43 = scmp.ne.s32.totalorder %s32, %s33
      %p44 = scmp.eq.s32.totalorder %s24, 0
      %p45 = por %p43, %p44
      %p46 = scmp.ne.s32.totalorder %s32, %s33
      %p47 = scmp.eq.s32.totalorder %s25, 1
      %p48 = por %p46, %p47
      %p50 = scmp.ne.s32.totalorder %s33, %s49
      %p51 = scmp.eq.s32.totalorder %s25, 0
      %p52 = por %p50, %p51
      %s54 = sadd.s32 %s53, 1
      %p57 = scmp.eq.s32.totalorder %s19, 1
      %p58 = scmp.ne.s32.totalorder %s53, %s55
      %p59 = scmp.eq.s32.totalorder %s19, 0
      %p60 = por %p58, %p59
      %p61 = scmp.ne.s32.totalorder %s53, %s55
      %p62 = scmp.eq.s32.totalorder %s24, 1
      %p63 = por %p61, %p62
      %p64 = scmp.ne.s32.totalorder %s55, %s56
      %p65 = scmp.eq.s32.totalorder %s24, 0
      %p66 = por %p64, %p65
      %p67 = scmp.ne.s32.totalorder %s55, %s56
      %p68 = scmp.eq.s32.totalorder %s25, 1
      %p69 = por %p67, %p68
      %p71 = scmp.ne.s32.totalorder %s56, %s70
      %p72 = scmp.eq.s32.totalorder %s25, 0
      %p73 = por %p71, %p72
      %s75 = sadd.s32 %s74, 1
      %p78 = scmp.eq.s32.totalorder %s19, 1
      %p79 = scmp.ne.s32.totalorder %s74, %s76
      %p80 = scmp.eq.s32.totalorder %s19, 0
      %p81 = por %p79, %p80
      %p82 = scmp.ne.s32.totalorder %s74, %s76
      %p83 = scmp.eq.s32.totalorder %s24, 1
      %p84 = por %p82, %p83
      %p85 = scmp.ne.s32.totalorder %s76, %s77
      %p86 = scmp.eq.s32.totalorder %s24, 0
      %p87 = por %p85, %p86
      %p88 = scmp.ne.s32.totalorder %s76, %s77
      %p89 = scmp.eq.s32.totalorder %s25, 1
      %p90 = por %p88, %p89
      %p92 = scmp.ne.s32.totalorder %s77, %s91
      %p93 = scmp.eq.s32.totalorder %s25, 0
      %p94 = por %p92, %p93
      %s96 = sadd.s32 %s95, 1
      %p99 = scmp.eq.s32.totalorder %s19, 1
      %p100 = scmp.ne.s32.totalorder %s95, %s97
      %p101 = scmp.eq.s32.totalorder %s19, 0
      %p102 = por %p100, %p101
      %p103 = scmp.ne.s32.totalorder %s95, %s97
      %p104 = scmp.eq.s32.totalorder %s24, 1
      %p105 = por %p103, %p104
      %p106 = scmp.ne.s32.totalorder %s97, %s98
      %p107 = scmp.eq.s32.totalorder %s24, 0
      %p108 = por %p106, %p107
      %p109 = scmp.ne.s32.totalorder %s97, %s98
      %p110 = scmp.eq.s32.totalorder %s25, 1
      %p111 = por %p109, %p110
      %p113 = scmp.ne.s32.totalorder %s98, %s112
      %p114 = scmp.eq.s32.totalorder %s25, 0
      %p115 = por %p113, %p114
      %s117 = sadd.s32 %s116, 1
      %p120 = scmp.eq.s32.totalorder %s19, 1
      %p121 = scmp.ne.s32.totalorder %s116, %s118
      %p122 = scmp.eq.s32.totalorder %s19, 0
      %p123 = por %p121, %p122
      %p124 = scmp.ne.s32.totalorder %s116, %s118
      %p125 = scmp.eq.s32.totalorder %s24, 1
      %p126 = por %p124, %p125
      %p127 = scmp.ne.s32.totalorder %s118, %s119
      %p128 = scmp.eq.s32.totalorder %s24, 0
      %p129 = por %p127, %p128
      %p130 = scmp.ne.s32.totalorder %s118, %s119
      %p131 = scmp.eq.s32.totalorder %s25, 1
      %p132 = por %p130, %p131
      %p134 = scmp.ne.s32.totalorder %s119, %s133
      %p135 = scmp.eq.s32.totalorder %s25, 0
      %p136 = por %p134, %p135
      %s138 = sadd.s32 %s137, 1
      %p141 = scmp.eq.s32.totalorder %s19, 1
      %p142 = scmp.ne.s32.totalorder %s137, %s139
      %p143 = scmp.eq.s32.totalorder %s19, 0
      %p144 = por %p142, %p143
      %p145 = scmp.ne.s32.totalorder %s137, %s139
      %p146 = scmp.eq.s32.totalorder %s24, 1
      %p147 = por %p145, %p146
      %p148 = scmp.ne.s32.totalorder %s139, %s140
      %p149 = scmp.eq.s32.totalorder %s24, 0
      %p150 = por %p148, %p149
      %p151 = scmp.ne.s32.totalorder %s139, %s140
      %p152 = scmp.eq.s32.totalorder %s25, 1
      %p153 = por %p151, %p152
      %p155 = scmp.ne.s32.totalorder %s140, %s154
      %p156 = scmp.eq.s32.totalorder %s25, 0
      %p157 = por %p155, %p156
      %s159 = sadd.s32 %s158, 1
      %p162 = scmp.eq.s32.totalorder %s19, 1
      %p163 = scmp.ne.s32.totalorder %s158, %s160
      %p164 = scmp.eq.s32.totalorder %s19, 0
      %p165 = por %p163, %p164
      %p166 = scmp.ne.s32.totalorder %s158, %s160
      %p167 = scmp.eq.s32.totalorder %s24, 1
      %p168 = por %p166, %p167
      %p169 = scmp.ne.s32.totalorder %s160, %s161
      %p170 = scmp.eq.s32.totalorder %s24, 0
      %p171 = por %p169, %p170
      %p172 = scmp.ne.s32.totalorder %s160, %s161
      %p173 = scmp.eq.s32.totalorder %s25, 1
      %p174 = por %p172, %p173
      %p176 = scmp.ne.s32.totalorder %s161, %s175
      %p177 = scmp.eq.s32.totalorder %s25, 0
      %p178 = por %p176, %p177
      %s180 = sadd.s32 %s179, 1
      %p183 = scmp.eq.s32.totalorder %s19, 1
      %p184 = scmp.ne.s32.totalorder %s179, %s181
      %p185 = scmp.eq.s32.totalorder %s19, 0
      %p186 = por %p184, %p185
      %p187 = scmp.ne.s32.totalorder %s179, %s181
      %p188 = scmp.eq.s32.totalorder %s24, 1
      %p189 = por %p187, %p188
      %p190 = scmp.ne.s32.totalorder %s181, %s182
      %p191 = scmp.eq.s32.totalorder %s24, 0
      %p192 = por %p190, %p191
      %p193 = scmp.ne.s32.totalorder %s181, %s182
      %p194 = scmp.eq.s32.totalorder %s25, 1
      %p195 = por %p193, %p194
      %p197 = scmp.ne.s32.totalorder %s182, %s196
      %p198 = scmp.eq.s32.totalorder %s25, 0
      %p199 = por %p197, %p198
      %s201 = sadd.s32 %s200, 1
      %p204 = scmp.eq.s32.totalorder %s19, 1
      %p205 = scmp.ne.s32.totalorder %s200, %s202
      %p206 = scmp.eq.s32.totalorder %s19, 0
      %p207 = por %p205, %p206
      %p208 = scmp.ne.s32.totalorder %s200, %s202
      %p209 = scmp.eq.s32.totalorder %s24, 1
      %p210 = por %p208, %p209
      %p211 = scmp.ne.s32.totalorder %s202, %s203
      %p212 = scmp.eq.s32.totalorder %s24, 0
      %p213 = por %p211, %p212
      %p214 = scmp.ne.s32.totalorder %s202, %s203
      %p215 = scmp.eq.s32.totalorder %s25, 1
      %p216 = por %p214, %p215
      %p218 = scmp.ne.s32.totalorder %s203, %s217
      %p219 = scmp.eq.s32.totalorder %s25, 0
      %p220 = por %p218, %p219
      %s222 = sadd.s32 %s221, 1
      %p225 = scmp.eq.s32.totalorder %s19, 1
      %p226 = scmp.ne.s32.totalorder %s221, %s223
      %p227 = scmp.eq.s32.totalorder %s19, 0
      %p228 = por %p226, %p227
      %p229 = scmp.ne.s32.totalorder %s221, %s223
      %p230 = scmp.eq.s32.totalorder %s24, 1
      %p231 = por %p229, %p230
      %p232 = scmp.ne.s32.totalorder %s223, %s224
      %p233 = scmp.eq.s32.totalorder %s24, 0
      %p234 = por %p232, %p233
      %p235 = scmp.ne.s32.totalorder %s223, %s224
      %p236 = scmp.eq.s32.totalorder %s25, 1
      %p237 = por %p235, %p236
      %p239 = scmp.ne.s32.totalorder %s224, %s238
      %p240 = scmp.eq.s32.totalorder %s25, 0
      %p241 = por %p239, %p240
      %s242 = ssub.s32 %s19, %s26
      %p243 = scmp.eq.s32.totalorder %s242, 0
      %s245 = sadd.s32 %s244, 1
      %s246 = scalar_select %p243, %s244, %s245
      %p249 = pneg %p243
      %p250 = scmp.eq.s32.totalorder %s19, 1
      %p251 = por %p249, %p250
      %p252 = scmp.ne.s32.totalorder %s244, %s247
      %p253 = scmp.eq.s32.totalorder %s19, 0
      %p254 = por %p252, %p253
      %p255 = scmp.ne.s32.totalorder %s244, %s247
      %p256 = scmp.eq.s32.totalorder %s24, 1
      %p257 = por %p255, %p256
      %p258 = scmp.ne.s32.totalorder %s247, %s248
      %p259 = scmp.eq.s32.totalorder %s24, 0
      %p260 = por %p258, %p259
      %p261 = scmp.ne.s32.totalorder %s247, %s248
      %p262 = scmp.eq.s32.totalorder %s25, 1
      %p263 = por %p261, %p262
      %p265 = scmp.ne.s32.totalorder %s248, %s264
      %p266 = scmp.eq.s32.totalorder %s25, 0
      %p267 = por %p265, %p266
      %p268 = scmp.le.s32.totalorder 1, %s19
      %p269 = scmp.lt.s32.totalorder %s19, 3
      %p270 = pnand %p268, %p269
      %p271 = pneg %p270
      // Predicated region
      $region9: #{residual_block50.1} parent=5 // pred_check
        _
      $region10: #{residual_block50.1} parent=5 // pred_check_branch
        %273 = sbr.rel (%p270) target = $region12
      $region11: #{residual_block50.1} parent=5 // pred_region
        %s274 = ssub.s32 %s19, 1
        // Predicated region
        $region13: #{residual_block50.1} parent=11 // pred_check
          %p275 = pneg %p66
        $region14: #{residual_block50.1} parent=11 // pred_check_branch
          %277 = sbr.rel (%p275) target = $region16
        $region15: #{residual_block50.1} parent=11 // pred_region
          _
        $region16: #{residual_block50.1} parent=11 // pred_fallthru
          _
        // Predicated region
        $region17: #{residual_block50.1} parent=11 // pred_check
          %p278 = pneg %p87
        $region18: #{residual_block50.1} parent=11 // pred_check_branch
          %280 = sbr.rel (%p278) target = $region20
        $region19: #{residual_block50.1} parent=11 // pred_region
          _
        $region20: #{residual_block50.1} parent=11 // pred_fallthru
          _
        // Predicated region
        $region21: #{residual_block50.1} parent=11 // pred_check
          %p281 = pneg %p108
        $region22: #{residual_block50.1} parent=11 // pred_check_branch
          %283 = sbr.rel (%p281) target = $region24
        $region23: #{residual_block50.1} parent=11 // pred_region
          _
        $region24: #{residual_block50.1} parent=11 // pred_fallthru
          _
        // Predicated region
        $region25: #{residual_block50.1} parent=11 // pred_check
          %p284 = pneg %p129
        $region26: #{residual_block50.1} parent=11 // pred_check_branch
          %286 = sbr.rel (%p284) target = $region28
        $region27: #{residual_block50.1} parent=11 // pred_region
          _
        $region28: #{residual_block50.1} parent=11 // pred_fallthru
          _
        // Predicated region
        $region29: #{residual_block50.1} parent=11 // pred_check
          %p287 = pneg %p150
        $region30: #{residual_block50.1} parent=11 // pred_check_branch
          %289 = sbr.rel (%p287) target = $region32
        $region31: #{residual_block50.1} parent=11 // pred_region
          _
        $region32: #{residual_block50.1} parent=11 // pred_fallthru
          _
        // Predicated region
        $region33: #{residual_block50.1} parent=11 // pred_check
          %p290 = pneg %p171
        $region34: #{residual_block50.1} parent=11 // pred_check_branch
          %292 = sbr.rel (%p290) target = $region36
        $region35: #{residual_block50.1} parent=11 // pred_region
          _
        $region36: #{residual_block50.1} parent=11 // pred_fallthru
          _
        // Predicated region
        $region37: #{residual_block50.1} parent=11 // pred_check
          %p293 = pneg %p192
        $region38: #{residual_block50.1} parent=11 // pred_check_branch
          %295 = sbr.rel (%p293) target = $region40
        $region39: #{residual_block50.1} parent=11 // pred_region
          _
        $region40: #{residual_block50.1} parent=11 // pred_fallthru
          _
        // Predicated region
        $region41: #{residual_block50.1} parent=11 // pred_check
          %p296 = pneg %p213
        $region42: #{residual_block50.1} parent=11 // pred_check_branch
          %298 = sbr.rel (%p296) target = $region44
        $region43: #{residual_block50.1} parent=11 // pred_region
          _
        $region44: #{residual_block50.1} parent=11 // pred_fallthru
          _
        // Predicated region
        $region45: #{residual_block50.1} parent=11 // pred_check
          %p299 = pneg %p234
        $region46: #{residual_block50.1} parent=11 // pred_check_branch
          %301 = sbr.rel (%p299) target = $region48
        $region47: #{residual_block50.1} parent=11 // pred_region
          _
        $region48: #{residual_block50.1} parent=11 // pred_fallthru
          _
      $region12: #{residual_block50.1} parent=5 // pred_fallthru
        _
      %p302 = scmp.lt.s32.totalorder %s19, 2
      // Predicated region
      $region49: #{residual_block50.1} parent=5 // pred_check
        %p303 = pneg %p302
      $region50: #{residual_block50.1} parent=5 // pred_check_branch
        %305 = sbr.rel (%p303) target = $region52
      $region51: #{residual_block50.1} parent=5 // pred_region
        // Predicated region
        $region53: #{residual_block50.1} parent=51 // pred_check
          %p306 = pneg %p39
        $region54: #{residual_block50.1} parent=51 // pred_check_branch
          %308 = sbr.rel (%p306) target = $region56
        $region55: #{residual_block50.1} parent=51 // pred_region
          %p309 = scmp.lt.s32.totalorder %s19, 1
          %s310 = scalar_select %p309, %s19, 1
          %s311 = smul.addr %s310, 32
          %s312 = smul.addr %s311, 4
          %s313 = scalar_lea.vmem %s0, %s312
        $region56: #{residual_block50.1} parent=51 // pred_fallthru
          _
      $region52: #{residual_block50.1} parent=5 // pred_fallthru
        _
      %p314 = scmp.le.s32.totalorder 1, %s19
      %p315 = scmp.lt.s32.totalorder %s19, 3
      %p316 = pnand %p314, %p315
      %p317 = pneg %p316
      // Predicated region
      $region57: #{residual_block50.1} parent=5 // pred_check
        _
      $region58: #{residual_block50.1} parent=5 // pred_check_branch
        %319 = sbr.rel (%p316) target = $region60
      $region59: #{residual_block50.1} parent=5 // pred_region
        %s320 = ssub.s32 %s19, 1
        %p321 = scmp.lt.s32.totalorder %s24, 1
        %s322 = scalar_select %p321, %s24, 1
        %s323 = smul.addr %s322, 32
        %s324 = smul.addr %s323, 4
        %s325 = scalar_lea.vmem %s0, %s324
        %p326 = pneg %p45
        %p327 = pneg %p42
        %p328 = pneg %p66
        %p329 = pneg %p63
        %p330 = pneg %p87
        %p331 = pneg %p84
        %p332 = pneg %p108
        %p333 = pneg %p105
        %p334 = pneg %p129
        %p335 = pneg %p126
        %p336 = pneg %p150
        %p337 = pneg %p147
        %p338 = pneg %p171
        %p339 = pneg %p168
        %p340 = pneg %p192
        %p341 = pneg %p189
        %p342 = pneg %p213
        %p343 = pneg %p210
        %p344 = pneg %p234
        %p345 = pneg %p231
        %p346 = pneg %p260
        %p347 = pneg %p257
        %s348 = sand.u32 %s247, 1
        %s349 = scalar_lea.sflag [#allocation5], %s348
        %s350 = sand.u32 %s247, 1
        %s351 = smul.addr %s350, 256
        %s352 = scalar_lea.vmem [#allocation4], %s351
        %p353 = scmp.lt.s32.totalorder %s24, 1
        %s354 = scalar_select %p353, %s24, 1
        %s355 = smul.addr %s354, 32
        %s356 = smul.addr %s355, 4
        %s357 = scalar_lea.vmem %s0, %s356
        %v359 = vld [vmem:[%s357] sm:$0xf]
        %v360 = vld [vmem:[%s357 + $0x4] sm:$0xf]
        %v361 = vld [vmem:[%s357 + $0x8] sm:$0xf]
        %v362 = vld [vmem:[%s357 + $0xc] sm:$0xf]
        %v363 = vld [vmem:[%s357 + $0x10] sm:$0xf]
        %v364 = vld [vmem:[%s357 + $0x14] sm:$0xf]
        %v365 = vld [vmem:[%s357 + $0x18] sm:$0xf]
        %v366 = vld [vmem:[%s357 + $0x1c] sm:$0xf]
        %v367 = vld [vmem:[%s357 + $0x20] sm:$0xf]
        %v368 = vld [vmem:[%s357 + $0x24] sm:$0xf]
        %v369 = vld [vmem:[%s357 + $0x28] sm:$0xf]
        %v370 = vld [vmem:[%s357 + $0x2c] sm:$0xf]
        %v371 = vld [vmem:[%s357 + $0x30] sm:$0xf]
        %v372 = vld [vmem:[%s357 + $0x34] sm:$0xf]
        %v373 = vld [vmem:[%s357 + $0x38] sm:$0xf]
        %v374 = vld [vmem:[%s357 + $0x3c] sm:$0xf]
        %v375 = vld [vmem:[%s357 + $0x40] sm:$0xf]
        %v376 = vld [vmem:[%s357 + $0x44] sm:$0xf]
        %v377 = vld [vmem:[%s357 + $0x48] sm:$0xf]
        %v378 = vld [vmem:[%s357 + $0x4c] sm:$0xf]
        %v379 = vld [vmem:[%s357 + $0x50] sm:$0xf]
        %v380 = vld [vmem:[%s357 + $0x54] sm:$0xf]
        %v381 = vld [vmem:[%s357 + $0x58] sm:$0xf]
        %v382 = vld [vmem:[%s357 + $0x5c] sm:$0xf]
        %v383 = vld [vmem:[%s357 + $0x60] sm:$0xf]
        %v384 = vld [vmem:[%s357 + $0x64] sm:$0xf]
        %v385 = vld [vmem:[%s357 + $0x68] sm:$0xf]
        %v386 = vld [vmem:[%s357 + $0x6c] sm:$0xf]
        %v387 = vld [vmem:[%s357 + $0x70] sm:$0xf]
        %v388 = vld [vmem:[%s357 + $0x74] sm:$0xf]
        %v389 = vld [vmem:[%s357 + $0x78] sm:$0xf]
        %v390 = vld [vmem:[%s357 + $0x7c] sm:$0xf]
        %v391 = vld [vmem:[%s1] sm:$0xf]
        %v392 = vld [vmem:[%s1 + $0x4] sm:$0xf]
        %v393 = vld [vmem:[%s1 + $0x8] sm:$0xf]
        %v394 = vld [vmem:[%s1 + $0xc] sm:$0xf]
        %v427 = vunpack.c.l.b16 %v359
        %v428 = vunpack.c.l.b16 %v360
        %v429 = vunpack.c.l.b16 %v361
        %v430 = vunpack.c.l.b16 %v362
        %v431 = vunpack.c.l.b16 %v363
        %v432 = vunpack.c.l.b16 %v364
        %v433 = vunpack.c.l.b16 %v365
        %v434 = vunpack.c.l.b16 %v366
        %v435 = vunpack.c.l.b16 %v367
        %v436 = vunpack.c.l.b16 %v368
        %v437 = vunpack.c.l.b16 %v369
        %v438 = vunpack.c.l.b16 %v370
        %v439 = vunpack.c.l.b16 %v371
        %v440 = vunpack.c.l.b16 %v372
        %v441 = vunpack.c.l.b16 %v373
        %v442 = vunpack.c.l.b16 %v374
        %v443 = vunpack.c.l.b16 %v375
        %v444 = vunpack.c.l.b16 %v376
        %v445 = vunpack.c.l.b16 %v377
        %v446 = vunpack.c.l.b16 %v378
        %v447 = vunpack.c.l.b16 %v379
        %v448 = vunpack.c.l.b16 %v380
        %v449 = vunpack.c.l.b16 %v381
        %v450 = vunpack.c.l.b16 %v382
        %v451 = vunpack.c.l.b16 %v383
        %v452 = vunpack.c.l.b16 %v384
        %v453 = vunpack.c.l.b16 %v385
        %v454 = vunpack.c.l.b16 %v386
        %v455 = vunpack.c.l.b16 %v387
        %v456 = vunpack.c.l.b16 %v388
        %v457 = vunpack.c.l.b16 %v389
        %v458 = vunpack.c.l.b16 %v390
        %v459 = vpack.c.b16 %v428, %v427
        %v460 = vpack.c.b16 %v430, %v429
        %v461 = vpack.c.b16 %v432, %v431
        %v462 = vpack.c.b16 %v434, %v433
        %v463 = vpack.c.b16 %v436, %v435
        %v464 = vpack.c.b16 %v438, %v437
        %v465 = vpack.c.b16 %v440, %v439
        %v466 = vpack.c.b16 %v442, %v441
        %v467 = vpack.c.b16 %v444, %v443
        %v468 = vpack.c.b16 %v446, %v445
        %v469 = vpack.c.b16 %v448, %v447
        %v470 = vpack.c.b16 %v450, %v449
        %v471 = vpack.c.b16 %v452, %v451
        %v472 = vpack.c.b16 %v454, %v453
        %v473 = vpack.c.b16 %v456, %v455
        %v474 = vpack.c.b16 %v458, %v457
        %v479 = vunpack.c.l.b16 %v391
        %v480 = vunpack.c.l.b16 %v392
        %v481 = vunpack.c.l.b16 %v393
        %v482 = vunpack.c.l.b16 %v394
        %v483 = vpack.c.b16 %v480, %v479
        %v484 = vpack.c.b16 %v482, %v481
        %vm487 = vcmask 261120
        %v489 = vsel %vm487, %v459, 0
        %v492 = vsel %vm487, %v460, 0
        %v495 = vsel %vm487, %v461, 0
        %v498 = vsel %vm487, %v462, 0
        %v501 = vsel %vm487, %v463, 0
        %v504 = vsel %vm487, %v464, 0
        %v507 = vsel %vm487, %v465, 0
        %v510 = vsel %vm487, %v466, 0
        %v513 = vsel %vm487, %v467, 0
        %v516 = vsel %vm487, %v468, 0
        %v519 = vsel %vm487, %v469, 0
        %v522 = vsel %vm487, %v470, 0
        %v525 = vsel %vm487, %v471, 0
        %v528 = vsel %vm487, %v472, 0
        %v531 = vsel %vm487, %v473, 0
        %v534 = vsel %vm487, %v474, 0
        %536 = vmatprep.subr.bf16.mxu0 0
        %537 = vmatpush1.bf16.msra.mxu0 %v483
        %538 = vmatprep.subr.bf16.mxu0 0
        %539 = vmatpush1.bf16.msra.mxu0 %v484
        %540 = vmatprep.subr.bf16.mxu0 0
        %541 = vmatpush1.bf16.msra.mxu0 0
        %542 = vmatprep.subr.bf16.mxu0 0
        %543 = vmatpush1.bf16.msra.mxu0 0
        %544 = vmatprep.subr.bf16.mxu0 0
        %545 = vmatpush1.bf16.msra.mxu0 0
        %546 = vmatprep.subr.bf16.mxu0 0
        %547 = vmatpush1.bf16.msra.mxu0 0
        %548 = vmatprep.subr.bf16.mxu0 0
        %549 = vmatpush1.bf16.msra.mxu0 0
        %550 = vmatprep.subr.bf16.mxu0 0
        %551 = vmatpush1.bf16.msra.mxu0 0
        %552 = vmatprep.subr.bf16.mxu0 0
        %553 = vmatpush1.bf16.msra.mxu0 0
        %554 = vmatprep.subr.bf16.mxu0 0
        %555 = vmatpush1.bf16.msra.mxu0 0
        %556 = vmatprep.subr.bf16.mxu0 0
        %557 = vmatpush1.bf16.msra.mxu0 0
        %558 = vmatprep.subr.bf16.mxu0 0
        %559 = vmatpush1.bf16.msra.mxu0 0
        %560 = vmatprep.subr.bf16.mxu0 0
        %561 = vmatpush1.bf16.msra.mxu0 0
        %562 = vmatprep.subr.bf16.mxu0 0
        %563 = vmatpush1.bf16.msra.mxu0 0
        %564 = vmatprep.subr.bf16.mxu0 0
        %565 = vmatpush1.bf16.msra.mxu0 0
        %566 = vmatprep.subr.bf16.mxu0 0
        %567 = vmatpush1.bf16.msra.mxu0 0
        %568 = vmatprep.mubr.bf16.mxu0 0
        %569 = vmatmul.mubr.bf16.gmra.mrb[0].mxu0 %v489
        %v570 = vpop.f32.mrb[0].mxu0
        %v571 = vadd.f32 0.0, %v570
        %v572 = vpop.f32.mrb[0].mxu0
        %v573 = vpop.f32.mrb[0].mxu0
        %v574 = vadd.f32 0.0, %v573
        %v575 = vpop.f32.mrb[0].mxu0
        %576 = vmatprep.mubr.bf16.mxu0 0
        %577 = vmatmul.mubr.bf16.gmra.mrb[0].mxu0 %v492
        %v578 = vpop.f32.mrb[0].mxu0
        %v579 = vadd.f32 0.0, %v578
        %v580 = vpop.f32.mrb[0].mxu0
        %v581 = vpop.f32.mrb[0].mxu0
        %v582 = vadd.f32 0.0, %v581
        %v583 = vpop.f32.mrb[0].mxu0
        %584 = vmatprep.mubr.bf16.mxu0 0
        %585 = vmatmul.mubr.bf16.gmra.mrb[0].mxu0 %v495
        %v586 = vpop.f32.mrb[0].mxu0
        %v587 = vadd.f32 0.0, %v586
        %v588 = vpop.f32.mrb[0].mxu0
        %v589 = vpop.f32.mrb[0].mxu0
        %v590 = vadd.f32 0.0, %v589
        %v591 = vpop.f32.mrb[0].mxu0
        %592 = vmatprep.mubr.bf16.mxu0 0
        %593 = vmatmul.mubr.bf16.gmra.mrb[0].mxu0 %v498
        %v594 = vpop.f32.mrb[0].mxu0
        %v595 = vadd.f32 0.0, %v594
        %v596 = vpop.f32.mrb[0].mxu0
        %v597 = vpop.f32.mrb[0].mxu0
        %v598 = vadd.f32 0.0, %v597
        %v599 = vpop.f32.mrb[0].mxu0
        %600 = vmatprep.mubr.bf16.mxu0 0
        %601 = vmatmul.mubr.bf16.gmra.mrb[0].mxu0 %v501
        %v602 = vpop.f32.mrb[0].mxu0
        %v603 = vadd.f32 0.0, %v602
        %v604 = vpop.f32.mrb[0].mxu0
        %v605 = vpop.f32.mrb[0].mxu0
        %v606 = vadd.f32 0.0, %v605
        %v607 = vpop.f32.mrb[0].mxu0
        %608 = vmatprep.mubr.bf16.mxu0 0
        %609 = vmatmul.mubr.bf16.gmra.mrb[0].mxu0 %v504
        %v610 = vpop.f32.mrb[0].mxu0
        %v611 = vadd.f32 0.0, %v610
        %v612 = vpop.f32.mrb[0].mxu0
        %v613 = vpop.f32.mrb[0].mxu0
        %v614 = vadd.f32 0.0, %v613
        %v615 = vpop.f32.mrb[0].mxu0
        %616 = vmatprep.mubr.bf16.mxu0 0
        %617 = vmatmul.mubr.bf16.gmra.mrb[0].mxu0 %v507
        %v618 = vpop.f32.mrb[0].mxu0
        %v619 = vadd.f32 0.0, %v618
        %v620 = vpop.f32.mrb[0].mxu0
        %v621 = vpop.f32.mrb[0].mxu0
        %v622 = vadd.f32 0.0, %v621
        %v623 = vpop.f32.mrb[0].mxu0
        %624 = vmatprep.mubr.bf16.mxu0 0
        %625 = vmatmul.mubr.bf16.gmra.mrb[0].mxu0 %v510
        %v626 = vpop.f32.mrb[0].mxu0
        %v627 = vadd.f32 0.0, %v626
        %v628 = vpop.f32.mrb[0].mxu0
        %v629 = vpop.f32.mrb[0].mxu0
        %v630 = vadd.f32 0.0, %v629
        %v631 = vpop.f32.mrb[0].mxu0
        %632 = vmatprep.mubr.bf16.mxu0 0
        %633 = vmatmul.mubr.bf16.gmra.mrb[0].mxu0 %v513
        %v634 = vpop.f32.mrb[0].mxu0
        %v635 = vadd.f32 0.0, %v634
        %v636 = vpop.f32.mrb[0].mxu0
        %v637 = vpop.f32.mrb[0].mxu0
        %v638 = vadd.f32 0.0, %v637
        %v639 = vpop.f32.mrb[0].mxu0
        %640 = vmatprep.mubr.bf16.mxu0 0
        %641 = vmatmul.mubr.bf16.gmra.mrb[0].mxu0 %v516
        %v642 = vpop.f32.mrb[0].mxu0
        %v643 = vadd.f32 0.0, %v642
        %v644 = vpop.f32.mrb[0].mxu0
        %v645 = vpop.f32.mrb[0].mxu0
        %v646 = vadd.f32 0.0, %v645
        %v647 = vpop.f32.mrb[0].mxu0
        %648 = vmatprep.mubr.bf16.mxu0 0
        %649 = vmatmul.mubr.bf16.gmra.mrb[0].mxu0 %v519
        %v650 = vpop.f32.mrb[0].mxu0
        %v651 = vadd.f32 0.0, %v650
        %v652 = vpop.f32.mrb[0].mxu0
        %v653 = vpop.f32.mrb[0].mxu0
        %v654 = vadd.f32 0.0, %v653
        %v655 = vpop.f32.mrb[0].mxu0
        %656 = vmatprep.mubr.bf16.mxu0 0
        %657 = vmatmul.mubr.bf16.gmra.mrb[0].mxu0 %v522
        %v658 = vpop.f32.mrb[0].mxu0
        %v659 = vadd.f32 0.0, %v658
        %v660 = vpop.f32.mrb[0].mxu0
        %v661 = vpop.f32.mrb[0].mxu0
        %v662 = vadd.f32 0.0, %v661
        %v663 = vpop.f32.mrb[0].mxu0
        %664 = vmatprep.mubr.bf16.mxu0 0
        %665 = vmatmul.mubr.bf16.gmra.mrb[0].mxu0 %v525
        %v666 = vpop.f32.mrb[0].mxu0
        %v667 = vadd.f32 0.0, %v666
        %v668 = vpop.f32.mrb[0].mxu0
        %v669 = vpop.f32.mrb[0].mxu0
        %v670 = vadd.f32 0.0, %v669
        %v671 = vpop.f32.mrb[0].mxu0
        %672 = vmatprep.mubr.bf16.mxu0 0
        %673 = vmatmul.mubr.bf16.gmra.mrb[0].mxu0 %v528
        %v674 = vpop.f32.mrb[0].mxu0
        %v675 = vadd.f32 0.0, %v674
        %v676 = vpop.f32.mrb[0].mxu0
        %v677 = vpop.f32.mrb[0].mxu0
        %v678 = vadd.f32 0.0, %v677
        %v679 = vpop.f32.mrb[0].mxu0
        %680 = vmatprep.mubr.bf16.mxu0 0
        %681 = vmatmul.mubr.bf16.gmra.mrb[0].mxu0 %v531
        %v682 = vpop.f32.mrb[0].mxu0
        %v683 = vadd.f32 0.0, %v682
        %v684 = vpop.f32.mrb[0].mxu0
        %v685 = vpop.f32.mrb[0].mxu0
        %v686 = vadd.f32 0.0, %v685
        %v687 = vpop.f32.mrb[0].mxu0
        %688 = vmatprep.mubr.bf16.mxu0 0
        %689 = vmatmul.mubr.bf16.gmra.mrb[0].mxu0 %v534
        %v690 = vpop.f32.mrb[0].mxu0
        %v691 = vadd.f32 0.0, %v690
        %v692 = vpop.f32.mrb[0].mxu0
        %v693 = vpop.f32.mrb[0].mxu0
        %v694 = vadd.f32 0.0, %v693
        %v695 = vpop.f32.mrb[0].mxu0
        %696 = vdwg.mxu0
        %v697 = vld [vmem:[%s2] sm:$0x1]
        %v699 = vlaneseq
        %v700 = vshrl.u32 %v699, 7
        %v701 = vsub.s32 0, %v700
        %v702 = vrot.slane %v697, %v701
        %v704 = vmul.f32 %v571, %v702
        %v705 = vmul.f32 %v574, %v702
        %v706 = vmul.f32 %v579, %v702
        %v707 = vmul.f32 %v582, %v702
        %v708 = vmul.f32 %v587, %v702
        %v709 = vmul.f32 %v590, %v702
        %v710 = vmul.f32 %v595, %v702
        %v711 = vmul.f32 %v598, %v702
        %v712 = vmul.f32 %v603, %v702
        %v713 = vmul.f32 %v606, %v702
        %v714 = vmul.f32 %v611, %v702
        %v715 = vmul.f32 %v614, %v702
        %v716 = vmul.f32 %v619, %v702
        %v717 = vmul.f32 %v622, %v702
        %v718 = vmul.f32 %v627, %v702
        %v719 = vmul.f32 %v630, %v702
        %v720 = vmul.f32 %v635, %v702
        %v721 = vmul.f32 %v638, %v702
        %v722 = vmul.f32 %v643, %v702
        %v723 = vmul.f32 %v646, %v702
        %v724 = vmul.f32 %v651, %v702
        %v725 = vmul.f32 %v654, %v702
        %v726 = vmul.f32 %v659, %v702
        %v727 = vmul.f32 %v662, %v702
        %v728 = vmul.f32 %v667, %v702
        %v729 = vmul.f32 %v670, %v702
        %v730 = vmul.f32 %v675, %v702
        %v731 = vmul.f32 %v678, %v702
        %v732 = vmul.f32 %v683, %v702
        %v733 = vmul.f32 %v686, %v702
        %v734 = vmul.f32 %v691, %v702
        %v735 = vmul.f32 %v694, %v702
        %v736 = vld [vmem:[%s3] sm:$0x1]
        %v738 = vlaneseq
        %v739 = vshrl.u32 %v738, 7
        %v740 = vsub.s32 0, %v739
        %v741 = vrot.slane %v736, %v740
        %v743 = vadd.f32 %v704, %v741
        %v744 = vadd.f32 %v705, %v741
        %v745 = vadd.f32 %v706, %v741
        %v746 = vadd.f32 %v707, %v741
        %v747 = vadd.f32 %v708, %v741
        %v748 = vadd.f32 %v709, %v741
        %v749 = vadd.f32 %v710, %v741
        %v750 = vadd.f32 %v711, %v741
        %v751 = vadd.f32 %v712, %v741
        %v752 = vadd.f32 %v713, %v741
        %v753 = vadd.f32 %v714, %v741
        %v754 = vadd.f32 %v715, %v741
        %v755 = vadd.f32 %v716, %v741
        %v756 = vadd.f32 %v717, %v741
        %v757 = vadd.f32 %v718, %v741
        %v758 = vadd.f32 %v719, %v741
        %v759 = vadd.f32 %v720, %v741
        %v760 = vadd.f32 %v721, %v741
        %v761 = vadd.f32 %v722, %v741
        %v762 = vadd.f32 %v723, %v741
        %v763 = vadd.f32 %v724, %v741
        %v764 = vadd.f32 %v725, %v741
        %v765 = vadd.f32 %v726, %v741
        %v766 = vadd.f32 %v727, %v741
        %v767 = vadd.f32 %v728, %v741
        %v768 = vadd.f32 %v729, %v741
        %v769 = vadd.f32 %v730, %v741
        %v770 = vadd.f32 %v731, %v741
        %v771 = vadd.f32 %v732, %v741
        %v772 = vadd.f32 %v733, %v741
        %v773 = vadd.f32 %v734, %v741
        %v774 = vadd.f32 %v735, %v741
        %v775 = vmax.f32 %v743, 0.0
        %v776 = vmax.f32 %v744, 0.0
        %v777 = vmax.f32 %v745, 0.0
        %v778 = vmax.f32 %v746, 0.0
        %v779 = vmax.f32 %v747, 0.0
        %v780 = vmax.f32 %v748, 0.0
        %v781 = vmax.f32 %v749, 0.0
        %v782 = vmax.f32 %v750, 0.0
        %v783 = vmax.f32 %v751, 0.0
        %v784 = vmax.f32 %v752, 0.0
        %v785 = vmax.f32 %v753, 0.0
        %v786 = vmax.f32 %v754, 0.0
        %v787 = vmax.f32 %v755, 0.0
        %v788 = vmax.f32 %v756, 0.0
        %v789 = vmax.f32 %v757, 0.0
        %v790 = vmax.f32 %v758, 0.0
        %v791 = vmax.f32 %v759, 0.0
        %v792 = vmax.f32 %v760, 0.0
        %v793 = vmax.f32 %v761, 0.0
        %v794 = vmax.f32 %v762, 0.0
        %v795 = vmax.f32 %v763, 0.0
        %v796 = vmax.f32 %v764, 0.0
        %v797 = vmax.f32 %v765, 0.0
        %v798 = vmax.f32 %v766, 0.0
        %v799 = vmax.f32 %v767, 0.0
        %v800 = vmax.f32 %v768, 0.0
        %v801 = vmax.f32 %v769, 0.0
        %v802 = vmax.f32 %v770, 0.0
        %v803 = vmax.f32 %v771, 0.0
        %v804 = vmax.f32 %v772, 0.0
        %v805 = vmax.f32 %v773, 0.0
        %v806 = vmax.f32 %v774, 0.0
        %v807 = vpack.c.bf16 %v776, %v775
        %v808 = vpack.c.bf16 %v778, %v777
        %v809 = vpack.c.bf16 %v780, %v779
        %v810 = vpack.c.bf16 %v782, %v781
        %v811 = vpack.c.bf16 %v784, %v783
        %v812 = vpack.c.bf16 %v786, %v785
        %v813 = vpack.c.bf16 %v788, %v787
        %v814 = vpack.c.bf16 %v790, %v789
        %v815 = vpack.c.bf16 %v792, %v791
        %v816 = vpack.c.bf16 %v794, %v793
        %v817 = vpack.c.bf16 %v796, %v795
        %v818 = vpack.c.bf16 %v798, %v797
        %v819 = vpack.c.bf16 %v800, %v799
        %v820 = vpack.c.bf16 %v802, %v801
        %v821 = vpack.c.bf16 %v804, %v803
        %v822 = vpack.c.bf16 %v806, %v805
        %vm823 = vcmask 257024
        %824 = vst.msk [vmem:[#allocation2] sm:$0xf] %vm823, 0
        %825 = vst.msk [vmem:[#allocation2 + $0x4] sm:$0xf] %vm823, 0
        %vm826 = vcmask 253952
        %827 = vst.msk [vmem:[#allocation2 + $0x8] sm:$0x1] %vm826, 0
        %s828 = scalar_lea.vmem [#allocation2], 204
        %829 = vst.msk [vmem:[%s828] sm:$0xf] %vm823, 0
        %830 = vst.msk [vmem:[%s828 + $0x4] sm:$0xf] %vm823, 0
        %831 = vst.msk [vmem:[%s828 + $0x8] sm:$0x1] %vm826, 0
        %s832 = scalar_lea.vmem [#allocation2], 12
        %vm833 = vcmask 253952
        %vm834 = vsmask.f32 256
        %vm835 = vmand %vm833, %vm834
        %v836 = vld [vmem:[%s832] sm:$0x1]
        %v837 = vsel %vm835, 0, %v836
        %838 = vst [vmem:[%s832] sm:$0x1] %v837
        %v839 = vld [vmem:[%s832 + $0xc] sm:$0x1]
        %v840 = vsel %vm835, 0, %v839
        %841 = vst [vmem:[%s832 + $0xc] sm:$0x1] %v840
        %v842 = vld [vmem:[%s832 + $0x18] sm:$0x1]
        %v843 = vsel %vm835, 0, %v842
        %844 = vst [vmem:[%s832 + $0x18] sm:$0x1] %v843
        %v845 = vld [vmem:[%s832 + $0x24] sm:$0x1]
        %v846 = vsel %vm835, 0, %v845
        %847 = vst [vmem:[%s832 + $0x24] sm:$0x1] %v846
        %v848 = vld [vmem:[%s832 + $0x30] sm:$0x1]
        %v849 = vsel %vm835, 0, %v848
        %850 = vst [vmem:[%s832 + $0x30] sm:$0x1] %v849
        %v851 = vld [vmem:[%s832 + $0x3c] sm:$0x1]
        %v852 = vsel %vm835, 0, %v851
        %853 = vst [vmem:[%s832 + $0x3c] sm:$0x1] %v852
        %v854 = vld [vmem:[%s832 + $0x48] sm:$0x1]
        %v855 = vsel %vm835, 0, %v854
        %856 = vst [vmem:[%s832 + $0x48] sm:$0x1] %v855
        %v857 = vld [vmem:[%s832 + $0x54] sm:$0x1]
        %v858 = vsel %vm835, 0, %v857
        %859 = vst [vmem:[%s832 + $0x54] sm:$0x1] %v858
        %v860 = vld [vmem:[%s832 + $0x60] sm:$0x1]
        %v861 = vsel %vm835, 0, %v860
        %862 = vst [vmem:[%s832 + $0x60] sm:$0x1] %v861
        %v863 = vld [vmem:[%s832 + $0x6c] sm:$0x1]
        %v864 = vsel %vm835, 0, %v863
        %865 = vst [vmem:[%s832 + $0x6c] sm:$0x1] %v864
        %v866 = vld [vmem:[%s832 + $0x78] sm:$0x1]
        %v867 = vsel %vm835, 0, %v866
        %868 = vst [vmem:[%s832 + $0x78] sm:$0x1] %v867
        %v869 = vld [vmem:[%s832 + $0x84] sm:$0x1]
        %v870 = vsel %vm835, 0, %v869
        %871 = vst [vmem:[%s832 + $0x84] sm:$0x1] %v870
        %v872 = vld [vmem:[%s832 + $0x90] sm:$0x1]
        %v873 = vsel %vm835, 0, %v872
        %874 = vst [vmem:[%s832 + $0x90] sm:$0x1] %v873
        %v875 = vld [vmem:[%s832 + $0x9c] sm:$0x1]
        %v876 = vsel %vm835, 0, %v875
        %877 = vst [vmem:[%s832 + $0x9c] sm:$0x1] %v876
        %v878 = vld [vmem:[%s832 + $0xa8] sm:$0x1]
        %v879 = vsel %vm835, 0, %v878
        %880 = vst [vmem:[%s832 + $0xa8] sm:$0x1] %v879
        %v881 = vld [vmem:[%s832 + $0xb4] sm:$0x1]
        %v882 = vsel %vm835, 0, %v881
        %883 = vst [vmem:[%s832 + $0xb4] sm:$0x1] %v882
        %vm884 = vsmask.f32 7938
        %vm885 = vmand %vm833, %vm884
        %v886 = vld [vmem:[%s832 + $0x8] sm:$0x1]
        %v887 = vsel %vm885, 0, %v886
        %888 = vst [vmem:[%s832 + $0x8] sm:$0x1] %v887
        %v889 = vld [vmem:[%s832 + $0x14] sm:$0x1]
        %v890 = vsel %vm885, 0, %v889
        %891 = vst [vmem:[%s832 + $0x14] sm:$0x1] %v890
        %v892 = vld [vmem:[%s832 + $0x20] sm:$0x1]
        %v893 = vsel %vm885, 0, %v892
        %894 = vst [vmem:[%s832 + $0x20] sm:$0x1] %v893
        %v895 = vld [vmem:[%s832 + $0x2c] sm:$0x1]
        %v896 = vsel %vm885, 0, %v895
        %897 = vst [vmem:[%s832 + $0x2c] sm:$0x1] %v896
        %v898 = vld [vmem:[%s832 + $0x38] sm:$0x1]
        %v899 = vsel %vm885, 0, %v898
        %900 = vst [vmem:[%s832 + $0x38] sm:$0x1] %v899
        %v901 = vld [vmem:[%s832 + $0x44] sm:$0x1]
        %v902 = vsel %vm885, 0, %v901
        %903 = vst [vmem:[%s832 + $0x44] sm:$0x1] %v902
        %v904 = vld [vmem:[%s832 + $0x50] sm:$0x1]
        %v905 = vsel %vm885, 0, %v904
        %906 = vst [vmem:[%s832 + $0x50] sm:$0x1] %v905
        %v907 = vld [vmem:[%s832 + $0x5c] sm:$0x1]
        %v908 = vsel %vm885, 0, %v907
        %909 = vst [vmem:[%s832 + $0x5c] sm:$0x1] %v908
        %v910 = vld [vmem:[%s832 + $0x68] sm:$0x1]
        %v911 = vsel %vm885, 0, %v910
        %912 = vst [vmem:[%s832 + $0x68] sm:$0x1] %v911
        %v913 = vld [vmem:[%s832 + $0x74] sm:$0x1]
        %v914 = vsel %vm885, 0, %v913
        %915 = vst [vmem:[%s832 + $0x74] sm:$0x1] %v914
        %v916 = vld [vmem:[%s832 + $0x80] sm:$0x1]
        %v917 = vsel %vm885, 0, %v916
        %918 = vst [vmem:[%s832 + $0x80] sm:$0x1] %v917
        %v919 = vld [vmem:[%s832 + $0x8c] sm:$0x1]
        %v920 = vsel %vm885, 0, %v919
        %921 = vst [vmem:[%s832 + $0x8c] sm:$0x1] %v920
        %v922 = vld [vmem:[%s832 + $0x98] sm:$0x1]
        %v923 = vsel %vm885, 0, %v922
        %924 = vst [vmem:[%s832 + $0x98] sm:$0x1] %v923
        %v925 = vld [vmem:[%s832 + $0xa4] sm:$0x1]
        %v926 = vsel %vm885, 0, %v925
        %927 = vst [vmem:[%s832 + $0xa4] sm:$0x1] %v926
        %v928 = vld [vmem:[%s832 + $0xb0] sm:$0x1]
        %v929 = vsel %vm885, 0, %v928
        %930 = vst [vmem:[%s832 + $0xb0] sm:$0x1] %v929
        %v931 = vld [vmem:[%s832 + $0xbc] sm:$0x1]
        %v932 = vsel %vm885, 0, %v931
        %933 = vst [vmem:[%s832 + $0xbc] sm:$0x1] %v932
        %v950 = vunpack.c.l.b16 %v807
        %v951 = vunpack.c.h.b16 %v807
        %v952 = vunpack.c.l.b16 %v808
        %v953 = vunpack.c.h.b16 %v808
        %v954 = vunpack.c.l.b16 %v809
        %v955 = vunpack.c.h.b16 %v809
        %v956 = vunpack.c.l.b16 %v810
        %v957 = vunpack.c.h.b16 %v810
        %v958 = vunpack.c.l.b16 %v811
        %v959 = vunpack.c.h.b16 %v811
        %v960 = vunpack.c.l.b16 %v812
        %v961 = vunpack.c.h.b16 %v812
        %v962 = vunpack.c.l.b16 %v813
        %v963 = vunpack.c.h.b16 %v813
        %v964 = vunpack.c.l.b16 %v814
        %v965 = vunpack.c.h.b16 %v814
        %v966 = vunpack.c.l.b16 %v815
        %v967 = vunpack.c.h.b16 %v815
        %v968 = vunpack.c.l.b16 %v816
        %v969 = vunpack.c.h.b16 %v816
        %v970 = vunpack.c.l.b16 %v817
        %v971 = vunpack.c.h.b16 %v817
        %v972 = vunpack.c.l.b16 %v818
        %v973 = vunpack.c.h.b16 %v818
        %v974 = vunpack.c.l.b16 %v819
        %v975 = vunpack.c.h.b16 %v819
        %v976 = vunpack.c.l.b16 %v820
        %v977 = vunpack.c.h.b16 %v820
        %v978 = vunpack.c.l.b16 %v821
        %v979 = vunpack.c.h.b16 %v821
        %v980 = vunpack.c.l.b16 %v822
        %v981 = vunpack.c.h.b16 %v822
        %v982 = vpack.c.b16 %v950, %v950
        %v983 = vpack.c.b16 %v951, %v951
        %v984 = vpack.c.b16 %v952, %v952
        %v985 = vpack.c.b16 %v953, %v953
        %v986 = vpack.c.b16 %v954, %v954
        %v987 = vpack.c.b16 %v955, %v955
        %v988 = vpack.c.b16 %v956, %v956
        %v989 = vpack.c.b16 %v957, %v957
        %v990 = vpack.c.b16 %v958, %v958
        %v991 = vpack.c.b16 %v959, %v959
        %v992 = vpack.c.b16 %v960, %v960
        %v993 = vpack.c.b16 %v961, %v961
        %v994 = vpack.c.b16 %v962, %v962
        %v995 = vpack.c.b16 %v963, %v963
        %v996 = vpack.c.b16 %v964, %v964
        %v997 = vpack.c.b16 %v965, %v965
        %v998 = vpack.c.b16 %v966, %v966
        %v999 = vpack.c.b16 %v967, %v967
        %v1000 = vpack.c.b16 %v968, %v968
        %v1001 = vpack.c.b16 %v969, %v969
        %v1002 = vpack.c.b16 %v970, %v970
        %v1003 = vpack.c.b16 %v971, %v971
        %v1004 = vpack.c.b16 %v972, %v972
        %v1005 = vpack.c.b16 %v973, %v973
        %v1006 = vpack.c.b16 %v974, %v974
        %v1007 = vpack.c.b16 %v975, %v975
        %v1008 = vpack.c.b16 %v976, %v976
        %v1009 = vpack.c.b16 %v977, %v977
        %v1010 = vpack.c.b16 %v978, %v978
        %v1011 = vpack.c.b16 %v979, %v979
        %v1012 = vpack.c.b16 %v980, %v980
        %v1013 = vpack.c.b16 %v981, %v981
        %vm1014 = vsmask.f32 4368
        %vm1015 = vmor %vm834, %vm1014
        %v1017 = vshrl.u32 %v982, 16
        %v1019 = vrot.slane %v1017, 7
        %v1020 = vshll.u32 %v982, 16
        %v1022 = vor.u32 %v1019, %v1020
        %v1023 = vrot.slane %v1019, 4
        %v1025 = vshrl.u32 %v983, 16
        %v1027 = vrot.slane %v1025, 7
        %v1028 = vshll.u32 %v983, 16
        %v1030 = vor.u32 %v1027, %v1028
        %v1031 = vsel %vm1015, %v1023, %v1030
        %v1032 = vrot.slane %v1027, 4
        %v1034 = vshrl.u32 %v984, 16
        %v1036 = vrot.slane %v1034, 7
        %v1037 = vshll.u32 %v984, 16
        %v1039 = vor.u32 %v1036, %v1037
        %v1040 = vrot.slane %v1036, 4
        %v1042 = vshrl.u32 %v985, 16
        %v1044 = vrot.slane %v1042, 7
        %v1045 = vshll.u32 %v985, 16
        %v1047 = vor.u32 %v1044, %v1045
        %v1048 = vsel %vm1015, %v1040, %v1047
        %v1049 = vrot.slane %v1044, 4
        %v1051 = vshrl.u32 %v986, 16
        %v1053 = vrot.slane %v1051, 7
        %v1054 = vshll.u32 %v986, 16
        %v1056 = vor.u32 %v1053, %v1054
        %v1057 = vrot.slane %v1053, 4
        %v1059 = vshrl.u32 %v987, 16
        %v1061 = vrot.slane %v1059, 7
        %v1062 = vshll.u32 %v987, 16
        %v1064 = vor.u32 %v1061, %v1062
        %v1065 = vsel %vm1015, %v1057, %v1064
        %v1066 = vrot.slane %v1061, 4
        %v1068 = vshrl.u32 %v988, 16
        %v1070 = vrot.slane %v1068, 7
        %v1071 = vshll.u32 %v988, 16
        %v1073 = vor.u32 %v1070, %v1071
        %v1074 = vrot.slane %v1070, 4
        %v1076 = vshrl.u32 %v989, 16
        %v1078 = vrot.slane %v1076, 7
        %v1079 = vshll.u32 %v989, 16
        %v1081 = vor.u32 %v1078, %v1079
        %v1082 = vsel %vm1015, %v1074, %v1081
        %v1083 = vrot.slane %v1078, 4
        %v1085 = vshrl.u32 %v990, 16
        %v1087 = vrot.slane %v1085, 7
        %v1088 = vshll.u32 %v990, 16
        %v1090 = vor.u32 %v1087, %v1088
        %v1091 = vrot.slane %v1087, 4
        %v1093 = vshrl.u32 %v991, 16
        %v1095 = vrot.slane %v1093, 7
        %v1096 = vshll.u32 %v991, 16
        %v1098 = vor.u32 %v1095, %v1096
        %v1099 = vsel %vm1015, %v1091, %v1098
        %v1100 = vrot.slane %v1095, 4
        %v1102 = vshrl.u32 %v992, 16
        %v1104 = vrot.slane %v1102, 7
        %v1105 = vshll.u32 %v992, 16
        %v1107 = vor.u32 %v1104, %v1105
        %v1108 = vrot.slane %v1104, 4
        %v1110 = vshrl.u32 %v993, 16
        %v1112 = vrot.slane %v1110, 7
        %v1113 = vshll.u32 %v993, 16
        %v1115 = vor.u32 %v1112, %v1113
        %v1116 = vsel %vm1015, %v1108, %v1115
        %v1117 = vrot.slane %v1112, 4
        %v1119 = vshrl.u32 %v994, 16
        %v1121 = vrot.slane %v1119, 7
        %v1122 = vshll.u32 %v994, 16
        %v1124 = vor.u32 %v1121, %v1122
        %v1125 = vrot.slane %v1121, 4
        %v1127 = vshrl.u32 %v995, 16
        %v1129 = vrot.slane %v1127, 7
        %v1130 = vshll.u32 %v995, 16
        %v1132 = vor.u32 %v1129, %v1130
        %v1133 = vsel %vm1015, %v1125, %v1132
        %v1134 = vrot.slane %v1129, 4
        %v1136 = vshrl.u32 %v996, 16
        %v1138 = vrot.slane %v1136, 7
        %v1139 = vshll.u32 %v996, 16
        %v1141 = vor.u32 %v1138, %v1139
        %v1142 = vrot.slane %v1138, 4
        %v1144 = vshrl.u32 %v997, 16
        %v1146 = vrot.slane %v1144, 7
        %v1147 = vshll.u32 %v997, 16
        %v1149 = vor.u32 %v1146, %v1147
        %v1150 = vsel %vm1015, %v1142, %v1149
        %v1151 = vrot.slane %v1146, 4
        %v1153 = vshrl.u32 %v998, 16
        %v1155 = vrot.slane %v1153, 7
        %v1156 = vshll.u32 %v998, 16
        %v1158 = vor.u32 %v1155, %v1156
        %v1159 = vrot.slane %v1155, 4
        %v1161 = vshrl.u32 %v999, 16
        %v1163 = vrot.slane %v1161, 7
        %v1164 = vshll.u32 %v999, 16
        %v1166 = vor.u32 %v1163, %v1164
        %v1167 = vsel %vm1015, %v1159, %v1166
        %v1168 = vrot.slane %v1163, 4
        %v1170 = vshrl.u32 %v1000, 16
        %v1172 = vrot.slane %v1170, 7
        %v1173 = vshll.u32 %v1000, 16
        %v1175 = vor.u32 %v1172, %v1173
        %v1176 = vrot.slane %v1172, 4
        %v1178 = vshrl.u32 %v1001, 16
        %v1180 = vrot.slane %v1178, 7
        %v1181 = vshll.u32 %v1001, 16
        %v1183 = vor.u32 %v1180, %v1181
        %v1184 = vsel %vm1015, %v1176, %v1183
        %v1185 = vrot.slane %v1180, 4
        %v1187 = vshrl.u32 %v1002, 16
        %v1189 = vrot.slane %v1187, 7
        %v1190 = vshll.u32 %v1002, 16
        %v1192 = vor.u32 %v1189, %v1190
        %v1193 = vrot.slane %v1189, 4
        %v1195 = vshrl.u32 %v1003, 16
        %v1197 = vrot.slane %v1195, 7
        %v1198 = vshll.u32 %v1003, 16
        %v1200 = vor.u32 %v1197, %v1198
        %v1201 = vsel %vm1015, %v1193, %v1200
        %v1202 = vrot.slane %v1197, 4
        %v1204 = vshrl.u32 %v1004, 16
        %v1206 = vrot.slane %v1204, 7
        %v1207 = vshll.u32 %v1004, 16
        %v1209 = vor.u32 %v1206, %v1207
        %v1210 = vrot.slane %v1206, 4
        %v1212 = vshrl.u32 %v1005, 16
        %v1214 = vrot.slane %v1212, 7
        %v1215 = vshll.u32 %v1005, 16
        %v1217 = vor.u32 %v1214, %v1215
        %v1218 = vsel %vm1015, %v1210, %v1217
        %v1219 = vrot.slane %v1214, 4
        %v1221 = vshrl.u32 %v1006, 16
        %v1223 = vrot.slane %v1221, 7
        %v1224 = vshll.u32 %v1006, 16
        %v1226 = vor.u32 %v1223, %v1224
        %v1227 = vrot.slane %v1223, 4
        %v1229 = vshrl.u32 %v1007, 16
        %v1231 = vrot.slane %v1229, 7
        %v1232 = vshll.u32 %v1007, 16
        %v1234 = vor.u32 %v1231, %v1232
        %v1235 = vsel %vm1015, %v1227, %v1234
        %v1236 = vrot.slane %v1231, 4
        %v1238 = vshrl.u32 %v1008, 16
        %v1240 = vrot.slane %v1238, 7
        %v1241 = vshll.u32 %v1008, 16
        %v1243 = vor.u32 %v1240, %v1241
        %v1244 = vrot.slane %v1240, 4
        %v1246 = vshrl.u32 %v1009, 16
        %v1248 = vrot.slane %v1246, 7
        %v1249 = vshll.u32 %v1009, 16
        %v1251 = vor.u32 %v1248, %v1249
        %v1252 = vsel %vm1015, %v1244, %v1251
        %v1253 = vrot.slane %v1248, 4
        %v1255 = vshrl.u32 %v1010, 16
        %v1257 = vrot.slane %v1255, 7
        %v1258 = vshll.u32 %v1010, 16
        %v1260 = vor.u32 %v1257, %v1258
        %v1261 = vrot.slane %v1257, 4
        %v1263 = vshrl.u32 %v1011, 16
        %v1265 = vrot.slane %v1263, 7
        %v1266 = vshll.u32 %v1011, 16
        %v1268 = vor.u32 %v1265, %v1266
        %v1269 = vsel %vm1015, %v1261, %v1268
        %v1270 = vrot.slane %v1265, 4
        %v1272 = vshrl.u32 %v1012, 16
        %v1274 = vrot.slane %v1272, 7
        %v1275 = vshll.u32 %v1012, 16
        %v1277 = vor.u32 %v1274, %v1275
        %v1278 = vrot.slane %v1274, 4
        %v1280 = vshrl.u32 %v1013, 16
        %v1282 = vrot.slane %v1280, 7
        %v1283 = vshll.u32 %v1013, 16
        %v1285 = vor.u32 %v1282, %v1283
        %v1286 = vsel %vm1015, %v1278, %v1285
        %v1287 = vrot.slane %v1282, 4
        %vm1336 = vcmask 257024
        %vm1337 = vmand %vm1336, %vm884
        %v1338 = vld [vmem:[%s832] sm:$0xf]
        %v1339 = vsel %vm1337, %v1022, %v1338
        %1340 = vst [vmem:[%s832] sm:$0xf] %v1339
        %1341 = vst.msk [vmem:[%s832 + $0x4] sm:$0xf] %vm823, %v1031
        %v1342 = vld [vmem:[%s832 + $0x8] sm:$0x1]
        %v1343 = vsel %vm835, %v1032, %v1342
        %1344 = vst [vmem:[%s832 + $0x8] sm:$0x1] %v1343
        %v1345 = vld [vmem:[%s832 + $0xc] sm:$0xf]
        %v1346 = vsel %vm1337, %v1039, %v1345
        %1347 = vst [vmem:[%s832 + $0xc] sm:$0xf] %v1346
        %1348 = vst.msk [vmem:[%s832 + $0x10] sm:$0xf] %vm823, %v1048
        %v1349 = vld [vmem:[%s832 + $0x14] sm:$0x1]
        %v1350 = vsel %vm835, %v1049, %v1349
        %1351 = vst [vmem:[%s832 + $0x14] sm:$0x1] %v1350
        %v1352 = vld [vmem:[%s832 + $0x18] sm:$0xf]
        %v1353 = vsel %vm1337, %v1056, %v1352
        %1354 = vst [vmem:[%s832 + $0x18] sm:$0xf] %v1353
        %1355 = vst.msk [vmem:[%s832 + $0x1c] sm:$0xf] %vm823, %v1065
        %v1356 = vld [vmem:[%s832 + $0x20] sm:$0x1]
        %v1357 = vsel %vm835, %v1066, %v1356
        %1358 = vst [vmem:[%s832 + $0x20] sm:$0x1] %v1357
        %v1359 = vld [vmem:[%s832 + $0x24] sm:$0xf]
        %v1360 = vsel %vm1337, %v1073, %v1359
        %1361 = vst [vmem:[%s832 + $0x24] sm:$0xf] %v1360
        %1362 = vst.msk [vmem:[%s832 + $0x28] sm:$0xf] %vm823, %v1082
        %v1363 = vld [vmem:[%s832 + $0x2c] sm:$0x1]
        %v1364 = vsel %vm835, %v1083, %v1363
        %1365 = vst [vmem:[%s832 + $0x2c] sm:$0x1] %v1364
        %v1366 = vld [vmem:[%s832 + $0x30] sm:$0xf]
        %v1367 = vsel %vm1337, %v1090, %v1366
        %1368 = vst [vmem:[%s832 + $0x30] sm:$0xf] %v1367
        %1369 = vst.msk [vmem:[%s832 + $0x34] sm:$0xf] %vm823, %v1099
        %v1370 = vld [vmem:[%s832 + $0x38] sm:$0x1]
        %v1371 = vsel %vm835, %v1100, %v1370
        %1372 = vst [vmem:[%s832 + $0x38] sm:$0x1] %v1371
        %v1373 = vld [vmem:[%s832 + $0x3c] sm:$0xf]
        %v1374 = vsel %vm1337, %v1107, %v1373
        %1375 = vst [vmem:[%s832 + $0x3c] sm:$0xf] %v1374
        %1376 = vst.msk [vmem:[%s832 + $0x40] sm:$0xf] %vm823, %v1116
        %v1377 = vld [vmem:[%s832 + $0x44] sm:$0x1]
        %v1378 = vsel %vm835, %v1117, %v1377
        %1379 = vst [vmem:[%s832 + $0x44] sm:$0x1] %v1378
        %v1380 = vld [vmem:[%s832 + $0x48] sm:$0xf]
        %v1381 = vsel %vm1337, %v1124, %v1380
        %1382 = vst [vmem:[%s832 + $0x48] sm:$0xf] %v1381
        %1383 = vst.msk [vmem:[%s832 + $0x4c] sm:$0xf] %vm823, %v1133
        %v1384 = vld [vmem:[%s832 + $0x50] sm:$0x1]
        %v1385 = vsel %vm835, %v1134, %v1384
        %1386 = vst [vmem:[%s832 + $0x50] sm:$0x1] %v1385
        %v1387 = vld [vmem:[%s832 + $0x54] sm:$0xf]
        %v1388 = vsel %vm1337, %v1141, %v1387
        %1389 = vst [vmem:[%s832 + $0x54] sm:$0xf] %v1388
        %1390 = vst.msk [vmem:[%s832 + $0x58] sm:$0xf] %vm823, %v1150
        %v1391 = vld [vmem:[%s832 + $0x5c] sm:$0x1]
        %v1392 = vsel %vm835, %v1151, %v1391
        %1393 = vst [vmem:[%s832 + $0x5c] sm:$0x1] %v1392
        %v1394 = vld [vmem:[%s832 + $0x60] sm:$0xf]
        %v1395 = vsel %vm1337, %v1158, %v1394
        %1396 = vst [vmem:[%s832 + $0x60] sm:$0xf] %v1395
        %1397 = vst.msk [vmem:[%s832 + $0x64] sm:$0xf] %vm823, %v1167
        %v1398 = vld [vmem:[%s832 + $0x68] sm:$0x1]
        %v1399 = vsel %vm835, %v1168, %v1398
        %1400 = vst [vmem:[%s832 + $0x68] sm:$0x1] %v1399
        %v1401 = vld [vmem:[%s832 + $0x6c] sm:$0xf]
        %v1402 = vsel %vm1337, %v1175, %v1401
        %1403 = vst [vmem:[%s832 + $0x6c] sm:$0xf] %v1402
        %1404 = vst.msk [vmem:[%s832 + $0x70] sm:$0xf] %vm823, %v1184
        %v1405 = vld [vmem:[%s832 + $0x74] sm:$0x1]
        %v1406 = vsel %vm835, %v1185, %v1405
        %1407 = vst [vmem:[%s832 + $0x74] sm:$0x1] %v1406
        %v1408 = vld [vmem:[%s832 + $0x78] sm:$0xf]
        %v1409 = vsel %vm1337, %v1192, %v1408
        %1410 = vst [vmem:[%s832 + $0x78] sm:$0xf] %v1409
        %1411 = vst.msk [vmem:[%s832 + $0x7c] sm:$0xf] %vm823, %v1201
        %v1412 = vld [vmem:[%s832 + $0x80] sm:$0x1]
        %v1413 = vsel %vm835, %v1202, %v1412
        %1414 = vst [vmem:[%s832 + $0x80] sm:$0x1] %v1413
        %v1415 = vld [vmem:[%s832 + $0x84] sm:$0xf]
        %v1416 = vsel %vm1337, %v1209, %v1415
        %1417 = vst [vmem:[%s832 + $0x84] sm:$0xf] %v1416
        %1418 = vst.msk [vmem:[%s832 + $0x88] sm:$0xf] %vm823, %v1218
        %v1419 = vld [vmem:[%s832 + $0x8c] sm:$0x1]
        %v1420 = vsel %vm835, %v1219, %v1419
        %1421 = vst [vmem:[%s832 + $0x8c] sm:$0x1] %v1420
        %v1422 = vld [vmem:[%s832 + $0x90] sm:$0xf]
        %v1423 = vsel %vm1337, %v1226, %v1422
        %1424 = vst [vmem:[%s832 + $0x90] sm:$0xf] %v1423
        %1425 = vst.msk [vmem:[%s832 + $0x94] sm:$0xf] %vm823, %v1235
        %v1426 = vld [vmem:[%s832 + $0x98] sm:$0x1]
        %v1427 = vsel %vm835, %v1236, %v1426
        %1428 = vst [vmem:[%s832 + $0x98] sm:$0x1] %v1427
        %v1429 = vld [vmem:[%s832 + $0x9c] sm:$0xf]
        %v1430 = vsel %vm1337, %v1243, %v1429
        %1431 = vst [vmem:[%s832 + $0x9c] sm:$0xf] %v1430
        %1432 = vst.msk [vmem:[%s832 + $0xa0] sm:$0xf] %vm823, %v1252
        %v1433 = vld [vmem:[%s832 + $0xa4] sm:$0x1]
        %v1434 = vsel %vm835, %v1253, %v1433
        %1435 = vst [vmem:[%s832 + $0xa4] sm:$0x1] %v1434
        %v1436 = vld [vmem:[%s832 + $0xa8] sm:$0xf]
        %v1437 = vsel %vm1337, %v1260, %v1436
        %1438 = vst [vmem:[%s832 + $0xa8] sm:$0xf] %v1437
        %1439 = vst.msk [vmem:[%s832 + $0xac] sm:$0xf] %vm823, %v1269
        %v1440 = vld [vmem:[%s832 + $0xb0] sm:$0x1]
        %v1441 = vsel %vm835, %v1270, %v1440
        %1442 = vst [vmem:[%s832 + $0xb0] sm:$0x1] %v1441
        %v1443 = vld [vmem:[%s832 + $0xb4] sm:$0xf]
        %v1444 = vsel %vm1337, %v1277, %v1443
        %1445 = vst [vmem:[%s832 + $0xb4] sm:$0xf] %v1444
        %1446 = vst.msk [vmem:[%s832 + $0xb8] sm:$0xf] %vm823, %v1286
        %v1447 = vld [vmem:[%s832 + $0xbc] sm:$0x1]
        %v1448 = vsel %vm835, %v1287, %v1447
        %1449 = vst [vmem:[%s832 + $0xbc] sm:$0x1] %v1448
        %v1450 = vld [vmem:[#allocation2] sm:$0xf]
        %v1451 = vld [vmem:[#allocation2 + $0x4] sm:$0xf]
        %v1452 = vld [vmem:[#allocation2 + $0xc] sm:$0xf]
        %v1453 = vld [vmem:[#allocation2 + $0x10] sm:$0xf]
        %v1454 = vld [vmem:[#allocation2 + $0x18] sm:$0xf]
        %v1455 = vld [vmem:[#allocation2 + $0x1c] sm:$0xf]
        %v1456 = vld [vmem:[#allocation2 + $0x24] sm:$0xf]
        %v1457 = vld [vmem:[#allocation2 + $0x28] sm:$0xf]
        %v1458 = vld [vmem:[#allocation2 + $0x30] sm:$0xf]
        %v1459 = vld [vmem:[#allocation2 + $0x34] sm:$0xf]
        %v1460 = vld [vmem:[#allocation2 + $0x3c] sm:$0xf]
        %v1461 = vld [vmem:[#allocation2 + $0x40] sm:$0xf]
        %v1462 = vld [vmem:[#allocation2 + $0x48] sm:$0xf]
        %v1463 = vld [vmem:[#allocation2 + $0x4c] sm:$0xf]
        %v1464 = vld [vmem:[#allocation2 + $0x54] sm:$0xf]
        %v1465 = vld [vmem:[#allocation2 + $0x58] sm:$0xf]
        %v1466 = vld [vmem:[#allocation2 + $0x60] sm:$0xf]
        %v1467 = vld [vmem:[#allocation2 + $0x64] sm:$0xf]
        %v1468 = vld [vmem:[#allocation2 + $0x6c] sm:$0xf]
        %v1469 = vld [vmem:[#allocation2 + $0x70] sm:$0xf]
        %v1470 = vld [vmem:[#allocation2 + $0x78] sm:$0xf]
        %v1471 = vld [vmem:[#allocation2 + $0x7c] sm:$0xf]
        %v1472 = vld [vmem:[#allocation2 + $0x84] sm:$0xf]
        %v1473 = vld [vmem:[#allocation2 + $0x88] sm:$0xf]
        %v1474 = vld [vmem:[#allocation2 + $0x90] sm:$0xf]
        %v1475 = vld [vmem:[#allocation2 + $0x94] sm:$0xf]
        %v1476 = vld [vmem:[#allocation2 + $0x9c] sm:$0xf]
        %v1477 = vld [vmem:[#allocation2 + $0xa0] sm:$0xf]
        %v1478 = vld [vmem:[#allocation2 + $0xa8] sm:$0xf]
        %v1479 = vld [vmem:[#allocation2 + $0xac] sm:$0xf]
        %v1480 = vld [vmem:[#allocation2 + $0xb4] sm:$0xf]
        %v1481 = vld [vmem:[#allocation2 + $0xb8] sm:$0xf]
        %v1514 = vunpack.c.l.b16 %v1450
        %v1515 = vunpack.c.l.b16 %v1451
        %v1516 = vunpack.c.l.b16 %v1452
        %v1517 = vunpack.c.l.b16 %v1453
        %v1518 = vunpack.c.l.b16 %v1454
        %v1519 = vunpack.c.l.b16 %v1455
        %v1520 = vunpack.c.l.b16 %v1456
        %v1521 = vunpack.c.l.b16 %v1457
        %v1522 = vunpack.c.l.b16 %v1458
        %v1523 = vunpack.c.l.b16 %v1459
        %v1524 = vunpack.c.l.b16 %v1460
        %v1525 = vunpack.c.l.b16 %v1461
        %v1526 = vunpack.c.l.b16 %v1462
        %v1527 = vunpack.c.l.b16 %v1463
        %v1528 = vunpack.c.l.b16 %v1464
        %v1529 = vunpack.c.l.b16 %v1465
        %v1530 = vunpack.c.l.b16 %v1466
        %v1531 = vunpack.c.l.b16 %v1467
        %v1532 = vunpack.c.l.b16 %v1468
        %v1533 = vunpack.c.l.b16 %v1469
        %v1534 = vunpack.c.l.b16 %v1470
        %v1535 = vunpack.c.l.b16 %v1471
        %v1536 = vunpack.c.l.b16 %v1472
        %v1537 = vunpack.c.l.b16 %v1473
        %v1538 = vunpack.c.l.b16 %v1474
        %v1539 = vunpack.c.l.b16 %v1475
        %v1540 = vunpack.c.l.b16 %v1476
        %v1541 = vunpack.c.l.b16 %v1477
        %v1542 = vunpack.c.l.b16 %v1478
        %v1543 = vunpack.c.l.b16 %v1479
        %v1544 = vunpack.c.l.b16 %v1480
        %v1545 = vunpack.c.l.b16 %v1481
        %v1546 = vpack.c.b16 %v1515, %v1514
        %v1547 = vpack.c.b16 %v1517, %v1516
        %v1548 = vpack.c.b16 %v1519, %v1518
        %v1549 = vpack.c.b16 %v1521, %v1520
        %v1550 = vpack.c.b16 %v1523, %v1522
        %v1551 = vpack.c.b16 %v1525, %v1524
        %v1552 = vpack.c.b16 %v1527, %v1526
        %v1553 = vpack.c.b16 %v1529, %v1528
        %v1554 = vpack.c.b16 %v1531, %v1530
        %v1555 = vpack.c.b16 %v1533, %v1532
        %v1556 = vpack.c.b16 %v1535, %v1534
        %v1557 = vpack.c.b16 %v1537, %v1536
        %v1558 = vpack.c.b16 %v1539, %v1538
        %v1559 = vpack.c.b16 %v1541, %v1540
        %v1560 = vpack.c.b16 %v1543, %v1542
        %v1561 = vpack.c.b16 %v1545, %v1544
        %1578 = vst.msk [vmem:[#allocation3] sm:$0xff] %vm487, %v1546
        %1579 = vst.msk [vmem:[#allocation3 + $0x18] sm:$0xff] %vm487, %v1547
        %1580 = vst.msk [vmem:[#allocation3 + $0x30] sm:$0xff] %vm487, %v1548
        %1581 = vst.msk [vmem:[#allocation3 + $0x48] sm:$0xff] %vm487, %v1549
        %1582 = vst.msk [vmem:[#allocation3 + $0x60] sm:$0xff] %vm487, %v1550
        %1583 = vst.msk [vmem:[#allocation3 + $0x78] sm:$0xff] %vm487, %v1551
        %1584 = vst.msk [vmem:[#allocation3 + $0x90] sm:$0xff] %vm487, %v1552
        %1585 = vst.msk [vmem:[#allocation3 + $0xa8] sm:$0xff] %vm487, %v1553
        %1586 = vst.msk [vmem:[#allocation3 + $0xc0] sm:$0xff] %vm487, %v1554
        %1587 = vst.msk [vmem:[#allocation3 + $0xd8] sm:$0xff] %vm487, %v1555
        %1588 = vst.msk [vmem:[#allocation3 + $0xf0] sm:$0xff] %vm487, %v1556
        %1589 = vst.msk [vmem:[#allocation3 + $0x108] sm:$0xff] %vm487, %v1557
        %1590 = vst.msk [vmem:[#allocation3 + $0x120] sm:$0xff] %vm487, %v1558
        %1591 = vst.msk [vmem:[#allocation3 + $0x138] sm:$0xff] %vm487, %v1559
        %1592 = vst.msk [vmem:[#allocation3 + $0x150] sm:$0xff] %vm487, %v1560
        %1593 = vst.msk [vmem:[#allocation3 + $0x168] sm:$0xff] %vm487, %v1561
        %v1594 = vld [vmem:[#allocation2] sm:$0xf]
        %v1595 = vld [vmem:[#allocation2 + $0x4] sm:$0xf]
        %v1596 = vld [vmem:[#allocation2 + $0x8] sm:$0x1]
        %v1597 = vld [vmem:[#allocation2 + $0xc] sm:$0xf]
        %v1598 = vld [vmem:[#allocation2 + $0x10] sm:$0xf]
        %v1599 = vld [vmem:[#allocation2 + $0x14] sm:$0x1]
        %v1600 = vld [vmem:[#allocation2 + $0x18] sm:$0xf]
        %v1601 = vld [vmem:[#allocation2 + $0x1c] sm:$0xf]
        %v1602 = vld [vmem:[#allocation2 + $0x20] sm:$0x1]
        %v1603 = vld [vmem:[#allocation2 + $0x24] sm:$0xf]
        %v1604 = vld [vmem:[#allocation2 + $0x28] sm:$0xf]
        %v1605 = vld [vmem:[#allocation2 + $0x2c] sm:$0x1]
        %v1606 = vld [vmem:[#allocation2 + $0x30] sm:$0xf]
        %v1607 = vld [vmem:[#allocation2 + $0x34] sm:$0xf]
        %v1608 = vld [vmem:[#allocation2 + $0x38] sm:$0x1]
        %v1609 = vld [vmem:[#allocation2 + $0x3c] sm:$0xf]
        %v1610 = vld [vmem:[#allocation2 + $0x40] sm:$0xf]
        %v1611 = vld [vmem:[#allocation2 + $0x44] sm:$0x1]
        %v1612 = vld [vmem:[#allocation2 + $0x48] sm:$0xf]
        %v1613 = vld [vmem:[#allocation2 + $0x4c] sm:$0xf]
        %v1614 = vld [vmem:[#allocation2 + $0x50] sm:$0x1]
        %v1615 = vld [vmem:[#allocation2 + $0x54] sm:$0xf]
        %v1616 = vld [vmem:[#allocation2 + $0x58] sm:$0xf]
        %v1617 = vld [vmem:[#allocation2 + $0x5c] sm:$0x1]
        %v1618 = vld [vmem:[#allocation2 + $0x60] sm:$0xf]
        %v1619 = vld [vmem:[#allocation2 + $0x64] sm:$0xf]
        %v1620 = vld [vmem:[#allocation2 + $0x68] sm:$0x1]
        %v1621 = vld [vmem:[#allocation2 + $0x6c] sm:$0xf]
        %v1622 = vld [vmem:[#allocation2 + $0x70] sm:$0xf]
        %v1623 = vld [vmem:[#allocation2 + $0x74] sm:$0x1]
        %v1624 = vld [vmem:[#allocation2 + $0x78] sm:$0xf]
        %v1625 = vld [vmem:[#allocation2 + $0x7c] sm:$0xf]
        %v1626 = vld [vmem:[#allocation2 + $0x80] sm:$0x1]
        %v1627 = vld [vmem:[#allocation2 + $0x84] sm:$0xf]
        %v1628 = vld [vmem:[#allocation2 + $0x88] sm:$0xf]
        %v1629 = vld [vmem:[#allocation2 + $0x8c] sm:$0x1]
        %v1630 = vld [vmem:[#allocation2 + $0x90] sm:$0xf]
        %v1631 = vld [vmem:[#allocation2 + $0x94] sm:$0xf]
        %v1632 = vld [vmem:[#allocation2 + $0x98] sm:$0x1]
        %v1633 = vld [vmem:[#allocation2 + $0x9c] sm:$0xf]
        %v1634 = vld [vmem:[#allocation2 + $0xa0] sm:$0xf]
        %v1635 = vld [vmem:[#allocation2 + $0xa4] sm:$0x1]
        %v1636 = vld [vmem:[#allocation2 + $0xa8] sm:$0xf]
        %v1637 = vld [vmem:[#allocation2 + $0xac] sm:$0xf]
        %v1638 = vld [vmem:[#allocation2 + $0xb0] sm:$0x1]
        %v1639 = vld [vmem:[#allocation2 + $0xb4] sm:$0xf]
        %v1640 = vld [vmem:[#allocation2 + $0xb8] sm:$0xf]
        %v1641 = vld [vmem:[#allocation2 + $0xbc] sm:$0x1]
        %vm1642 = vsmask.f32 3328
        %vm1643 = vsmask.f32 7440
        %vm1644 = vmor %vm1642, %vm1643
        %v1646 = vshrl.u32 %v1594, 16
        %v1648 = vrot.slane %v1646, 4
        %v1649 = vshll.u32 %v1594, 16
        %v1651 = vrot.slane %v1649, 5
        %v1652 = vor.u32 %v1648, %v1651
        %v1653 = vrot.slane %v1652, 4
        %v1655 = vshll.u32 %v1595, 16
        %v1657 = vrot.slane %v1655, 5
        %v1658 = vsel %vm1644, %v1653, %v1657
        %v1659 = vshrl.u32 %v1595, 16
        %v1661 = vrot.slane %v1659, 4
        %v1662 = vor.u32 %v1661, %v1657
        %v1663 = vrot.slane %v1662, 4
        %v1665 = vshll.u32 %v1596, 16
        %v1667 = vrot.slane %v1665, 5
        %v1668 = vsel %vm1644, %v1663, %v1667
        %v1670 = vshrl.u32 %v1597, 16
        %v1672 = vrot.slane %v1670, 4
        %v1673 = vshll.u32 %v1597, 16
        %v1675 = vrot.slane %v1673, 5
        %v1676 = vor.u32 %v1672, %v1675
        %v1677 = vrot.slane %v1676, 4
        %v1679 = vshll.u32 %v1598, 16
        %v1681 = vrot.slane %v1679, 5
        %v1682 = vsel %vm1644, %v1677, %v1681
        %v1683 = vshrl.u32 %v1598, 16
        %v1685 = vrot.slane %v1683, 4
        %v1686 = vor.u32 %v1685, %v1681
        %v1687 = vrot.slane %v1686, 4
        %v1689 = vshll.u32 %v1599, 16
        %v1691 = vrot.slane %v1689, 5
        %v1692 = vsel %vm1644, %v1687, %v1691
        %v1694 = vshrl.u32 %v1600, 16
        %v1696 = vrot.slane %v1694, 4
        %v1697 = vshll.u32 %v1600, 16
        %v1699 = vrot.slane %v1697, 5
        %v1700 = vor.u32 %v1696, %v1699
        %v1701 = vrot.slane %v1700, 4
        %v1703 = vshll.u32 %v1601, 16
        %v1705 = vrot.slane %v1703, 5
        %v1706 = vsel %vm1644, %v1701, %v1705
        %v1707 = vshrl.u32 %v1601, 16
        %v1709 = vrot.slane %v1707, 4
        %v1710 = vor.u32 %v1709, %v1705
        %v1711 = vrot.slane %v1710, 4
        %v1713 = vshll.u32 %v1602, 16
        %v1715 = vrot.slane %v1713, 5
        %v1716 = vsel %vm1644, %v1711, %v1715
        %v1718 = vshrl.u32 %v1603, 16
        %v1720 = vrot.slane %v1718, 4
        %v1721 = vshll.u32 %v1603, 16
        %v1723 = vrot.slane %v1721, 5
        %v1724 = vor.u32 %v1720, %v1723
        %v1725 = vrot.slane %v1724, 4
        %v1727 = vshll.u32 %v1604, 16
        %v1729 = vrot.slane %v1727, 5
        %v1730 = vsel %vm1644, %v1725, %v1729
        %v1731 = vshrl.u32 %v1604, 16
        %v1733 = vrot.slane %v1731, 4
        %v1734 = vor.u32 %v1733, %v1729
        %v1735 = vrot.slane %v1734, 4
        %v1737 = vshll.u32 %v1605, 16
        %v1739 = vrot.slane %v1737, 5
        %v1740 = vsel %vm1644, %v1735, %v1739
        %v1742 = vshrl.u32 %v1606, 16
        %v1744 = vrot.slane %v1742, 4
        %v1745 = vshll.u32 %v1606, 16
        %v1747 = vrot.slane %v1745, 5
        %v1748 = vor.u32 %v1744, %v1747
        %v1749 = vrot.slane %v1748, 4
        %v1751 = vshll.u32 %v1607, 16
        %v1753 = vrot.slane %v1751, 5
        %v1754 = vsel %vm1644, %v1749, %v1753
        %v1755 = vshrl.u32 %v1607, 16
        %v1757 = vrot.slane %v1755, 4
        %v1758 = vor.u32 %v1757, %v1753
        %v1759 = vrot.slane %v1758, 4
        %v1761 = vshll.u32 %v1608, 16
        %v1763 = vrot.slane %v1761, 5
        %v1764 = vsel %vm1644, %v1759, %v1763
        %v1766 = vshrl.u32 %v1609, 16
        %v1768 = vrot.slane %v1766, 4
        %v1769 = vshll.u32 %v1609, 16
        %v1771 = vrot.slane %v1769, 5
        %v1772 = vor.u32 %v1768, %v1771
        %v1773 = vrot.slane %v1772, 4
        %v1775 = vshll.u32 %v1610, 16
        %v1777 = vrot.slane %v1775, 5
        %v1778 = vsel %vm1644, %v1773, %v1777
        %v1779 = vshrl.u32 %v1610, 16
        %v1781 = vrot.slane %v1779, 4
        %v1782 = vor.u32 %v1781, %v1777
        %v1783 = vrot.slane %v1782, 4
        %v1785 = vshll.u32 %v1611, 16
        %v1787 = vrot.slane %v1785, 5
        %v1788 = vsel %vm1644, %v1783, %v1787
        %v1790 = vshrl.u32 %v1612, 16
        %v1792 = vrot.slane %v1790, 4
        %v1793 = vshll.u32 %v1612, 16
        %v1795 = vrot.slane %v1793, 5
        %v1796 = vor.u32 %v1792, %v1795
        %v1797 = vrot.slane %v1796, 4
        %v1799 = vshll.u32 %v1613, 16
        %v1801 = vrot.slane %v1799, 5
        %v1802 = vsel %vm1644, %v1797, %v1801
        %v1803 = vshrl.u32 %v1613, 16
        %v1805 = vrot.slane %v1803, 4
        %v1806 = vor.u32 %v1805, %v1801
        %v1807 = vrot.slane %v1806, 4
        %v1809 = vshll.u32 %v1614, 16
        %v1811 = vrot.slane %v1809, 5
        %v1812 = vsel %vm1644, %v1807, %v1811
        %v1814 = vshrl.u32 %v1615, 16
        %v1816 = vrot.slane %v1814, 4
        %v1817 = vshll.u32 %v1615, 16
        %v1819 = vrot.slane %v1817, 5
        %v1820 = vor.u32 %v1816, %v1819
        %v1821 = vrot.slane %v1820, 4
        %v1823 = vshll.u32 %v1616, 16
        %v1825 = vrot.slane %v1823, 5
        %v1826 = vsel %vm1644, %v1821, %v1825
        %v1827 = vshrl.u32 %v1616, 16
        %v1829 = vrot.slane %v1827, 4
        %v1830 = vor.u32 %v1829, %v1825
        %v1831 = vrot.slane %v1830, 4
        %v1833 = vshll.u32 %v1617, 16
        %v1835 = vrot.slane %v1833, 5
        %v1836 = vsel %vm1644, %v1831, %v1835
        %v1838 = vshrl.u32 %v1618, 16
        %v1840 = vrot.slane %v1838, 4
        %v1841 = vshll.u32 %v1618, 16
        %v1843 = vrot.slane %v1841, 5
        %v1844 = vor.u32 %v1840, %v1843
        %v1845 = vrot.slane %v1844, 4
        %v1847 = vshll.u32 %v1619, 16
        %v1849 = vrot.slane %v1847, 5
        %v1850 = vsel %vm1644, %v1845, %v1849
        %v1851 = vshrl.u32 %v1619, 16
        %v1853 = vrot.slane %v1851, 4
        %v1854 = vor.u32 %v1853, %v1849
        %v1855 = vrot.slane %v1854, 4
        %v1857 = vshll.u32 %v1620, 16
        %v1859 = vrot.slane %v1857, 5
        %v1860 = vsel %vm1644, %v1855, %v1859
        %v1862 = vshrl.u32 %v1621, 16
        %v1864 = vrot.slane %v1862, 4
        %v1865 = vshll.u32 %v1621, 16
        %v1867 = vrot.slane %v1865, 5
        %v1868 = vor.u32 %v1864, %v1867
        %v1869 = vrot.slane %v1868, 4
        %v1871 = vshll.u32 %v1622, 16
        %v1873 = vrot.slane %v1871, 5
        %v1874 = vsel %vm1644, %v1869, %v1873
        %v1875 = vshrl.u32 %v1622, 16
        %v1877 = vrot.slane %v1875, 4
        %v1878 = vor.u32 %v1877, %v1873
        %v1879 = vrot.slane %v1878, 4
        %v1881 = vshll.u32 %v1623, 16
        %v1883 = vrot.slane %v1881, 5
        %v1884 = vsel %vm1644, %v1879, %v1883
        %v1886 = vshrl.u32 %v1624, 16
        %v1888 = vrot.slane %v1886, 4
        %v1889 = vshll.u32 %v1624, 16
        %v1891 = vrot.slane %v1889, 5
        %v1892 = vor.u32 %v1888, %v1891
        %v1893 = vrot.slane %v1892, 4
        %v1895 = vshll.u32 %v1625, 16
        %v1897 = vrot.slane %v1895, 5
        %v1898 = vsel %vm1644, %v1893, %v1897
        %v1899 = vshrl.u32 %v1625, 16
        %v1901 = vrot.slane %v1899, 4
        %v1902 = vor.u32 %v1901, %v1897
        %v1903 = vrot.slane %v1902, 4
        %v1905 = vshll.u32 %v1626, 16
        %v1907 = vrot.slane %v1905, 5
        %v1908 = vsel %vm1644, %v1903, %v1907
        %v1910 = vshrl.u32 %v1627, 16
        %v1912 = vrot.slane %v1910, 4
        %v1913 = vshll.u32 %v1627, 16
        %v1915 = vrot.slane %v1913, 5
        %v1916 = vor.u32 %v1912, %v1915
        %v1917 = vrot.slane %v1916, 4
        %v1919 = vshll.u32 %v1628, 16
        %v1921 = vrot.slane %v1919, 5
        %v1922 = vsel %vm1644, %v1917, %v1921
        %v1923 = vshrl.u32 %v1628, 16
        %v1925 = vrot.slane %v1923, 4
        %v1926 = vor.u32 %v1925, %v1921
        %v1927 = vrot.slane %v1926, 4
        %v1929 = vshll.u32 %v1629, 16
        %v1931 = vrot.slane %v1929, 5
        %v1932 = vsel %vm1644, %v1927, %v1931
        %v1934 = vshrl.u32 %v1630, 16
        %v1936 = vrot.slane %v1934, 4
        %v1937 = vshll.u32 %v1630, 16
        %v1939 = vrot.slane %v1937, 5
        %v1940 = vor.u32 %v1936, %v1939
        %v1941 = vrot.slane %v1940, 4
        %v1943 = vshll.u32 %v1631, 16
        %v1945 = vrot.slane %v1943, 5
        %v1946 = vsel %vm1644, %v1941, %v1945
        %v1947 = vshrl.u32 %v1631, 16
        %v1949 = vrot.slane %v1947, 4
        %v1950 = vor.u32 %v1949, %v1945
        %v1951 = vrot.slane %v1950, 4
        %v1953 = vshll.u32 %v1632, 16
        %v1955 = vrot.slane %v1953, 5
        %v1956 = vsel %vm1644, %v1951, %v1955
        %v1958 = vshrl.u32 %v1633, 16
        %v1960 = vrot.slane %v1958, 4
        %v1961 = vshll.u32 %v1633, 16
        %v1963 = vrot.slane %v1961, 5
        %v1964 = vor.u32 %v1960, %v1963
        %v1965 = vrot.slane %v1964, 4
        %v1967 = vshll.u32 %v1634, 16
        %v1969 = vrot.slane %v1967, 5
        %v1970 = vsel %vm1644, %v1965, %v1969
        %v1971 = vshrl.u32 %v1634, 16
        %v1973 = vrot.slane %v1971, 4
        %v1974 = vor.u32 %v1973, %v1969
        %v1975 = vrot.slane %v1974, 4
        %v1977 = vshll.u32 %v1635, 16
        %v1979 = vrot.slane %v1977, 5
        %v1980 = vsel %vm1644, %v1975, %v1979
        %v1982 = vshrl.u32 %v1636, 16
        %v1984 = vrot.slane %v1982, 4
        %v1985 = vshll.u32 %v1636, 16
        %v1987 = vrot.slane %v1985, 5
        %v1988 = vor.u32 %v1984, %v1987
        %v1989 = vrot.slane %v1988, 4
        %v1991 = vshll.u32 %v1637, 16
        %v1993 = vrot.slane %v1991, 5
        %v1994 = vsel %vm1644, %v1989, %v1993
        %v1995 = vshrl.u32 %v1637, 16
        %v1997 = vrot.slane %v1995, 4
        %v1998 = vor.u32 %v1997, %v1993
        %v1999 = vrot.slane %v1998, 4
        %v2001 = vshll.u32 %v1638, 16
        %v2003 = vrot.slane %v2001, 5
        %v2004 = vsel %vm1644, %v1999, %v2003
        %v2006 = vshrl.u32 %v1639, 16
        %v2008 = vrot.slane %v2006, 4
        %v2009 = vshll.u32 %v1639, 16
        %v2011 = vrot.slane %v2009, 5
        %v2012 = vor.u32 %v2008, %v2011
        %v2013 = vrot.slane %v2012, 4
        %v2015 = vshll.u32 %v1640, 16
        %v2017 = vrot.slane %v2015, 5
        %v2018 = vsel %vm1644, %v2013, %v2017
        %v2019 = vshrl.u32 %v1640, 16
        %v2021 = vrot.slane %v2019, 4
        %v2022 = vor.u32 %v2021, %v2017
        %v2023 = vrot.slane %v2022, 4
        %v2025 = vshll.u32 %v1641, 16
        %v2027 = vrot.slane %v2025, 5
        %v2028 = vsel %vm1644, %v2023, %v2027
        %v2029 = vunpack.c.l.b16 %v1658
        %v2030 = vunpack.c.l.b16 %v1668
        %v2031 = vunpack.c.l.b16 %v1682
        %v2032 = vunpack.c.l.b16 %v1692
        %v2033 = vunpack.c.l.b16 %v1706
        %v2034 = vunpack.c.l.b16 %v1716
        %v2035 = vunpack.c.l.b16 %v1730
        %v2036 = vunpack.c.l.b16 %v1740
        %v2037 = vunpack.c.l.b16 %v1754
        %v2038 = vunpack.c.l.b16 %v1764
        %v2039 = vunpack.c.l.b16 %v1778
        %v2040 = vunpack.c.l.b16 %v1788
        %v2041 = vunpack.c.l.b16 %v1802
        %v2042 = vunpack.c.l.b16 %v1812
        %v2043 = vunpack.c.l.b16 %v1826
        %v2044 = vunpack.c.l.b16 %v1836
        %v2045 = vunpack.c.l.b16 %v1850
        %v2046 = vunpack.c.l.b16 %v1860
        %v2047 = vunpack.c.l.b16 %v1874
        %v2048 = vunpack.c.l.b16 %v1884
        %v2049 = vunpack.c.l.b16 %v1898
        %v2050 = vunpack.c.l.b16 %v1908
        %v2051 = vunpack.c.l.b16 %v1922
        %v2052 = vunpack.c.l.b16 %v1932
        %v2053 = vunpack.c.l.b16 %v1946
        %v2054 = vunpack.c.l.b16 %v1956
        %v2055 = vunpack.c.l.b16 %v1970
        %v2056 = vunpack.c.l.b16 %v1980
        %v2057 = vunpack.c.l.b16 %v1994
        %v2058 = vunpack.c.l.b16 %v2004
        %v2059 = vunpack.c.l.b16 %v2018
        %v2060 = vunpack.c.l.b16 %v2028
        %v2061 = vpack.c.b16 %v2030, %v2029
        %v2062 = vpack.c.b16 %v2032, %v2031
        %v2063 = vpack.c.b16 %v2034, %v2033
        %v2064 = vpack.c.b16 %v2036, %v2035
        %v2065 = vpack.c.b16 %v2038, %v2037
        %v2066 = vpack.c.b16 %v2040, %v2039
        %v2067 = vpack.c.b16 %v2042, %v2041
        %v2068 = vpack.c.b16 %v2044, %v2043
        %v2069 = vpack.c.b16 %v2046, %v2045
        %v2070 = vpack.c.b16 %v2048, %v2047
        %v2071 = vpack.c.b16 %v2050, %v2049
        %v2072 = vpack.c.b16 %v2052, %v2051
        %v2073 = vpack.c.b16 %v2054, %v2053
        %v2074 = vpack.c.b16 %v2056, %v2055
        %v2075 = vpack.c.b16 %v2058, %v2057
        %v2076 = vpack.c.b16 %v2060, %v2059
        %2077 = vrot.lane.b32.xlu0 %v2061, 32
        %v2078 = vpop.permute.xlu0 %2077
        %2079 = vrot.lane.b32.xlu0 %v2062, 32
        %v2080 = vpop.permute.xlu0 %2079
        %2081 = vrot.lane.b32.xlu0 %v2063, 32
        %v2082 = vpop.permute.xlu0 %2081
        %2083 = vrot.lane.b32.xlu0 %v2064, 32
        %v2084 = vpop.permute.xlu0 %2083
        %2085 = vrot.lane.b32.xlu0 %v2065, 32
        %v2086 = vpop.permute.xlu0 %2085
        %2087 = vrot.lane.b32.xlu0 %v2066, 32
        %v2088 = vpop.permute.xlu0 %2087
        %2089 = vrot.lane.b32.xlu0 %v2067, 32
        %v2090 = vpop.permute.xlu0 %2089
        %2091 = vrot.lane.b32.xlu0 %v2068, 32
        %v2092 = vpop.permute.xlu0 %2091
        %2093 = vrot.lane.b32.xlu0 %v2069, 32
        %v2094 = vpop.permute.xlu0 %2093
        %2095 = vrot.lane.b32.xlu0 %v2070, 32
        %v2096 = vpop.permute.xlu0 %2095
        %2097 = vrot.lane.b32.xlu0 %v2071, 32
        %v2098 = vpop.permute.xlu0 %2097
        %2099 = vrot.lane.b32.xlu0 %v2072, 32
        %v2100 = vpop.permute.xlu0 %2099
        %2101 = vrot.lane.b32.xlu0 %v2073, 32
        %v2102 = vpop.permute.xlu0 %2101
        %2103 = vrot.lane.b32.xlu0 %v2074, 32
        %v2104 = vpop.permute.xlu0 %2103
        %2105 = vrot.lane.b32.xlu0 %v2075, 32
        %v2106 = vpop.permute.xlu0 %2105
        %2107 = vrot.lane.b32.xlu0 %v2076, 32
        %v2108 = vpop.permute.xlu0 %2107
        %vm2125 = vcmask 523520
        %2126 = vst.msk [vmem:[#allocation3] sm:$0xff] %vm2125, %v2078
        %2127 = vst.msk [vmem:[#allocation3 + $0x18] sm:$0xff] %vm2125, %v2080
        %2128 = vst.msk [vmem:[#allocation3 + $0x30] sm:$0xff] %vm2125, %v2082
        %2129 = vst.msk [vmem:[#allocation3 + $0x48] sm:$0xff] %vm2125, %v2084
        %2130 = vst.msk [vmem:[#allocation3 + $0x60] sm:$0xff] %vm2125, %v2086
        %2131 = vst.msk [vmem:[#allocation3 + $0x78] sm:$0xff] %vm2125, %v2088
        %2132 = vst.msk [vmem:[#allocation3 + $0x90] sm:$0xff] %vm2125, %v2090
        %2133 = vst.msk [vmem:[#allocation3 + $0xa8] sm:$0xff] %vm2125, %v2092
        %2134 = vst.msk [vmem:[#allocation3 + $0xc0] sm:$0xff] %vm2125, %v2094
        %2135 = vst.msk [vmem:[#allocation3 + $0xd8] sm:$0xff] %vm2125, %v2096
        %2136 = vst.msk [vmem:[#allocation3 + $0xf0] sm:$0xff] %vm2125, %v2098
        %2137 = vst.msk [vmem:[#allocation3 + $0x108] sm:$0xff] %vm2125, %v2100
        %2138 = vst.msk [vmem:[#allocation3 + $0x120] sm:$0xff] %vm2125, %v2102
        %2139 = vst.msk [vmem:[#allocation3 + $0x138] sm:$0xff] %vm2125, %v2104
        %2140 = vst.msk [vmem:[#allocation3 + $0x150] sm:$0xff] %vm2125, %v2106
        %2141 = vst.msk [vmem:[#allocation3 + $0x168] sm:$0xff] %vm2125, %v2108
        %v2142 = vld [vmem:[#allocation2] sm:$0xe]
        %v2143 = vld [vmem:[#allocation2 + $0x4] sm:$0xf]
        %v2144 = vld [vmem:[#allocation2 + $0x8] sm:$0x1]
        %v2145 = vld [vmem:[#allocation2 + $0xc] sm:$0xe]
        %v2146 = vld [vmem:[#allocation2 + $0x10] sm:$0xf]
        %v2147 = vld [vmem:[#allocation2 + $0x14] sm:$0x1]
        %v2148 = vld [vmem:[#allocation2 + $0x18] sm:$0xe]
        %v2149 = vld [vmem:[#allocation2 + $0x1c] sm:$0xf]
        %v2150 = vld [vmem:[#allocation2 + $0x20] sm:$0x1]
        %v2151 = vld [vmem:[#allocation2 + $0x24] sm:$0xe]
        %v2152 = vld [vmem:[#allocation2 + $0x28] sm:$0xf]
        %v2153 = vld [vmem:[#allocation2 + $0x2c] sm:$0x1]
        %v2154 = vld [vmem:[#allocation2 + $0x30] sm:$0xe]
        %v2155 = vld [vmem:[#allocation2 + $0x34] sm:$0xf]
        %v2156 = vld [vmem:[#allocation2 + $0x38] sm:$0x1]
        %v2157 = vld [vmem:[#allocation2 + $0x3c] sm:$0xe]
        %v2158 = vld [vmem:[#allocation2 + $0x40] sm:$0xf]
        %v2159 = vld [vmem:[#allocation2 + $0x44] sm:$0x1]
        %v2160 = vld [vmem:[#allocation2 + $0x48] sm:$0xe]
        %v2161 = vld [vmem:[#allocation2 + $0x4c] sm:$0xf]
        %v2162 = vld [vmem:[#allocation2 + $0x50] sm:$0x1]
        %v2163 = vld [vmem:[#allocation2 + $0x54] sm:$0xe]
        %v2164 = vld [vmem:[#allocation2 + $0x58] sm:$0xf]
        %v2165 = vld [vmem:[#allocation2 + $0x5c] sm:$0x1]
        %v2166 = vld [vmem:[#allocation2 + $0x60] sm:$0xe]
        %v2167 = vld [vmem:[#allocation2 + $0x64] sm:$0xf]
        %v2168 = vld [vmem:[#allocation2 + $0x68] sm:$0x1]
        %v2169 = vld [vmem:[#allocation2 + $0x6c] sm:$0xe]
        %v2170 = vld [vmem:[#allocation2 + $0x70] sm:$0xf]
        %v2171 = vld [vmem:[#allocation2 + $0x74] sm:$0x1]
        %v2172 = vld [vmem:[#allocation2 + $0x78] sm:$0xe]
        %v2173 = vld [vmem:[#allocation2 + $0x7c] sm:$0xf]
        %v2174 = vld [vmem:[#allocation2 + $0x80] sm:$0x1]
        %v2175 = vld [vmem:[#allocation2 + $0x84] sm:$0xe]
        %v2176 = vld [vmem:[#allocation2 + $0x88] sm:$0xf]
        %v2177 = vld [vmem:[#allocation2 + $0x8c] sm:$0x1]
        %v2178 = vld [vmem:[#allocation2 + $0x90] sm:$0xe]
        %v2179 = vld [vmem:[#allocation2 + $0x94] sm:$0xf]
        %v2180 = vld [vmem:[#allocation2 + $0x98] sm:$0x1]
        %v2181 = vld [vmem:[#allocation2 + $0x9c] sm:$0xe]
        %v2182 = vld [vmem:[#allocation2 + $0xa0] sm:$0xf]
        %v2183 = vld [vmem:[#allocation2 + $0xa4] sm:$0x1]
        %v2184 = vld [vmem:[#allocation2 + $0xa8] sm:$0xe]
        %v2185 = vld [vmem:[#allocation2 + $0xac] sm:$0xf]
        %v2186 = vld [vmem:[#allocation2 + $0xb0] sm:$0x1]
        %v2187 = vld [vmem:[#allocation2 + $0xb4] sm:$0xe]
        %v2188 = vld [vmem:[#allocation2 + $0xb8] sm:$0xf]
        %v2189 = vld [vmem:[#allocation2 + $0xbc] sm:$0x1]
        %vm2238 = vcmask 1042432
        %vm2239 = vcmask 1046532
        %vm2240 = vmor %vm2238, %vm2239
        %v2241 = vrot.slane %v2142, 5
        %v2242 = vrot.slane %v2241, 4
        %v2243 = vrot.slane %v2143, 5
        %v2244 = vsel %vm2240, %v2242, %v2243
        %v2245 = vrot.slane %v2243, 4
        %v2246 = vrot.slane %v2144, 5
        %v2247 = vsel %vm2240, %v2245, %v2246
        %v2248 = vrot.slane %v2145, 5
        %v2249 = vrot.slane %v2248, 4
        %v2250 = vrot.slane %v2146, 5
        %v2251 = vsel %vm2240, %v2249, %v2250
        %v2252 = vrot.slane %v2250, 4
        %v2253 = vrot.slane %v2147, 5
        %v2254 = vsel %vm2240, %v2252, %v2253
        %v2255 = vrot.slane %v2148, 5
        %v2256 = vrot.slane %v2255, 4
        %v2257 = vrot.slane %v2149, 5
        %v2258 = vsel %vm2240, %v2256, %v2257
        %v2259 = vrot.slane %v2257, 4
        %v2260 = vrot.slane %v2150, 5
        %v2261 = vsel %vm2240, %v2259, %v2260
        %v2262 = vrot.slane %v2151, 5
        %v2263 = vrot.slane %v2262, 4
        %v2264 = vrot.slane %v2152, 5
        %v2265 = vsel %vm2240, %v2263, %v2264
        %v2266 = vrot.slane %v2264, 4
        %v2267 = vrot.slane %v2153, 5
        %v2268 = vsel %vm2240, %v2266, %v2267
        %v2269 = vrot.slane %v2154, 5
        %v2270 = vrot.slane %v2269, 4
        %v2271 = vrot.slane %v2155, 5
        %v2272 = vsel %vm2240, %v2270, %v2271
        %v2273 = vrot.slane %v2271, 4
        %v2274 = vrot.slane %v2156, 5
        %v2275 = vsel %vm2240, %v2273, %v2274
        %v2276 = vrot.slane %v2157, 5
        %v2277 = vrot.slane %v2276, 4
        %v2278 = vrot.slane %v2158, 5
        %v2279 = vsel %vm2240, %v2277, %v2278
        %v2280 = vrot.slane %v2278, 4
        %v2281 = vrot.slane %v2159, 5
        %v2282 = vsel %vm2240, %v2280, %v2281
        %v2283 = vrot.slane %v2160, 5
        %v2284 = vrot.slane %v2283, 4
        %v2285 = vrot.slane %v2161, 5
        %v2286 = vsel %vm2240, %v2284, %v2285
        %v2287 = vrot.slane %v2285, 4
        %v2288 = vrot.slane %v2162, 5
        %v2289 = vsel %vm2240, %v2287, %v2288
        %v2290 = vrot.slane %v2163, 5
        %v2291 = vrot.slane %v2290, 4
        %v2292 = vrot.slane %v2164, 5
        %v2293 = vsel %vm2240, %v2291, %v2292
        %v2294 = vrot.slane %v2292, 4
        %v2295 = vrot.slane %v2165, 5
        %v2296 = vsel %vm2240, %v2294, %v2295
        %v2297 = vrot.slane %v2166, 5
        %v2298 = vrot.slane %v2297, 4
        %v2299 = vrot.slane %v2167, 5
        %v2300 = vsel %vm2240, %v2298, %v2299
        %v2301 = vrot.slane %v2299, 4
        %v2302 = vrot.slane %v2168, 5
        %v2303 = vsel %vm2240, %v2301, %v2302
        %v2304 = vrot.slane %v2169, 5
        %v2305 = vrot.slane %v2304, 4
        %v2306 = vrot.slane %v2170, 5
        %v2307 = vsel %vm2240, %v2305, %v2306
        %v2308 = vrot.slane %v2306, 4
        %v2309 = vrot.slane %v2171, 5
        %v2310 = vsel %vm2240, %v2308, %v2309
        %v2311 = vrot.slane %v2172, 5
        %v2312 = vrot.slane %v2311, 4
        %v2313 = vrot.slane %v2173, 5
        %v2314 = vsel %vm2240, %v2312, %v2313
        %v2315 = vrot.slane %v2313, 4
        %v2316 = vrot.slane %v2174, 5
        %v2317 = vsel %vm2240, %v2315, %v2316
        %v2318 = vrot.slane %v2175, 5
        %v2319 = vrot.slane %v2318, 4
        %v2320 = vrot.slane %v2176, 5
        %v2321 = vsel %vm2240, %v2319, %v2320
        %v2322 = vrot.slane %v2320, 4
        %v2323 = vrot.slane %v2177, 5
        %v2324 = vsel %vm2240, %v2322, %v2323
        %v2325 = vrot.slane %v2178, 5
        %v2326 = vrot.slane %v2325, 4
        %v2327 = vrot.slane %v2179, 5
        %v2328 = vsel %vm2240, %v2326, %v2327
        %v2329 = vrot.slane %v2327, 4
        %v2330 = vrot.slane %v2180, 5
        %v2331 = vsel %vm2240, %v2329, %v2330
        %v2332 = vrot.slane %v2181, 5
        %v2333 = vrot.slane %v2332, 4
        %v2334 = vrot.slane %v2182, 5
        %v2335 = vsel %vm2240, %v2333, %v2334
        %v2336 = vrot.slane %v2334, 4
        %v2337 = vrot.slane %v2183, 5
        %v2338 = vsel %vm2240, %v2336, %v2337
        %v2339 = vrot.slane %v2184, 5
        %v2340 = vrot.slane %v2339, 4
        %v2341 = vrot.slane %v2185, 5
        %v2342 = vsel %vm2240, %v2340, %v2341
        %v2343 = vrot.slane %v2341, 4
        %v2344 = vrot.slane %v2186, 5
        %v2345 = vsel %vm2240, %v2343, %v2344
        %v2346 = vrot.slane %v2187, 5
        %v2347 = vrot.slane %v2346, 4
        %v2348 = vrot.slane %v2188, 5
        %v2349 = vsel %vm2240, %v2347, %v2348
        %v2350 = vrot.slane %v2348, 4
        %v2351 = vrot.slane %v2189, 5
        %v2352 = vsel %vm2240, %v2350, %v2351
        %v2353 = vunpack.c.l.b16 %v2244
        %v2354 = vunpack.c.l.b16 %v2247
        %v2355 = vunpack.c.l.b16 %v2251
        %v2356 = vunpack.c.l.b16 %v2254
        %v2357 = vunpack.c.l.b16 %v2258
        %v2358 = vunpack.c.l.b16 %v2261
        %v2359 = vunpack.c.l.b16 %v2265
        %v2360 = vunpack.c.l.b16 %v2268
        %v2361 = vunpack.c.l.b16 %v2272
        %v2362 = vunpack.c.l.b16 %v2275
        %v2363 = vunpack.c.l.b16 %v2279
        %v2364 = vunpack.c.l.b16 %v2282
        %v2365 = vunpack.c.l.b16 %v2286
        %v2366 = vunpack.c.l.b16 %v2289
        %v2367 = vunpack.c.l.b16 %v2293
        %v2368 = vunpack.c.l.b16 %v2296
        %v2369 = vunpack.c.l.b16 %v2300
        %v2370 = vunpack.c.l.b16 %v2303
        %v2371 = vunpack.c.l.b16 %v2307
        %v2372 = vunpack.c.l.b16 %v2310
        %v2373 = vunpack.c.l.b16 %v2314
        %v2374 = vunpack.c.l.b16 %v2317
        %v2375 = vunpack.c.l.b16 %v2321
        %v2376 = vunpack.c.l.b16 %v2324
        %v2377 = vunpack.c.l.b16 %v2328
        %v2378 = vunpack.c.l.b16 %v2331
        %v2379 = vunpack.c.l.b16 %v2335
        %v2380 = vunpack.c.l.b16 %v2338
        %v2381 = vunpack.c.l.b16 %v2342
        %v2382 = vunpack.c.l.b16 %v2345
        %v2383 = vunpack.c.l.b16 %v2349
        %v2384 = vunpack.c.l.b16 %v2352
        %v2385 = vpack.c.b16 %v2354, %v2353
        %v2386 = vpack.c.b16 %v2356, %v2355
        %v2387 = vpack.c.b16 %v2358, %v2357
        %v2388 = vpack.c.b16 %v2360, %v2359
        %v2389 = vpack.c.b16 %v2362, %v2361
        %v2390 = vpack.c.b16 %v2364, %v2363
        %v2391 = vpack.c.b16 %v2366, %v2365
        %v2392 = vpack.c.b16 %v2368, %v2367
        %v2393 = vpack.c.b16 %v2370, %v2369
        %v2394 = vpack.c.b16 %v2372, %v2371
        %v2395 = vpack.c.b16 %v2374, %v2373
        %v2396 = vpack.c.b16 %v2376, %v2375
        %v2397 = vpack.c.b16 %v2378, %v2377
        %v2398 = vpack.c.b16 %v2380, %v2379
        %v2399 = vpack.c.b16 %v2382, %v2381
        %v2400 = vpack.c.b16 %v2384, %v2383
        %2401 = vrot.lane.b32.xlu0 %v2385, 64
        %v2402 = vpop.permute.xlu0 %2401
        %2403 = vrot.lane.b32.xlu0 %v2386, 64
        %v2404 = vpop.permute.xlu0 %2403
        %2405 = vrot.lane.b32.xlu0 %v2387, 64
        %v2406 = vpop.permute.xlu0 %2405
        %2407 = vrot.lane.b32.xlu0 %v2388, 64
        %v2408 = vpop.permute.xlu0 %2407
        %2409 = vrot.lane.b32.xlu0 %v2389, 64
        %v2410 = vpop.permute.xlu0 %2409
        %2411 = vrot.lane.b32.xlu0 %v2390, 64
        %v2412 = vpop.permute.xlu0 %2411
        %2413 = vrot.lane.b32.xlu0 %v2391, 64
        %v2414 = vpop.permute.xlu0 %2413
        %2415 = vrot.lane.b32.xlu0 %v2392, 64
        %v2416 = vpop.permute.xlu0 %2415
        %2417 = vrot.lane.b32.xlu0 %v2393, 64
        %v2418 = vpop.permute.xlu0 %2417
        %2419 = vrot.lane.b32.xlu0 %v2394, 64
        %v2420 = vpop.permute.xlu0 %2419
        %2421 = vrot.lane.b32.xlu0 %v2395, 64
        %v2422 = vpop.permute.xlu0 %2421
        %2423 = vrot.lane.b32.xlu0 %v2396, 64
        %v2424 = vpop.permute.xlu0 %2423
        %2425 = vrot.lane.b32.xlu0 %v2397, 64
        %v2426 = vpop.permute.xlu0 %2425
        %2427 = vrot.lane.b32.xlu0 %v2398, 64
        %v2428 = vpop.permute.xlu0 %2427
        %2429 = vrot.lane.b32.xlu0 %v2399, 64
        %v2430 = vpop.permute.xlu0 %2429
        %2431 = vrot.lane.b32.xlu0 %v2400, 64
        %v2432 = vpop.permute.xlu0 %2431
        %vm2449 = vcmask 785920
        %2450 = vst.msk [vmem:[#allocation3] sm:$0xff] %vm2449, %v2402
        %2451 = vst.msk [vmem:[#allocation3 + $0x18] sm:$0xff] %vm2449, %v2404
        %2452 = vst.msk [vmem:[#allocation3 + $0x30] sm:$0xff] %vm2449, %v2406
        %2453 = vst.msk [vmem:[#allocation3 + $0x48] sm:$0xff] %vm2449, %v2408
        %2454 = vst.msk [vmem:[#allocation3 + $0x60] sm:$0xff] %vm2449, %v2410
        %2455 = vst.msk [vmem:[#allocation3 + $0x78] sm:$0xff] %vm2449, %v2412
        %2456 = vst.msk [vmem:[#allocation3 + $0x90] sm:$0xff] %vm2449, %v2414
        %2457 = vst.msk [vmem:[#allocation3 + $0xa8] sm:$0xff] %vm2449, %v2416
        %2458 = vst.msk [vmem:[#allocation3 + $0xc0] sm:$0xff] %vm2449, %v2418
        %2459 = vst.msk [vmem:[#allocation3 + $0xd8] sm:$0xff] %vm2449, %v2420
        %2460 = vst.msk [vmem:[#allocation3 + $0xf0] sm:$0xff] %vm2449, %v2422
        %2461 = vst.msk [vmem:[#allocation3 + $0x108] sm:$0xff] %vm2449, %v2424
        %2462 = vst.msk [vmem:[#allocation3 + $0x120] sm:$0xff] %vm2449, %v2426
        %2463 = vst.msk [vmem:[#allocation3 + $0x138] sm:$0xff] %vm2449, %v2428
        %2464 = vst.msk [vmem:[#allocation3 + $0x150] sm:$0xff] %vm2449, %v2430
        %2465 = vst.msk [vmem:[#allocation3 + $0x168] sm:$0xff] %vm2449, %v2432
        %v2466 = vld [vmem:[%s832] sm:$0xf]
        %v2467 = vld [vmem:[%s832 + $0x4] sm:$0xf]
        %v2468 = vld [vmem:[%s832 + $0xc] sm:$0xf]
        %v2469 = vld [vmem:[%s832 + $0x10] sm:$0xf]
        %v2470 = vld [vmem:[%s832 + $0x18] sm:$0xf]
        %v2471 = vld [vmem:[%s832 + $0x1c] sm:$0xf]
        %v2472 = vld [vmem:[%s832 + $0x24] sm:$0xf]
        %v2473 = vld [vmem:[%s832 + $0x28] sm:$0xf]
        %v2474 = vld [vmem:[%s832 + $0x30] sm:$0xf]
        %v2475 = vld [vmem:[%s832 + $0x34] sm:$0xf]
        %v2476 = vld [vmem:[%s832 + $0x3c] sm:$0xf]
        %v2477 = vld [vmem:[%s832 + $0x40] sm:$0xf]
        %v2478 = vld [vmem:[%s832 + $0x48] sm:$0xf]
        %v2479 = vld [vmem:[%s832 + $0x4c] sm:$0xf]
        %v2480 = vld [vmem:[%s832 + $0x54] sm:$0xf]
        %v2481 = vld [vmem:[%s832 + $0x58] sm:$0xf]
        %v2482 = vld [vmem:[%s832 + $0x60] sm:$0xf]
        %v2483 = vld [vmem:[%s832 + $0x64] sm:$0xf]
        %v2484 = vld [vmem:[%s832 + $0x6c] sm:$0xf]
        %v2485 = vld [vmem:[%s832 + $0x70] sm:$0xf]
        %v2486 = vld [vmem:[%s832 + $0x78] sm:$0xf]
        %v2487 = vld [vmem:[%s832 + $0x7c] sm:$0xf]
        %v2488 = vld [vmem:[%s832 + $0x84] sm:$0xf]
        %v2489 = vld [vmem:[%s832 + $0x88] sm:$0xf]
        %v2490 = vld [vmem:[%s832 + $0x90] sm:$0xf]
        %v2491 = vld [vmem:[%s832 + $0x94] sm:$0xf]
        %v2492 = vld [vmem:[%s832 + $0x9c] sm:$0xf]
        %v2493 = vld [vmem:[%s832 + $0xa0] sm:$0xf]
        %v2494 = vld [vmem:[%s832 + $0xa8] sm:$0xf]
        %v2495 = vld [vmem:[%s832 + $0xac] sm:$0xf]
        %v2496 = vld [vmem:[%s832 + $0xb4] sm:$0xf]
        %v2497 = vld [vmem:[%s832 + $0xb8] sm:$0xf]
        %v2530 = vunpack.c.l.b16 %v2466
        %v2531 = vunpack.c.l.b16 %v2467
        %v2532 = vunpack.c.l.b16 %v2468
        %v2533 = vunpack.c.l.b16 %v2469
        %v2534 = vunpack.c.l.b16 %v2470
        %v2535 = vunpack.c.l.b16 %v2471
        %v2536 = vunpack.c.l.b16 %v2472
        %v2537 = vunpack.c.l.b16 %v2473
        %v2538 = vunpack.c.l.b16 %v2474
        %v2539 = vunpack.c.l.b16 %v2475
        %v2540 = vunpack.c.l.b16 %v2476
        %v2541 = vunpack.c.l.b16 %v2477
        %v2542 = vunpack.c.l.b16 %v2478
        %v2543 = vunpack.c.l.b16 %v2479
        %v2544 = vunpack.c.l.b16 %v2480
        %v2545 = vunpack.c.l.b16 %v2481
        %v2546 = vunpack.c.l.b16 %v2482
        %v2547 = vunpack.c.l.b16 %v2483
        %v2548 = vunpack.c.l.b16 %v2484
        %v2549 = vunpack.c.l.b16 %v2485
        %v2550 = vunpack.c.l.b16 %v2486
        %v2551 = vunpack.c.l.b16 %v2487
        %v2552 = vunpack.c.l.b16 %v2488
        %v2553 = vunpack.c.l.b16 %v2489
        %v2554 = vunpack.c.l.b16 %v2490
        %v2555 = vunpack.c.l.b16 %v2491
        %v2556 = vunpack.c.l.b16 %v2492
        %v2557 = vunpack.c.l.b16 %v2493
        %v2558 = vunpack.c.l.b16 %v2494
        %v2559 = vunpack.c.l.b16 %v2495
        %v2560 = vunpack.c.l.b16 %v2496
        %v2561 = vunpack.c.l.b16 %v2497
        %v2562 = vpack.c.b16 %v2531, %v2530
        %v2563 = vpack.c.b16 %v2533, %v2532
        %v2564 = vpack.c.b16 %v2535, %v2534
        %v2565 = vpack.c.b16 %v2537, %v2536
        %v2566 = vpack.c.b16 %v2539, %v2538
        %v2567 = vpack.c.b16 %v2541, %v2540
        %v2568 = vpack.c.b16 %v2543, %v2542
        %v2569 = vpack.c.b16 %v2545, %v2544
        %v2570 = vpack.c.b16 %v2547, %v2546
        %v2571 = vpack.c.b16 %v2549, %v2548
        %v2572 = vpack.c.b16 %v2551, %v2550
        %v2573 = vpack.c.b16 %v2553, %v2552
        %v2574 = vpack.c.b16 %v2555, %v2554
        %v2575 = vpack.c.b16 %v2557, %v2556
        %v2576 = vpack.c.b16 %v2559, %v2558
        %v2577 = vpack.c.b16 %v2561, %v2560
        %2578 = vrot.lane.b32.xlu0 %v2562, 96
        %v2579 = vpop.permute.xlu0 %2578
        %2580 = vrot.lane.b32.xlu0 %v2563, 96
        %v2581 = vpop.permute.xlu0 %2580
        %2582 = vrot.lane.b32.xlu0 %v2564, 96
        %v2583 = vpop.permute.xlu0 %2582
        %2584 = vrot.lane.b32.xlu0 %v2565, 96
        %v2585 = vpop.permute.xlu0 %2584
        %2586 = vrot.lane.b32.xlu0 %v2566, 96
        %v2587 = vpop.permute.xlu0 %2586
        %2588 = vrot.lane.b32.xlu0 %v2567, 96
        %v2589 = vpop.permute.xlu0 %2588
        %2590 = vrot.lane.b32.xlu0 %v2568, 96
        %v2591 = vpop.permute.xlu0 %2590
        %2592 = vrot.lane.b32.xlu0 %v2569, 96
        %v2593 = vpop.permute.xlu0 %2592
        %2594 = vrot.lane.b32.xlu0 %v2570, 96
        %v2595 = vpop.permute.xlu0 %2594
        %2596 = vrot.lane.b32.xlu0 %v2571, 96
        %v2597 = vpop.permute.xlu0 %2596
        %2598 = vrot.lane.b32.xlu0 %v2572, 96
        %v2599 = vpop.permute.xlu0 %2598
        %2600 = vrot.lane.b32.xlu0 %v2573, 96
        %v2601 = vpop.permute.xlu0 %2600
        %2602 = vrot.lane.b32.xlu0 %v2574, 96
        %v2603 = vpop.permute.xlu0 %2602
        %2604 = vrot.lane.b32.xlu0 %v2575, 96
        %v2605 = vpop.permute.xlu0 %2604
        %2606 = vrot.lane.b32.xlu0 %v2576, 96
        %v2607 = vpop.permute.xlu0 %2606
        %2608 = vrot.lane.b32.xlu0 %v2577, 96
        %v2609 = vpop.permute.xlu0 %2608
        %vm2626 = vcmask 1048320
        %2627 = vst.msk [vmem:[#allocation3] sm:$0xff] %vm2626, %v2579
        %2628 = vst.msk [vmem:[#allocation3 + $0x18] sm:$0xff] %vm2626, %v2581
        %2629 = vst.msk [vmem:[#allocation3 + $0x30] sm:$0xff] %vm2626, %v2583
        %2630 = vst.msk [vmem:[#allocation3 + $0x48] sm:$0xff] %vm2626, %v2585
        %2631 = vst.msk [vmem:[#allocation3 + $0x60] sm:$0xff] %vm2626, %v2587
        %2632 = vst.msk [vmem:[#allocation3 + $0x78] sm:$0xff] %vm2626, %v2589
        %2633 = vst.msk [vmem:[#allocation3 + $0x90] sm:$0xff] %vm2626, %v2591
        %2634 = vst.msk [vmem:[#allocation3 + $0xa8] sm:$0xff] %vm2626, %v2593
        %2635 = vst.msk [vmem:[#allocation3 + $0xc0] sm:$0xff] %vm2626, %v2595
        %2636 = vst.msk [vmem:[#allocation3 + $0xd8] sm:$0xff] %vm2626, %v2597
        %2637 = vst.msk [vmem:[#allocation3 + $0xf0] sm:$0xff] %vm2626, %v2599
        %2638 = vst.msk [vmem:[#allocation3 + $0x108] sm:$0xff] %vm2626, %v2601
        %2639 = vst.msk [vmem:[#allocation3 + $0x120] sm:$0xff] %vm2626, %v2603
        %2640 = vst.msk [vmem:[#allocation3 + $0x138] sm:$0xff] %vm2626, %v2605
        %2641 = vst.msk [vmem:[#allocation3 + $0x150] sm:$0xff] %vm2626, %v2607
        %2642 = vst.msk [vmem:[#allocation3 + $0x168] sm:$0xff] %vm2626, %v2609
        %v2643 = vld [vmem:[%s832] sm:$0xf]
        %v2644 = vld [vmem:[%s832 + $0x4] sm:$0xf]
        %v2645 = vld [vmem:[%s832 + $0x8] sm:$0x1]
        %v2646 = vld [vmem:[%s832 + $0xc] sm:$0xf]
        %v2647 = vld [vmem:[%s832 + $0x10] sm:$0xf]
        %v2648 = vld [vmem:[%s832 + $0x14] sm:$0x1]
        %v2649 = vld [vmem:[%s832 + $0x18] sm:$0xf]
        %v2650 = vld [vmem:[%s832 + $0x1c] sm:$0xf]
        %v2651 = vld [vmem:[%s832 + $0x20] sm:$0x1]
        %v2652 = vld [vmem:[%s832 + $0x24] sm:$0xf]
        %v2653 = vld [vmem:[%s832 + $0x28] sm:$0xf]
        %v2654 = vld [vmem:[%s832 + $0x2c] sm:$0x1]
        %v2655 = vld [vmem:[%s832 + $0x30] sm:$0xf]
        %v2656 = vld [vmem:[%s832 + $0x34] sm:$0xf]
        %v2657 = vld [vmem:[%s832 + $0x38] sm:$0x1]
        %v2658 = vld [vmem:[%s832 + $0x3c] sm:$0xf]
        %v2659 = vld [vmem:[%s832 + $0x40] sm:$0xf]
        %v2660 = vld [vmem:[%s832 + $0x44] sm:$0x1]
        %v2661 = vld [vmem:[%s832 + $0x48] sm:$0xf]
        %v2662 = vld [vmem:[%s832 + $0x4c] sm:$0xf]
        %v2663 = vld [vmem:[%s832 + $0x50] sm:$0x1]
        %v2664 = vld [vmem:[%s832 + $0x54] sm:$0xf]
        %v2665 = vld [vmem:[%s832 + $0x58] sm:$0xf]
        %v2666 = vld [vmem:[%s832 + $0x5c] sm:$0x1]
        %v2667 = vld [vmem:[%s832 + $0x60] sm:$0xf]
        %v2668 = vld [vmem:[%s832 + $0x64] sm:$0xf]
        %v2669 = vld [vmem:[%s832 + $0x68] sm:$0x1]
        %v2670 = vld [vmem:[%s832 + $0x6c] sm:$0xf]
        %v2671 = vld [vmem:[%s832 + $0x70] sm:$0xf]
        %v2672 = vld [vmem:[%s832 + $0x74] sm:$0x1]
        %v2673 = vld [vmem:[%s832 + $0x78] sm:$0xf]
        %v2674 = vld [vmem:[%s832 + $0x7c] sm:$0xf]
        %v2675 = vld [vmem:[%s832 + $0x80] sm:$0x1]
        %v2676 = vld [vmem:[%s832 + $0x84] sm:$0xf]
        %v2677 = vld [vmem:[%s832 + $0x88] sm:$0xf]
        %v2678 = vld [vmem:[%s832 + $0x8c] sm:$0x1]
        %v2679 = vld [vmem:[%s832 + $0x90] sm:$0xf]
        %v2680 = vld [vmem:[%s832 + $0x94] sm:$0xf]
        %v2681 = vld [vmem:[%s832 + $0x98] sm:$0x1]
        %v2682 = vld [vmem:[%s832 + $0x9c] sm:$0xf]
        %v2683 = vld [vmem:[%s832 + $0xa0] sm:$0xf]
        %v2684 = vld [vmem:[%s832 + $0xa4] sm:$0x1]
        %v2685 = vld [vmem:[%s832 + $0xa8] sm:$0xf]
        %v2686 = vld [vmem:[%s832 + $0xac] sm:$0xf]
        %v2687 = vld [vmem:[%s832 + $0xb0] sm:$0x1]
        %v2688 = vld [vmem:[%s832 + $0xb4] sm:$0xf]
        %v2689 = vld [vmem:[%s832 + $0xb8] sm:$0xf]
        %v2690 = vld [vmem:[%s832 + $0xbc] sm:$0x1]
        %v2692 = vshrl.u32 %v2643, 16
        %v2694 = vrot.slane %v2692, 4
        %v2695 = vshll.u32 %v2643, 16
        %v2697 = vrot.slane %v2695, 5
        %v2698 = vor.u32 %v2694, %v2697
        %v2699 = vrot.slane %v2698, 4
        %v2701 = vshll.u32 %v2644, 16
        %v2703 = vrot.slane %v2701, 5
        %v2704 = vsel %vm1644, %v2699, %v2703
        %v2705 = vshrl.u32 %v2644, 16
        %v2707 = vrot.slane %v2705, 4
        %v2708 = vor.u32 %v2707, %v2703
        %v2709 = vrot.slane %v2708, 4
        %v2711 = vshll.u32 %v2645, 16
        %v2713 = vrot.slane %v2711, 5
        %v2714 = vsel %vm1644, %v2709, %v2713
        %v2716 = vshrl.u32 %v2646, 16
        %v2718 = vrot.slane %v2716, 4
        %v2719 = vshll.u32 %v2646, 16
        %v2721 = vrot.slane %v2719, 5
        %v2722 = vor.u32 %v2718, %v2721
        %v2723 = vrot.slane %v2722, 4
        %v2725 = vshll.u32 %v2647, 16
        %v2727 = vrot.slane %v2725, 5
        %v2728 = vsel %vm1644, %v2723, %v2727
        %v2729 = vshrl.u32 %v2647, 16
        %v2731 = vrot.slane %v2729, 4
        %v2732 = vor.u32 %v2731, %v2727
        %v2733 = vrot.slane %v2732, 4
        %v2735 = vshll.u32 %v2648, 16
        %v2737 = vrot.slane %v2735, 5
        %v2738 = vsel %vm1644, %v2733, %v2737
        %v2740 = vshrl.u32 %v2649, 16
        %v2742 = vrot.slane %v2740, 4
        %v2743 = vshll.u32 %v2649, 16
        %v2745 = vrot.slane %v2743, 5
        %v2746 = vor.u32 %v2742, %v2745
        %v2747 = vrot.slane %v2746, 4
        %v2749 = vshll.u32 %v2650, 16
        %v2751 = vrot.slane %v2749, 5
        %v2752 = vsel %vm1644, %v2747, %v2751
        %v2753 = vshrl.u32 %v2650, 16
        %v2755 = vrot.slane %v2753, 4
        %v2756 = vor.u32 %v2755, %v2751
        %v2757 = vrot.slane %v2756, 4
        %v2759 = vshll.u32 %v2651, 16
        %v2761 = vrot.slane %v2759, 5
        %v2762 = vsel %vm1644, %v2757, %v2761
        %v2764 = vshrl.u32 %v2652, 16
        %v2766 = vrot.slane %v2764, 4
        %v2767 = vshll.u32 %v2652, 16
        %v2769 = vrot.slane %v2767, 5
        %v2770 = vor.u32 %v2766, %v2769
        %v2771 = vrot.slane %v2770, 4
        %v2773 = vshll.u32 %v2653, 16
        %v2775 = vrot.slane %v2773, 5
        %v2776 = vsel %vm1644, %v2771, %v2775
        %v2777 = vshrl.u32 %v2653, 16
        %v2779 = vrot.slane %v2777, 4
        %v2780 = vor.u32 %v2779, %v2775
        %v2781 = vrot.slane %v2780, 4
        %v2783 = vshll.u32 %v2654, 16
        %v2785 = vrot.slane %v2783, 5
        %v2786 = vsel %vm1644, %v2781, %v2785
        %v2788 = vshrl.u32 %v2655, 16
        %v2790 = vrot.slane %v2788, 4
        %v2791 = vshll.u32 %v2655, 16
        %v2793 = vrot.slane %v2791, 5
        %v2794 = vor.u32 %v2790, %v2793
        %v2795 = vrot.slane %v2794, 4
        %v2797 = vshll.u32 %v2656, 16
        %v2799 = vrot.slane %v2797, 5
        %v2800 = vsel %vm1644, %v2795, %v2799
        %v2801 = vshrl.u32 %v2656, 16
        %v2803 = vrot.slane %v2801, 4
        %v2804 = vor.u32 %v2803, %v2799
        %v2805 = vrot.slane %v2804, 4
        %v2807 = vshll.u32 %v2657, 16
        %v2809 = vrot.slane %v2807, 5
        %v2810 = vsel %vm1644, %v2805, %v2809
        %v2812 = vshrl.u32 %v2658, 16
        %v2814 = vrot.slane %v2812, 4
        %v2815 = vshll.u32 %v2658, 16
        %v2817 = vrot.slane %v2815, 5
        %v2818 = vor.u32 %v2814, %v2817
        %v2819 = vrot.slane %v2818, 4
        %v2821 = vshll.u32 %v2659, 16
        %v2823 = vrot.slane %v2821, 5
        %v2824 = vsel %vm1644, %v2819, %v2823
        %v2825 = vshrl.u32 %v2659, 16
        %v2827 = vrot.slane %v2825, 4
        %v2828 = vor.u32 %v2827, %v2823
        %v2829 = vrot.slane %v2828, 4
        %v2831 = vshll.u32 %v2660, 16
        %v2833 = vrot.slane %v2831, 5
        %v2834 = vsel %vm1644, %v2829, %v2833
        %v2836 = vshrl.u32 %v2661, 16
        %v2838 = vrot.slane %v2836, 4
        %v2839 = vshll.u32 %v2661, 16
        %v2841 = vrot.slane %v2839, 5
        %v2842 = vor.u32 %v2838, %v2841
        %v2843 = vrot.slane %v2842, 4
        %v2845 = vshll.u32 %v2662, 16
        %v2847 = vrot.slane %v2845, 5
        %v2848 = vsel %vm1644, %v2843, %v2847
        %v2849 = vshrl.u32 %v2662, 16
        %v2851 = vrot.slane %v2849, 4
        %v2852 = vor.u32 %v2851, %v2847
        %v2853 = vrot.slane %v2852, 4
        %v2855 = vshll.u32 %v2663, 16
        %v2857 = vrot.slane %v2855, 5
        %v2858 = vsel %vm1644, %v2853, %v2857
        %v2860 = vshrl.u32 %v2664, 16
        %v2862 = vrot.slane %v2860, 4
        %v2863 = vshll.u32 %v2664, 16
        %v2865 = vrot.slane %v2863, 5
        %v2866 = vor.u32 %v2862, %v2865
        %v2867 = vrot.slane %v2866, 4
        %v2869 = vshll.u32 %v2665, 16
        %v2871 = vrot.slane %v2869, 5
        %v2872 = vsel %vm1644, %v2867, %v2871
        %v2873 = vshrl.u32 %v2665, 16
        %v2875 = vrot.slane %v2873, 4
        %v2876 = vor.u32 %v2875, %v2871
        %v2877 = vrot.slane %v2876, 4
        %v2879 = vshll.u32 %v2666, 16
        %v2881 = vrot.slane %v2879, 5
        %v2882 = vsel %vm1644, %v2877, %v2881
        %v2884 = vshrl.u32 %v2667, 16
        %v2886 = vrot.slane %v2884, 4
        %v2887 = vshll.u32 %v2667, 16
        %v2889 = vrot.slane %v2887, 5
        %v2890 = vor.u32 %v2886, %v2889
        %v2891 = vrot.slane %v2890, 4
        %v2893 = vshll.u32 %v2668, 16
        %v2895 = vrot.slane %v2893, 5
        %v2896 = vsel %vm1644, %v2891, %v2895
        %v2897 = vshrl.u32 %v2668, 16
        %v2899 = vrot.slane %v2897, 4
        %v2900 = vor.u32 %v2899, %v2895
        %v2901 = vrot.slane %v2900, 4
        %v2903 = vshll.u32 %v2669, 16
        %v2905 = vrot.slane %v2903, 5
        %v2906 = vsel %vm1644, %v2901, %v2905
        %v2908 = vshrl.u32 %v2670, 16
        %v2910 = vrot.slane %v2908, 4
        %v2911 = vshll.u32 %v2670, 16
        %v2913 = vrot.slane %v2911, 5
        %v2914 = vor.u32 %v2910, %v2913
        %v2915 = vrot.slane %v2914, 4
        %v2917 = vshll.u32 %v2671, 16
        %v2919 = vrot.slane %v2917, 5
        %v2920 = vsel %vm1644, %v2915, %v2919
        %v2921 = vshrl.u32 %v2671, 16
        %v2923 = vrot.slane %v2921, 4
        %v2924 = vor.u32 %v2923, %v2919
        %v2925 = vrot.slane %v2924, 4
        %v2927 = vshll.u32 %v2672, 16
        %v2929 = vrot.slane %v2927, 5
        %v2930 = vsel %vm1644, %v2925, %v2929
        %v2932 = vshrl.u32 %v2673, 16
        %v2934 = vrot.slane %v2932, 4
        %v2935 = vshll.u32 %v2673, 16
        %v2937 = vrot.slane %v2935, 5
        %v2938 = vor.u32 %v2934, %v2937
        %v2939 = vrot.slane %v2938, 4
        %v2941 = vshll.u32 %v2674, 16
        %v2943 = vrot.slane %v2941, 5
        %v2944 = vsel %vm1644, %v2939, %v2943
        %v2945 = vshrl.u32 %v2674, 16
        %v2947 = vrot.slane %v2945, 4
        %v2948 = vor.u32 %v2947, %v2943
        %v2949 = vrot.slane %v2948, 4
        %v2951 = vshll.u32 %v2675, 16
        %v2953 = vrot.slane %v2951, 5
        %v2954 = vsel %vm1644, %v2949, %v2953
        %v2956 = vshrl.u32 %v2676, 16
        %v2958 = vrot.slane %v2956, 4
        %v2959 = vshll.u32 %v2676, 16
        %v2961 = vrot.slane %v2959, 5
        %v2962 = vor.u32 %v2958, %v2961
        %v2963 = vrot.slane %v2962, 4
        %v2965 = vshll.u32 %v2677, 16
        %v2967 = vrot.slane %v2965, 5
        %v2968 = vsel %vm1644, %v2963, %v2967
        %v2969 = vshrl.u32 %v2677, 16
        %v2971 = vrot.slane %v2969, 4
        %v2972 = vor.u32 %v2971, %v2967
        %v2973 = vrot.slane %v2972, 4
        %v2975 = vshll.u32 %v2678, 16
        %v2977 = vrot.slane %v2975, 5
        %v2978 = vsel %vm1644, %v2973, %v2977
        %v2980 = vshrl.u32 %v2679, 16
        %v2982 = vrot.slane %v2980, 4
        %v2983 = vshll.u32 %v2679, 16
        %v2985 = vrot.slane %v2983, 5
        %v2986 = vor.u32 %v2982, %v2985
        %v2987 = vrot.slane %v2986, 4
        %v2989 = vshll.u32 %v2680, 16
        %v2991 = vrot.slane %v2989, 5
        %v2992 = vsel %vm1644, %v2987, %v2991
        %v2993 = vshrl.u32 %v2680, 16
        %v2995 = vrot.slane %v2993, 4
        %v2996 = vor.u32 %v2995, %v2991
        %v2997 = vrot.slane %v2996, 4
        %v2999 = vshll.u32 %v2681, 16
        %v3001 = vrot.slane %v2999, 5
        %v3002 = vsel %vm1644, %v2997, %v3001
        %v3004 = vshrl.u32 %v2682, 16
        %v3006 = vrot.slane %v3004, 4
        %v3007 = vshll.u32 %v2682, 16
        %v3009 = vrot.slane %v3007, 5
        %v3010 = vor.u32 %v3006, %v3009
        %v3011 = vrot.slane %v3010, 4
        %v3013 = vshll.u32 %v2683, 16
        %v3015 = vrot.slane %v3013, 5
        %v3016 = vsel %vm1644, %v3011, %v3015
        %v3017 = vshrl.u32 %v2683, 16
        %v3019 = vrot.slane %v3017, 4
        %v3020 = vor.u32 %v3019, %v3015
        %v3021 = vrot.slane %v3020, 4
        %v3023 = vshll.u32 %v2684, 16
        %v3025 = vrot.slane %v3023, 5
        %v3026 = vsel %vm1644, %v3021, %v3025
        %v3028 = vshrl.u32 %v2685, 16
        %v3030 = vrot.slane %v3028, 4
        %v3031 = vshll.u32 %v2685, 16
        %v3033 = vrot.slane %v3031, 5
        %v3034 = vor.u32 %v3030, %v3033
        %v3035 = vrot.slane %v3034, 4
        %v3037 = vshll.u32 %v2686, 16
        %v3039 = vrot.slane %v3037, 5
        %v3040 = vsel %vm1644, %v3035, %v3039
        %v3041 = vshrl.u32 %v2686, 16
        %v3043 = vrot.slane %v3041, 4
        %v3044 = vor.u32 %v3043, %v3039
        %v3045 = vrot.slane %v3044, 4
        %v3047 = vshll.u32 %v2687, 16
        %v3049 = vrot.slane %v3047, 5
        %v3050 = vsel %vm1644, %v3045, %v3049
        %v3052 = vshrl.u32 %v2688, 16
        %v3054 = vrot.slane %v3052, 4
        %v3055 = vshll.u32 %v2688, 16
        %v3057 = vrot.slane %v3055, 5
        %v3058 = vor.u32 %v3054, %v3057
        %v3059 = vrot.slane %v3058, 4
        %v3061 = vshll.u32 %v2689, 16
        %v3063 = vrot.slane %v3061, 5
        %v3064 = vsel %vm1644, %v3059, %v3063
        %v3065 = vshrl.u32 %v2689, 16
        %v3067 = vrot.slane %v3065, 4
        %v3068 = vor.u32 %v3067, %v3063
        %v3069 = vrot.slane %v3068, 4
        %v3071 = vshll.u32 %v2690, 16
        %v3073 = vrot.slane %v3071, 5
        %v3074 = vsel %vm1644, %v3069, %v3073
        %v3075 = vunpack.c.l.b16 %v2704
        %v3076 = vunpack.c.l.b16 %v2714
        %v3077 = vunpack.c.l.b16 %v2728
        %v3078 = vunpack.c.l.b16 %v2738
        %v3079 = vunpack.c.l.b16 %v2752
        %v3080 = vunpack.c.l.b16 %v2762
        %v3081 = vunpack.c.l.b16 %v2776
        %v3082 = vunpack.c.l.b16 %v2786
        %v3083 = vunpack.c.l.b16 %v2800
        %v3084 = vunpack.c.l.b16 %v2810
        %v3085 = vunpack.c.l.b16 %v2824
        %v3086 = vunpack.c.l.b16 %v2834
        %v3087 = vunpack.c.l.b16 %v2848
        %v3088 = vunpack.c.l.b16 %v2858
        %v3089 = vunpack.c.l.b16 %v2872
        %v3090 = vunpack.c.l.b16 %v2882
        %v3091 = vunpack.c.l.b16 %v2896
        %v3092 = vunpack.c.l.b16 %v2906
        %v3093 = vunpack.c.l.b16 %v2920
        %v3094 = vunpack.c.l.b16 %v2930
        %v3095 = vunpack.c.l.b16 %v2944
        %v3096 = vunpack.c.l.b16 %v2954
        %v3097 = vunpack.c.l.b16 %v2968
        %v3098 = vunpack.c.l.b16 %v2978
        %v3099 = vunpack.c.l.b16 %v2992
        %v3100 = vunpack.c.l.b16 %v3002
        %v3101 = vunpack.c.l.b16 %v3016
        %v3102 = vunpack.c.l.b16 %v3026
        %v3103 = vunpack.c.l.b16 %v3040
        %v3104 = vunpack.c.l.b16 %v3050
        %v3105 = vunpack.c.l.b16 %v3064
        %v3106 = vunpack.c.l.b16 %v3074
        %v3107 = vpack.c.b16 %v3076, %v3075
        %v3108 = vpack.c.b16 %v3078, %v3077
        %v3109 = vpack.c.b16 %v3080, %v3079
        %v3110 = vpack.c.b16 %v3082, %v3081
        %v3111 = vpack.c.b16 %v3084, %v3083
        %v3112 = vpack.c.b16 %v3086, %v3085
        %v3113 = vpack.c.b16 %v3088, %v3087
        %v3114 = vpack.c.b16 %v3090, %v3089
        %v3115 = vpack.c.b16 %v3092, %v3091
        %v3116 = vpack.c.b16 %v3094, %v3093
        %v3117 = vpack.c.b16 %v3096, %v3095
        %v3118 = vpack.c.b16 %v3098, %v3097
        %v3119 = vpack.c.b16 %v3100, %v3099
        %v3120 = vpack.c.b16 %v3102, %v3101
        %v3121 = vpack.c.b16 %v3104, %v3103
        %v3122 = vpack.c.b16 %v3106, %v3105
        %3139 = vst.msk [vmem:[#allocation3 + $0x8] sm:$0xff] %vm487, %v3107
        %3140 = vst.msk [vmem:[#allocation3 + $0x20] sm:$0xff] %vm487, %v3108
        %3141 = vst.msk [vmem:[#allocation3 + $0x38] sm:$0xff] %vm487, %v3109
        %3142 = vst.msk [vmem:[#allocation3 + $0x50] sm:$0xff] %vm487, %v3110
        %3143 = vst.msk [vmem:[#allocation3 + $0x68] sm:$0xff] %vm487, %v3111
        %3144 = vst.msk [vmem:[#allocation3 + $0x80] sm:$0xff] %vm487, %v3112
        %3145 = vst.msk [vmem:[#allocation3 + $0x98] sm:$0xff] %vm487, %v3113
        %3146 = vst.msk [vmem:[#allocation3 + $0xb0] sm:$0xff] %vm487, %v3114
        %3147 = vst.msk [vmem:[#allocation3 + $0xc8] sm:$0xff] %vm487, %v3115
        %3148 = vst.msk [vmem:[#allocation3 + $0xe0] sm:$0xff] %vm487, %v3116
        %3149 = vst.msk [vmem:[#allocation3 + $0xf8] sm:$0xff] %vm487, %v3117
        %3150 = vst.msk [vmem:[#allocation3 + $0x110] sm:$0xff] %vm487, %v3118
        %3151 = vst.msk [vmem:[#allocation3 + $0x128] sm:$0xff] %vm487, %v3119
        %3152 = vst.msk [vmem:[#allocation3 + $0x140] sm:$0xff] %vm487, %v3120
        %3153 = vst.msk [vmem:[#allocation3 + $0x158] sm:$0xff] %vm487, %v3121
        %3154 = vst.msk [vmem:[#allocation3 + $0x170] sm:$0xff] %vm487, %v3122
        %v3155 = vld [vmem:[%s832] sm:$0xe]
        %v3156 = vld [vmem:[%s832 + $0x4] sm:$0xf]
        %v3157 = vld [vmem:[%s832 + $0x8] sm:$0x1]
        %v3158 = vld [vmem:[%s832 + $0xc] sm:$0xe]
        %v3159 = vld [vmem:[%s832 + $0x10] sm:$0xf]
        %v3160 = vld [vmem:[%s832 + $0x14] sm:$0x1]
        %v3161 = vld [vmem:[%s832 + $0x18] sm:$0xe]
        %v3162 = vld [vmem:[%s832 + $0x1c] sm:$0xf]
        %v3163 = vld [vmem:[%s832 + $0x20] sm:$0x1]
        %v3164 = vld [vmem:[%s832 + $0x24] sm:$0xe]
        %v3165 = vld [vmem:[%s832 + $0x28] sm:$0xf]
        %v3166 = vld [vmem:[%s832 + $0x2c] sm:$0x1]
        %v3167 = vld [vmem:[%s832 + $0x30] sm:$0xe]
        %v3168 = vld [vmem:[%s832 + $0x34] sm:$0xf]
        %v3169 = vld [vmem:[%s832 + $0x38] sm:$0x1]
        %v3170 = vld [vmem:[%s832 + $0x3c] sm:$0xe]
        %v3171 = vld [vmem:[%s832 + $0x40] sm:$0xf]
        %v3172 = vld [vmem:[%s832 + $0x44] sm:$0x1]
        %v3173 = vld [vmem:[%s832 + $0x48] sm:$0xe]
        %v3174 = vld [vmem:[%s832 + $0x4c] sm:$0xf]
        %v3175 = vld [vmem:[%s832 + $0x50] sm:$0x1]
        %v3176 = vld [vmem:[%s832 + $0x54] sm:$0xe]
        %v3177 = vld [vmem:[%s832 + $0x58] sm:$0xf]
        %v3178 = vld [vmem:[%s832 + $0x5c] sm:$0x1]
        %v3179 = vld [vmem:[%s832 + $0x60] sm:$0xe]
        %v3180 = vld [vmem:[%s832 + $0x64] sm:$0xf]
        %v3181 = vld [vmem:[%s832 + $0x68] sm:$0x1]
        %v3182 = vld [vmem:[%s832 + $0x6c] sm:$0xe]
        %v3183 = vld [vmem:[%s832 + $0x70] sm:$0xf]
        %v3184 = vld [vmem:[%s832 + $0x74] sm:$0x1]
        %v3185 = vld [vmem:[%s832 + $0x78] sm:$0xe]
        %v3186 = vld [vmem:[%s832 + $0x7c] sm:$0xf]
        %v3187 = vld [vmem:[%s832 + $0x80] sm:$0x1]
        %v3188 = vld [vmem:[%s832 + $0x84] sm:$0xe]
        %v3189 = vld [vmem:[%s832 + $0x88] sm:$0xf]
        %v3190 = vld [vmem:[%s832 + $0x8c] sm:$0x1]
        %v3191 = vld [vmem:[%s832 + $0x90] sm:$0xe]
        %v3192 = vld [vmem:[%s832 + $0x94] sm:$0xf]
        %v3193 = vld [vmem:[%s832 + $0x98] sm:$0x1]
        %v3194 = vld [vmem:[%s832 + $0x9c] sm:$0xe]
        %v3195 = vld [vmem:[%s832 + $0xa0] sm:$0xf]
        %v3196 = vld [vmem:[%s832 + $0xa4] sm:$0x1]
        %v3197 = vld [vmem:[%s832 + $0xa8] sm:$0xe]
        %v3198 = vld [vmem:[%s832 + $0xac] sm:$0xf]
        %v3199 = vld [vmem:[%s832 + $0xb0] sm:$0x1]
        %v3200 = vld [vmem:[%s832 + $0xb4] sm:$0xe]
        %v3201 = vld [vmem:[%s832 + $0xb8] sm:$0xf]
        %v3202 = vld [vmem:[%s832 + $0xbc] sm:$0x1]
        %v3251 = vrot.slane %v3155, 5
        %v3252 = vrot.slane %v3251, 4
        %v3253 = vrot.slane %v3156, 5
        %v3254 = vsel %vm2240, %v3252, %v3253
        %v3255 = vrot.slane %v3253, 4
        %v3256 = vrot.slane %v3157, 5
        %v3257 = vsel %vm2240, %v3255, %v3256
        %v3258 = vrot.slane %v3158, 5
        %v3259 = vrot.slane %v3258, 4
        %v3260 = vrot.slane %v3159, 5
        %v3261 = vsel %vm2240, %v3259, %v3260
        %v3262 = vrot.slane %v3260, 4
        %v3263 = vrot.slane %v3160, 5
        %v3264 = vsel %vm2240, %v3262, %v3263
        %v3265 = vrot.slane %v3161, 5
        %v3266 = vrot.slane %v3265, 4
        %v3267 = vrot.slane %v3162, 5
        %v3268 = vsel %vm2240, %v3266, %v3267
        %v3269 = vrot.slane %v3267, 4
        %v3270 = vrot.slane %v3163, 5
        %v3271 = vsel %vm2240, %v3269, %v3270
        %v3272 = vrot.slane %v3164, 5
        %v3273 = vrot.slane %v3272, 4
        %v3274 = vrot.slane %v3165, 5
        %v3275 = vsel %vm2240, %v3273, %v3274
        %v3276 = vrot.slane %v3274, 4
        %v3277 = vrot.slane %v3166, 5
        %v3278 = vsel %vm2240, %v3276, %v3277
        %v3279 = vrot.slane %v3167, 5
        %v3280 = vrot.slane %v3279, 4
        %v3281 = vrot.slane %v3168, 5
        %v3282 = vsel %vm2240, %v3280, %v3281
        %v3283 = vrot.slane %v3281, 4
        %v3284 = vrot.slane %v3169, 5
        %v3285 = vsel %vm2240, %v3283, %v3284
        %v3286 = vrot.slane %v3170, 5
        %v3287 = vrot.slane %v3286, 4
        %v3288 = vrot.slane %v3171, 5
        %v3289 = vsel %vm2240, %v3287, %v3288
        %v3290 = vrot.slane %v3288, 4
        %v3291 = vrot.slane %v3172, 5
        %v3292 = vsel %vm2240, %v3290, %v3291
        %v3293 = vrot.slane %v3173, 5
        %v3294 = vrot.slane %v3293, 4
        %v3295 = vrot.slane %v3174, 5
        %v3296 = vsel %vm2240, %v3294, %v3295
        %v3297 = vrot.slane %v3295, 4
        %v3298 = vrot.slane %v3175, 5
        %v3299 = vsel %vm2240, %v3297, %v3298
        %v3300 = vrot.slane %v3176, 5
        %v3301 = vrot.slane %v3300, 4
        %v3302 = vrot.slane %v3177, 5
        %v3303 = vsel %vm2240, %v3301, %v3302
        %v3304 = vrot.slane %v3302, 4
        %v3305 = vrot.slane %v3178, 5
        %v3306 = vsel %vm2240, %v3304, %v3305
        %v3307 = vrot.slane %v3179, 5
        %v3308 = vrot.slane %v3307, 4
        %v3309 = vrot.slane %v3180, 5
        %v3310 = vsel %vm2240, %v3308, %v3309
        %v3311 = vrot.slane %v3309, 4
        %v3312 = vrot.slane %v3181, 5
        %v3313 = vsel %vm2240, %v3311, %v3312
        %v3314 = vrot.slane %v3182, 5
        %v3315 = vrot.slane %v3314, 4
        %v3316 = vrot.slane %v3183, 5
        %v3317 = vsel %vm2240, %v3315, %v3316
        %v3318 = vrot.slane %v3316, 4
        %v3319 = vrot.slane %v3184, 5
        %v3320 = vsel %vm2240, %v3318, %v3319
        %v3321 = vrot.slane %v3185, 5
        %v3322 = vrot.slane %v3321, 4
        %v3323 = vrot.slane %v3186, 5
        %v3324 = vsel %vm2240, %v3322, %v3323
        %v3325 = vrot.slane %v3323, 4
        %v3326 = vrot.slane %v3187, 5
        %v3327 = vsel %vm2240, %v3325, %v3326
        %v3328 = vrot.slane %v3188, 5
        %v3329 = vrot.slane %v3328, 4
        %v3330 = vrot.slane %v3189, 5
        %v3331 = vsel %vm2240, %v3329, %v3330
        %v3332 = vrot.slane %v3330, 4
        %v3333 = vrot.slane %v3190, 5
        %v3334 = vsel %vm2240, %v3332, %v3333
        %v3335 = vrot.slane %v3191, 5
        %v3336 = vrot.slane %v3335, 4
        %v3337 = vrot.slane %v3192, 5
        %v3338 = vsel %vm2240, %v3336, %v3337
        %v3339 = vrot.slane %v3337, 4
        %v3340 = vrot.slane %v3193, 5
        %v3341 = vsel %vm2240, %v3339, %v3340
        %v3342 = vrot.slane %v3194, 5
        %v3343 = vrot.slane %v3342, 4
        %v3344 = vrot.slane %v3195, 5
        %v3345 = vsel %vm2240, %v3343, %v3344
        %v3346 = vrot.slane %v3344, 4
        %v3347 = vrot.slane %v3196, 5
        %v3348 = vsel %vm2240, %v3346, %v3347
        %v3349 = vrot.slane %v3197, 5
        %v3350 = vrot.slane %v3349, 4
        %v3351 = vrot.slane %v3198, 5
        %v3352 = vsel %vm2240, %v3350, %v3351
        %v3353 = vrot.slane %v3351, 4
        %v3354 = vrot.slane %v3199, 5
        %v3355 = vsel %vm2240, %v3353, %v3354
        %v3356 = vrot.slane %v3200, 5
        %v3357 = vrot.slane %v3356, 4
        %v3358 = vrot.slane %v3201, 5
        %v3359 = vsel %vm2240, %v3357, %v3358
        %v3360 = vrot.slane %v3358, 4
        %v3361 = vrot.slane %v3202, 5
        %v3362 = vsel %vm2240, %v3360, %v3361
        %v3363 = vunpack.c.l.b16 %v3254
        %v3364 = vunpack.c.l.b16 %v3257
        %v3365 = vunpack.c.l.b16 %v3261
        %v3366 = vunpack.c.l.b16 %v3264
        %v3367 = vunpack.c.l.b16 %v3268
        %v3368 = vunpack.c.l.b16 %v3271
        %v3369 = vunpack.c.l.b16 %v3275
        %v3370 = vunpack.c.l.b16 %v3278
        %v3371 = vunpack.c.l.b16 %v3282
        %v3372 = vunpack.c.l.b16 %v3285
        %v3373 = vunpack.c.l.b16 %v3289
        %v3374 = vunpack.c.l.b16 %v3292
        %v3375 = vunpack.c.l.b16 %v3296
        %v3376 = vunpack.c.l.b16 %v3299
        %v3377 = vunpack.c.l.b16 %v3303
        %v3378 = vunpack.c.l.b16 %v3306
        %v3379 = vunpack.c.l.b16 %v3310
        %v3380 = vunpack.c.l.b16 %v3313
        %v3381 = vunpack.c.l.b16 %v3317
        %v3382 = vunpack.c.l.b16 %v3320
        %v3383 = vunpack.c.l.b16 %v3324
        %v3384 = vunpack.c.l.b16 %v3327
        %v3385 = vunpack.c.l.b16 %v3331
        %v3386 = vunpack.c.l.b16 %v3334
        %v3387 = vunpack.c.l.b16 %v3338
        %v3388 = vunpack.c.l.b16 %v3341
        %v3389 = vunpack.c.l.b16 %v3345
        %v3390 = vunpack.c.l.b16 %v3348
        %v3391 = vunpack.c.l.b16 %v3352
        %v3392 = vunpack.c.l.b16 %v3355
        %v3393 = vunpack.c.l.b16 %v3359
        %v3394 = vunpack.c.l.b16 %v3362
        %v3395 = vpack.c.b16 %v3364, %v3363
        %v3396 = vpack.c.b16 %v3366, %v3365
        %v3397 = vpack.c.b16 %v3368, %v3367
        %v3398 = vpack.c.b16 %v3370, %v3369
        %v3399 = vpack.c.b16 %v3372, %v3371
        %v3400 = vpack.c.b16 %v3374, %v3373
        %v3401 = vpack.c.b16 %v3376, %v3375
        %v3402 = vpack.c.b16 %v3378, %v3377
        %v3403 = vpack.c.b16 %v3380, %v3379
        %v3404 = vpack.c.b16 %v3382, %v3381
        %v3405 = vpack.c.b16 %v3384, %v3383
        %v3406 = vpack.c.b16 %v3386, %v3385
        %v3407 = vpack.c.b16 %v3388, %v3387
        %v3408 = vpack.c.b16 %v3390, %v3389
        %v3409 = vpack.c.b16 %v3392, %v3391
        %v3410 = vpack.c.b16 %v3394, %v3393
        %3411 = vrot.lane.b32.xlu0 %v3395, 32
        %v3412 = vpop.permute.xlu0 %3411
        %3413 = vrot.lane.b32.xlu0 %v3396, 32
        %v3414 = vpop.permute.xlu0 %3413
        %3415 = vrot.lane.b32.xlu0 %v3397, 32
        %v3416 = vpop.permute.xlu0 %3415
        %3417 = vrot.lane.b32.xlu0 %v3398, 32
        %v3418 = vpop.permute.xlu0 %3417
        %3419 = vrot.lane.b32.xlu0 %v3399, 32
        %v3420 = vpop.permute.xlu0 %3419
        %3421 = vrot.lane.b32.xlu0 %v3400, 32
        %v3422 = vpop.permute.xlu0 %3421
        %3423 = vrot.lane.b32.xlu0 %v3401, 32
        %v3424 = vpop.permute.xlu0 %3423
        %3425 = vrot.lane.b32.xlu0 %v3402, 32
        %v3426 = vpop.permute.xlu0 %3425
        %3427 = vrot.lane.b32.xlu0 %v3403, 32
        %v3428 = vpop.permute.xlu0 %3427
        %3429 = vrot.lane.b32.xlu0 %v3404, 32
        %v3430 = vpop.permute.xlu0 %3429
        %3431 = vrot.lane.b32.xlu0 %v3405, 32
        %v3432 = vpop.permute.xlu0 %3431
        %3433 = vrot.lane.b32.xlu0 %v3406, 32
        %v3434 = vpop.permute.xlu0 %3433
        %3435 = vrot.lane.b32.xlu0 %v3407, 32
        %v3436 = vpop.permute.xlu0 %3435
        %3437 = vrot.lane.b32.xlu0 %v3408, 32
        %v3438 = vpop.permute.xlu0 %3437
        %3439 = vrot.lane.b32.xlu0 %v3409, 32
        %v3440 = vpop.permute.xlu0 %3439
        %3441 = vrot.lane.b32.xlu0 %v3410, 32
        %v3442 = vpop.permute.xlu0 %3441
        %3459 = vst.msk [vmem:[#allocation3 + $0x8] sm:$0xff] %vm2125, %v3412
        %3460 = vst.msk [vmem:[#allocation3 + $0x20] sm:$0xff] %vm2125, %v3414
        %3461 = vst.msk [vmem:[#allocation3 + $0x38] sm:$0xff] %vm2125, %v3416
        %3462 = vst.msk [vmem:[#allocation3 + $0x50] sm:$0xff] %vm2125, %v3418
        %3463 = vst.msk [vmem:[#allocation3 + $0x68] sm:$0xff] %vm2125, %v3420
        %3464 = vst.msk [vmem:[#allocation3 + $0x80] sm:$0xff] %vm2125, %v3422
        %3465 = vst.msk [vmem:[#allocation3 + $0x98] sm:$0xff] %vm2125, %v3424
        %3466 = vst.msk [vmem:[#allocation3 + $0xb0] sm:$0xff] %vm2125, %v3426
        %3467 = vst.msk [vmem:[#allocation3 + $0xc8] sm:$0xff] %vm2125, %v3428
        %3468 = vst.msk [vmem:[#allocation3 + $0xe0] sm:$0xff] %vm2125, %v3430
        %3469 = vst.msk [vmem:[#allocation3 + $0xf8] sm:$0xff] %vm2125, %v3432
        %3470 = vst.msk [vmem:[#allocation3 + $0x110] sm:$0xff] %vm2125, %v3434
        %3471 = vst.msk [vmem:[#allocation3 + $0x128] sm:$0xff] %vm2125, %v3436
        %3472 = vst.msk [vmem:[#allocation3 + $0x140] sm:$0xff] %vm2125, %v3438
        %3473 = vst.msk [vmem:[#allocation3 + $0x158] sm:$0xff] %vm2125, %v3440
        %3474 = vst.msk [vmem:[#allocation3 + $0x170] sm:$0xff] %vm2125, %v3442
        %s3475 = scalar_lea.vmem [#allocation2], 24
        %v3476 = vld [vmem:[%s3475] sm:$0xf]
        %v3477 = vld [vmem:[%s3475 + $0x4] sm:$0xf]
        %v3478 = vld [vmem:[%s3475 + $0xc] sm:$0xf]
        %v3479 = vld [vmem:[%s3475 + $0x10] sm:$0xf]
        %v3480 = vld [vmem:[%s3475 + $0x18] sm:$0xf]
        %v3481 = vld [vmem:[%s3475 + $0x1c] sm:$0xf]
        %v3482 = vld [vmem:[%s3475 + $0x24] sm:$0xf]
        %v3483 = vld [vmem:[%s3475 + $0x28] sm:$0xf]
        %v3484 = vld [vmem:[%s3475 + $0x30] sm:$0xf]
        %v3485 = vld [vmem:[%s3475 + $0x34] sm:$0xf]
        %v3486 = vld [vmem:[%s3475 + $0x3c] sm:$0xf]
        %v3487 = vld [vmem:[%s3475 + $0x40] sm:$0xf]
        %v3488 = vld [vmem:[%s3475 + $0x48] sm:$0xf]
        %v3489 = vld [vmem:[%s3475 + $0x4c] sm:$0xf]
        %v3490 = vld [vmem:[%s3475 + $0x54] sm:$0xf]
        %v3491 = vld [vmem:[%s3475 + $0x58] sm:$0xf]
        %v3492 = vld [vmem:[%s3475 + $0x60] sm:$0xf]
        %v3493 = vld [vmem:[%s3475 + $0x64] sm:$0xf]
        %v3494 = vld [vmem:[%s3475 + $0x6c] sm:$0xf]
        %v3495 = vld [vmem:[%s3475 + $0x70] sm:$0xf]
        %v3496 = vld [vmem:[%s3475 + $0x78] sm:$0xf]
        %v3497 = vld [vmem:[%s3475 + $0x7c] sm:$0xf]
        %v3498 = vld [vmem:[%s3475 + $0x84] sm:$0xf]
        %v3499 = vld [vmem:[%s3475 + $0x88] sm:$0xf]
        %v3500 = vld [vmem:[%s3475 + $0x90] sm:$0xf]
        %v3501 = vld [vmem:[%s3475 + $0x94] sm:$0xf]
        %v3502 = vld [vmem:[%s3475 + $0x9c] sm:$0xf]
        %v3503 = vld [vmem:[%s3475 + $0xa0] sm:$0xf]
        %v3504 = vld [vmem:[%s3475 + $0xa8] sm:$0xf]
        %v3505 = vld [vmem:[%s3475 + $0xac] sm:$0xf]
        %v3506 = vld [vmem:[%s3475 + $0xb4] sm:$0xf]
        %v3507 = vld [vmem:[%s3475 + $0xb8] sm:$0xf]
        %v3540 = vunpack.c.l.b16 %v3476
        %v3541 = vunpack.c.l.b16 %v3477
        %v3542 = vunpack.c.l.b16 %v3478
        %v3543 = vunpack.c.l.b16 %v3479
        %v3544 = vunpack.c.l.b16 %v3480
        %v3545 = vunpack.c.l.b16 %v3481
        %v3546 = vunpack.c.l.b16 %v3482
        %v3547 = vunpack.c.l.b16 %v3483
        %v3548 = vunpack.c.l.b16 %v3484
        %v3549 = vunpack.c.l.b16 %v3485
        %v3550 = vunpack.c.l.b16 %v3486
        %v3551 = vunpack.c.l.b16 %v3487
        %v3552 = vunpack.c.l.b16 %v3488
        %v3553 = vunpack.c.l.b16 %v3489
        %v3554 = vunpack.c.l.b16 %v3490
        %v3555 = vunpack.c.l.b16 %v3491
        %v3556 = vunpack.c.l.b16 %v3492
        %v3557 = vunpack.c.l.b16 %v3493
        %v3558 = vunpack.c.l.b16 %v3494
        %v3559 = vunpack.c.l.b16 %v3495
        %v3560 = vunpack.c.l.b16 %v3496
        %v3561 = vunpack.c.l.b16 %v3497
        %v3562 = vunpack.c.l.b16 %v3498
        %v3563 = vunpack.c.l.b16 %v3499
        %v3564 = vunpack.c.l.b16 %v3500
        %v3565 = vunpack.c.l.b16 %v3501
        %v3566 = vunpack.c.l.b16 %v3502
        %v3567 = vunpack.c.l.b16 %v3503
        %v3568 = vunpack.c.l.b16 %v3504
        %v3569 = vunpack.c.l.b16 %v3505
        %v3570 = vunpack.c.l.b16 %v3506
        %v3571 = vunpack.c.l.b16 %v3507
        %v3572 = vpack.c.b16 %v3541, %v3540
        %v3573 = vpack.c.b16 %v3543, %v3542
        %v3574 = vpack.c.b16 %v3545, %v3544
        %v3575 = vpack.c.b16 %v3547, %v3546
        %v3576 = vpack.c.b16 %v3549, %v3548
        %v3577 = vpack.c.b16 %v3551, %v3550
        %v3578 = vpack.c.b16 %v3553, %v3552
        %v3579 = vpack.c.b16 %v3555, %v3554
        %v3580 = vpack.c.b16 %v3557, %v3556
        %v3581 = vpack.c.b16 %v3559, %v3558
        %v3582 = vpack.c.b16 %v3561, %v3560
        %v3583 = vpack.c.b16 %v3563, %v3562
        %v3584 = vpack.c.b16 %v3565, %v3564
        %v3585 = vpack.c.b16 %v3567, %v3566
        %v3586 = vpack.c.b16 %v3569, %v3568
        %v3587 = vpack.c.b16 %v3571, %v3570
        %3588 = vrot.lane.b32.xlu0 %v3572, 64
        %v3589 = vpop.permute.xlu0 %3588
        %3590 = vrot.lane.b32.xlu0 %v3573, 64
        %v3591 = vpop.permute.xlu0 %3590
        %3592 = vrot.lane.b32.xlu0 %v3574, 64
        %v3593 = vpop.permute.xlu0 %3592
        %3594 = vrot.lane.b32.xlu0 %v3575, 64
        %v3595 = vpop.permute.xlu0 %3594
        %3596 = vrot.lane.b32.xlu0 %v3576, 64
        %v3597 = vpop.permute.xlu0 %3596
        %3598 = vrot.lane.b32.xlu0 %v3577, 64
        %v3599 = vpop.permute.xlu0 %3598
        %3600 = vrot.lane.b32.xlu0 %v3578, 64
        %v3601 = vpop.permute.xlu0 %3600
        %3602 = vrot.lane.b32.xlu0 %v3579, 64
        %v3603 = vpop.permute.xlu0 %3602
        %3604 = vrot.lane.b32.xlu0 %v3580, 64
        %v3605 = vpop.permute.xlu0 %3604
        %3606 = vrot.lane.b32.xlu0 %v3581, 64
        %v3607 = vpop.permute.xlu0 %3606
        %3608 = vrot.lane.b32.xlu0 %v3582, 64
        %v3609 = vpop.permute.xlu0 %3608
        %3610 = vrot.lane.b32.xlu0 %v3583, 64
        %v3611 = vpop.permute.xlu0 %3610
        %3612 = vrot.lane.b32.xlu0 %v3584, 64
        %v3613 = vpop.permute.xlu0 %3612
        %3614 = vrot.lane.b32.xlu0 %v3585, 64
        %v3615 = vpop.permute.xlu0 %3614
        %3616 = vrot.lane.b32.xlu0 %v3586, 64
        %v3617 = vpop.permute.xlu0 %3616
        %3618 = vrot.lane.b32.xlu0 %v3587, 64
        %v3619 = vpop.permute.xlu0 %3618
        %3636 = vst.msk [vmem:[#allocation3 + $0x8] sm:$0xff] %vm2449, %v3589
        %3637 = vst.msk [vmem:[#allocation3 + $0x20] sm:$0xff] %vm2449, %v3591
        %3638 = vst.msk [vmem:[#allocation3 + $0x38] sm:$0xff] %vm2449, %v3593
        %3639 = vst.msk [vmem:[#allocation3 + $0x50] sm:$0xff] %vm2449, %v3595
        %3640 = vst.msk [vmem:[#allocation3 + $0x68] sm:$0xff] %vm2449, %v3597
        %3641 = vst.msk [vmem:[#allocation3 + $0x80] sm:$0xff] %vm2449, %v3599
        %3642 = vst.msk [vmem:[#allocation3 + $0x98] sm:$0xff] %vm2449, %v3601
        %3643 = vst.msk [vmem:[#allocation3 + $0xb0] sm:$0xff] %vm2449, %v3603
        %3644 = vst.msk [vmem:[#allocation3 + $0xc8] sm:$0xff] %vm2449, %v3605
        %3645 = vst.msk [vmem:[#allocation3 + $0xe0] sm:$0xff] %vm2449, %v3607
        %3646 = vst.msk [vmem:[#allocation3 + $0xf8] sm:$0xff] %vm2449, %v3609
        %3647 = vst.msk [vmem:[#allocation3 + $0x110] sm:$0xff] %vm2449, %v3611
        %3648 = vst.msk [vmem:[#allocation3 + $0x128] sm:$0xff] %vm2449, %v3613
        %3649 = vst.msk [vmem:[#allocation3 + $0x140] sm:$0xff] %vm2449, %v3615
        %3650 = vst.msk [vmem:[#allocation3 + $0x158] sm:$0xff] %vm2449, %v3617
        %3651 = vst.msk [vmem:[#allocation3 + $0x170] sm:$0xff] %vm2449, %v3619
        %v3652 = vld [vmem:[%s3475] sm:$0xf]
        %v3653 = vld [vmem:[%s3475 + $0x4] sm:$0xf]
        %v3654 = vld [vmem:[%s3475 + $0x8] sm:$0x1]
        %v3655 = vld [vmem:[%s3475 + $0xc] sm:$0xf]
        %v3656 = vld [vmem:[%s3475 + $0x10] sm:$0xf]
        %v3657 = vld [vmem:[%s3475 + $0x14] sm:$0x1]
        %v3658 = vld [vmem:[%s3475 + $0x18] sm:$0xf]
        %v3659 = vld [vmem:[%s3475 + $0x1c] sm:$0xf]
        %v3660 = vld [vmem:[%s3475 + $0x20] sm:$0x1]
        %v3661 = vld [vmem:[%s3475 + $0x24] sm:$0xf]
        %v3662 = vld [vmem:[%s3475 + $0x28] sm:$0xf]
        %v3663 = vld [vmem:[%s3475 + $0x2c] sm:$0x1]
        %v3664 = vld [vmem:[%s3475 + $0x30] sm:$0xf]
        %v3665 = vld [vmem:[%s3475 + $0x34] sm:$0xf]
        %v3666 = vld [vmem:[%s3475 + $0x38] sm:$0x1]
        %v3667 = vld [vmem:[%s3475 + $0x3c] sm:$0xf]
        %v3668 = vld [vmem:[%s3475 + $0x40] sm:$0xf]
        %v3669 = vld [vmem:[%s3475 + $0x44] sm:$0x1]
        %v3670 = vld [vmem:[%s3475 + $0x48] sm:$0xf]
        %v3671 = vld [vmem:[%s3475 + $0x4c] sm:$0xf]
        %v3672 = vld [vmem:[%s3475 + $0x50] sm:$0x1]
        %v3673 = vld [vmem:[%s3475 + $0x54] sm:$0xf]
        %v3674 = vld [vmem:[%s3475 + $0x58] sm:$0xf]
        %v3675 = vld [vmem:[%s3475 + $0x5c] sm:$0x1]
        %v3676 = vld [vmem:[%s3475 + $0x60] sm:$0xf]
        %v3677 = vld [vmem:[%s3475 + $0x64] sm:$0xf]
        %v3678 = vld [vmem:[%s3475 + $0x68] sm:$0x1]
        %v3679 = vld [vmem:[%s3475 + $0x6c] sm:$0xf]
        %v3680 = vld [vmem:[%s3475 + $0x70] sm:$0xf]
        %v3681 = vld [vmem:[%s3475 + $0x74] sm:$0x1]
        %v3682 = vld [vmem:[%s3475 + $0x78] sm:$0xf]
        %v3683 = vld [vmem:[%s3475 + $0x7c] sm:$0xf]
        %v3684 = vld [vmem:[%s3475 + $0x80] sm:$0x1]
        %v3685 = vld [vmem:[%s3475 + $0x84] sm:$0xf]
        %v3686 = vld [vmem:[%s3475 + $0x88] sm:$0xf]
        %v3687 = vld [vmem:[%s3475 + $0x8c] sm:$0x1]
        %v3688 = vld [vmem:[%s3475 + $0x90] sm:$0xf]
        %v3689 = vld [vmem:[%s3475 + $0x94] sm:$0xf]
        %v3690 = vld [vmem:[%s3475 + $0x98] sm:$0x1]
        %v3691 = vld [vmem:[%s3475 + $0x9c] sm:$0xf]
        %v3692 = vld [vmem:[%s3475 + $0xa0] sm:$0xf]
        %v3693 = vld [vmem:[%s3475 + $0xa4] sm:$0x1]
        %v3694 = vld [vmem:[%s3475 + $0xa8] sm:$0xf]
        %v3695 = vld [vmem:[%s3475 + $0xac] sm:$0xf]
        %v3696 = vld [vmem:[%s3475 + $0xb0] sm:$0x1]
        %v3697 = vld [vmem:[%s3475 + $0xb4] sm:$0xf]
        %v3698 = vld [vmem:[%s3475 + $0xb8] sm:$0xf]
        %v3699 = vld [vmem:[%s3475 + $0xbc] sm:$0x1]
        %v3701 = vshrl.u32 %v3652, 16
        %v3703 = vrot.slane %v3701, 4
        %v3704 = vshll.u32 %v3652, 16
        %v3706 = vrot.slane %v3704, 5
        %v3707 = vor.u32 %v3703, %v3706
        %v3708 = vrot.slane %v3707, 4
        %v3710 = vshll.u32 %v3653, 16
        %v3712 = vrot.slane %v3710, 5
        %v3713 = vsel %vm1644, %v3708, %v3712
        %v3714 = vshrl.u32 %v3653, 16
        %v3716 = vrot.slane %v3714, 4
        %v3717 = vor.u32 %v3716, %v3712
        %v3718 = vrot.slane %v3717, 4
        %v3720 = vshll.u32 %v3654, 16
        %v3722 = vrot.slane %v3720, 5
        %v3723 = vsel %vm1644, %v3718, %v3722
        %v3725 = vshrl.u32 %v3655, 16
        %v3727 = vrot.slane %v3725, 4
        %v3728 = vshll.u32 %v3655, 16
        %v3730 = vrot.slane %v3728, 5
        %v3731 = vor.u32 %v3727, %v3730
        %v3732 = vrot.slane %v3731, 4
        %v3734 = vshll.u32 %v3656, 16
        %v3736 = vrot.slane %v3734, 5
        %v3737 = vsel %vm1644, %v3732, %v3736
        %v3738 = vshrl.u32 %v3656, 16
        %v3740 = vrot.slane %v3738, 4
        %v3741 = vor.u32 %v3740, %v3736
        %v3742 = vrot.slane %v3741, 4
        %v3744 = vshll.u32 %v3657, 16
        %v3746 = vrot.slane %v3744, 5
        %v3747 = vsel %vm1644, %v3742, %v3746
        %v3749 = vshrl.u32 %v3658, 16
        %v3751 = vrot.slane %v3749, 4
        %v3752 = vshll.u32 %v3658, 16
        %v3754 = vrot.slane %v3752, 5
        %v3755 = vor.u32 %v3751, %v3754
        %v3756 = vrot.slane %v3755, 4
        %v3758 = vshll.u32 %v3659, 16
        %v3760 = vrot.slane %v3758, 5
        %v3761 = vsel %vm1644, %v3756, %v3760
        %v3762 = vshrl.u32 %v3659, 16
        %v3764 = vrot.slane %v3762, 4
        %v3765 = vor.u32 %v3764, %v3760
        %v3766 = vrot.slane %v3765, 4
        %v3768 = vshll.u32 %v3660, 16
        %v3770 = vrot.slane %v3768, 5
        %v3771 = vsel %vm1644, %v3766, %v3770
        %v3773 = vshrl.u32 %v3661, 16
        %v3775 = vrot.slane %v3773, 4
        %v3776 = vshll.u32 %v3661, 16
        %v3778 = vrot.slane %v3776, 5
        %v3779 = vor.u32 %v3775, %v3778
        %v3780 = vrot.slane %v3779, 4
        %v3782 = vshll.u32 %v3662, 16
        %v3784 = vrot.slane %v3782, 5
        %v3785 = vsel %vm1644, %v3780, %v3784
        %v3786 = vshrl.u32 %v3662, 16
        %v3788 = vrot.slane %v3786, 4
        %v3789 = vor.u32 %v3788, %v3784
        %v3790 = vrot.slane %v3789, 4
        %v3792 = vshll.u32 %v3663, 16
        %v3794 = vrot.slane %v3792, 5
        %v3795 = vsel %vm1644, %v3790, %v3794
        %v3797 = vshrl.u32 %v3664, 16
        %v3799 = vrot.slane %v3797, 4
        %v3800 = vshll.u32 %v3664, 16
        %v3802 = vrot.slane %v3800, 5
        %v3803 = vor.u32 %v3799, %v3802
        %v3804 = vrot.slane %v3803, 4
        %v3806 = vshll.u32 %v3665, 16
        %v3808 = vrot.slane %v3806, 5
        %v3809 = vsel %vm1644, %v3804, %v3808
        %v3810 = vshrl.u32 %v3665, 16
        %v3812 = vrot.slane %v3810, 4
        %v3813 = vor.u32 %v3812, %v3808
        %v3814 = vrot.slane %v3813, 4
        %v3816 = vshll.u32 %v3666, 16
        %v3818 = vrot.slane %v3816, 5
        %v3819 = vsel %vm1644, %v3814, %v3818
        %v3821 = vshrl.u32 %v3667, 16
        %v3823 = vrot.slane %v3821, 4
        %v3824 = vshll.u32 %v3667, 16
        %v3826 = vrot.slane %v3824, 5
        %v3827 = vor.u32 %v3823, %v3826
        %v3828 = vrot.slane %v3827, 4
        %v3830 = vshll.u32 %v3668, 16
        %v3832 = vrot.slane %v3830, 5
        %v3833 = vsel %vm1644, %v3828, %v3832
        %v3834 = vshrl.u32 %v3668, 16
        %v3836 = vrot.slane %v3834, 4
        %v3837 = vor.u32 %v3836, %v3832
        %v3838 = vrot.slane %v3837, 4
        %v3840 = vshll.u32 %v3669, 16
        %v3842 = vrot.slane %v3840, 5
        %v3843 = vsel %vm1644, %v3838, %v3842
        %v3845 = vshrl.u32 %v3670, 16
        %v3847 = vrot.slane %v3845, 4
        %v3848 = vshll.u32 %v3670, 16
        %v3850 = vrot.slane %v3848, 5
        %v3851 = vor.u32 %v3847, %v3850
        %v3852 = vrot.slane %v3851, 4
        %v3854 = vshll.u32 %v3671, 16
        %v3856 = vrot.slane %v3854, 5
        %v3857 = vsel %vm1644, %v3852, %v3856
        %v3858 = vshrl.u32 %v3671, 16
        %v3860 = vrot.slane %v3858, 4
        %v3861 = vor.u32 %v3860, %v3856
        %v3862 = vrot.slane %v3861, 4
        %v3864 = vshll.u32 %v3672, 16
        %v3866 = vrot.slane %v3864, 5
        %v3867 = vsel %vm1644, %v3862, %v3866
        %v3869 = vshrl.u32 %v3673, 16
        %v3871 = vrot.slane %v3869, 4
        %v3872 = vshll.u32 %v3673, 16
        %v3874 = vrot.slane %v3872, 5
        %v3875 = vor.u32 %v3871, %v3874
        %v3876 = vrot.slane %v3875, 4
        %v3878 = vshll.u32 %v3674, 16
        %v3880 = vrot.slane %v3878, 5
        %v3881 = vsel %vm1644, %v3876, %v3880
        %v3882 = vshrl.u32 %v3674, 16
        %v3884 = vrot.slane %v3882, 4
        %v3885 = vor.u32 %v3884, %v3880
        %v3886 = vrot.slane %v3885, 4
        %v3888 = vshll.u32 %v3675, 16
        %v3890 = vrot.slane %v3888, 5
        %v3891 = vsel %vm1644, %v3886, %v3890
        %v3893 = vshrl.u32 %v3676, 16
        %v3895 = vrot.slane %v3893, 4
        %v3896 = vshll.u32 %v3676, 16
        %v3898 = vrot.slane %v3896, 5
        %v3899 = vor.u32 %v3895, %v3898
        %v3900 = vrot.slane %v3899, 4
        %v3902 = vshll.u32 %v3677, 16
        %v3904 = vrot.slane %v3902, 5
        %v3905 = vsel %vm1644, %v3900, %v3904
        %v3906 = vshrl.u32 %v3677, 16
        %v3908 = vrot.slane %v3906, 4
        %v3909 = vor.u32 %v3908, %v3904
        %v3910 = vrot.slane %v3909, 4
        %v3912 = vshll.u32 %v3678, 16
        %v3914 = vrot.slane %v3912, 5
        %v3915 = vsel %vm1644, %v3910, %v3914
        %v3917 = vshrl.u32 %v3679, 16
        %v3919 = vrot.slane %v3917, 4
        %v3920 = vshll.u32 %v3679, 16
        %v3922 = vrot.slane %v3920, 5
        %v3923 = vor.u32 %v3919, %v3922
        %v3924 = vrot.slane %v3923, 4
        %v3926 = vshll.u32 %v3680, 16
        %v3928 = vrot.slane %v3926, 5
        %v3929 = vsel %vm1644, %v3924, %v3928
        %v3930 = vshrl.u32 %v3680, 16
        %v3932 = vrot.slane %v3930, 4
        %v3933 = vor.u32 %v3932, %v3928
        %v3934 = vrot.slane %v3933, 4
        %v3936 = vshll.u32 %v3681, 16
        %v3938 = vrot.slane %v3936, 5
        %v3939 = vsel %vm1644, %v3934, %v3938
        %v3941 = vshrl.u32 %v3682, 16
        %v3943 = vrot.slane %v3941, 4
        %v3944 = vshll.u32 %v3682, 16
        %v3946 = vrot.slane %v3944, 5
        %v3947 = vor.u32 %v3943, %v3946
        %v3948 = vrot.slane %v3947, 4
        %v3950 = vshll.u32 %v3683, 16
        %v3952 = vrot.slane %v3950, 5
        %v3953 = vsel %vm1644, %v3948, %v3952
        %v3954 = vshrl.u32 %v3683, 16
        %v3956 = vrot.slane %v3954, 4
        %v3957 = vor.u32 %v3956, %v3952
        %v3958 = vrot.slane %v3957, 4
        %v3960 = vshll.u32 %v3684, 16
        %v3962 = vrot.slane %v3960, 5
        %v3963 = vsel %vm1644, %v3958, %v3962
        %v3965 = vshrl.u32 %v3685, 16
        %v3967 = vrot.slane %v3965, 4
        %v3968 = vshll.u32 %v3685, 16
        %v3970 = vrot.slane %v3968, 5
        %v3971 = vor.u32 %v3967, %v3970
        %v3972 = vrot.slane %v3971, 4
        %v3974 = vshll.u32 %v3686, 16
        %v3976 = vrot.slane %v3974, 5
        %v3977 = vsel %vm1644, %v3972, %v3976
        %v3978 = vshrl.u32 %v3686, 16
        %v3980 = vrot.slane %v3978, 4
        %v3981 = vor.u32 %v3980, %v3976
        %v3982 = vrot.slane %v3981, 4
        %v3984 = vshll.u32 %v3687, 16
        %v3986 = vrot.slane %v3984, 5
        %v3987 = vsel %vm1644, %v3982, %v3986
        %v3989 = vshrl.u32 %v3688, 16
        %v3991 = vrot.slane %v3989, 4
        %v3992 = vshll.u32 %v3688, 16
        %v3994 = vrot.slane %v3992, 5
        %v3995 = vor.u32 %v3991, %v3994
        %v3996 = vrot.slane %v3995, 4
        %v3998 = vshll.u32 %v3689, 16
        %v4000 = vrot.slane %v3998, 5
        %v4001 = vsel %vm1644, %v3996, %v4000
        %v4002 = vshrl.u32 %v3689, 16
        %v4004 = vrot.slane %v4002, 4
        %v4005 = vor.u32 %v4004, %v4000
        %v4006 = vrot.slane %v4005, 4
        %v4008 = vshll.u32 %v3690, 16
        %v4010 = vrot.slane %v4008, 5
        %v4011 = vsel %vm1644, %v4006, %v4010
        %v4013 = vshrl.u32 %v3691, 16
        %v4015 = vrot.slane %v4013, 4
        %v4016 = vshll.u32 %v3691, 16
        %v4018 = vrot.slane %v4016, 5
        %v4019 = vor.u32 %v4015, %v4018
        %v4020 = vrot.slane %v4019, 4
        %v4022 = vshll.u32 %v3692, 16
        %v4024 = vrot.slane %v4022, 5
        %v4025 = vsel %vm1644, %v4020, %v4024
        %v4026 = vshrl.u32 %v3692, 16
        %v4028 = vrot.slane %v4026, 4
        %v4029 = vor.u32 %v4028, %v4024
        %v4030 = vrot.slane %v4029, 4
        %v4032 = vshll.u32 %v3693, 16
        %v4034 = vrot.slane %v4032, 5
        %v4035 = vsel %vm1644, %v4030, %v4034
        %v4037 = vshrl.u32 %v3694, 16
        %v4039 = vrot.slane %v4037, 4
        %v4040 = vshll.u32 %v3694, 16
        %v4042 = vrot.slane %v4040, 5
        %v4043 = vor.u32 %v4039, %v4042
        %v4044 = vrot.slane %v4043, 4
        %v4046 = vshll.u32 %v3695, 16
        %v4048 = vrot.slane %v4046, 5
        %v4049 = vsel %vm1644, %v4044, %v4048
        %v4050 = vshrl.u32 %v3695, 16
        %v4052 = vrot.slane %v4050, 4
        %v4053 = vor.u32 %v4052, %v4048
        %v4054 = vrot.slane %v4053, 4
        %v4056 = vshll.u32 %v3696, 16
        %v4058 = vrot.slane %v4056, 5
        %v4059 = vsel %vm1644, %v4054, %v4058
        %v4061 = vshrl.u32 %v3697, 16
        %v4063 = vrot.slane %v4061, 4
        %v4064 = vshll.u32 %v3697, 16
        %v4066 = vrot.slane %v4064, 5
        %v4067 = vor.u32 %v4063, %v4066
        %v4068 = vrot.slane %v4067, 4
        %v4070 = vshll.u32 %v3698, 16
        %v4072 = vrot.slane %v4070, 5
        %v4073 = vsel %vm1644, %v4068, %v4072
        %v4074 = vshrl.u32 %v3698, 16
        %v4076 = vrot.slane %v4074, 4
        %v4077 = vor.u32 %v4076, %v4072
        %v4078 = vrot.slane %v4077, 4
        %v4080 = vshll.u32 %v3699, 16
        %v4082 = vrot.slane %v4080, 5
        %v4083 = vsel %vm1644, %v4078, %v4082
        %v4084 = vunpack.c.l.b16 %v3713
        %v4085 = vunpack.c.l.b16 %v3723
        %v4086 = vunpack.c.l.b16 %v3737
        %v4087 = vunpack.c.l.b16 %v3747
        %v4088 = vunpack.c.l.b16 %v3761
        %v4089 = vunpack.c.l.b16 %v3771
        %v4090 = vunpack.c.l.b16 %v3785
        %v4091 = vunpack.c.l.b16 %v3795
        %v4092 = vunpack.c.l.b16 %v3809
        %v4093 = vunpack.c.l.b16 %v3819
        %v4094 = vunpack.c.l.b16 %v3833
        %v4095 = vunpack.c.l.b16 %v3843
        %v4096 = vunpack.c.l.b16 %v3857
        %v4097 = vunpack.c.l.b16 %v3867
        %v4098 = vunpack.c.l.b16 %v3881
        %v4099 = vunpack.c.l.b16 %v3891
        %v4100 = vunpack.c.l.b16 %v3905
        %v4101 = vunpack.c.l.b16 %v3915
        %v4102 = vunpack.c.l.b16 %v3929
        %v4103 = vunpack.c.l.b16 %v3939
        %v4104 = vunpack.c.l.b16 %v3953
        %v4105 = vunpack.c.l.b16 %v3963
        %v4106 = vunpack.c.l.b16 %v3977
        %v4107 = vunpack.c.l.b16 %v3987
        %v4108 = vunpack.c.l.b16 %v4001
        %v4109 = vunpack.c.l.b16 %v4011
        %v4110 = vunpack.c.l.b16 %v4025
        %v4111 = vunpack.c.l.b16 %v4035
        %v4112 = vunpack.c.l.b16 %v4049
        %v4113 = vunpack.c.l.b16 %v4059
        %v4114 = vunpack.c.l.b16 %v4073
        %v4115 = vunpack.c.l.b16 %v4083
        %v4116 = vpack.c.b16 %v4085, %v4084
        %v4117 = vpack.c.b16 %v4087, %v4086
        %v4118 = vpack.c.b16 %v4089, %v4088
        %v4119 = vpack.c.b16 %v4091, %v4090
        %v4120 = vpack.c.b16 %v4093, %v4092
        %v4121 = vpack.c.b16 %v4095, %v4094
        %v4122 = vpack.c.b16 %v4097, %v4096
        %v4123 = vpack.c.b16 %v4099, %v4098
        %v4124 = vpack.c.b16 %v4101, %v4100
        %v4125 = vpack.c.b16 %v4103, %v4102
        %v4126 = vpack.c.b16 %v4105, %v4104
        %v4127 = vpack.c.b16 %v4107, %v4106
        %v4128 = vpack.c.b16 %v4109, %v4108
        %v4129 = vpack.c.b16 %v4111, %v4110
        %v4130 = vpack.c.b16 %v4113, %v4112
        %v4131 = vpack.c.b16 %v4115, %v4114
        %4132 = vrot.lane.b32.xlu0 %v4116, 96
        %v4133 = vpop.permute.xlu0 %4132
        %4134 = vrot.lane.b32.xlu0 %v4117, 96
        %v4135 = vpop.permute.xlu0 %4134
        %4136 = vrot.lane.b32.xlu0 %v4118, 96
        %v4137 = vpop.permute.xlu0 %4136
        %4138 = vrot.lane.b32.xlu0 %v4119, 96
        %v4139 = vpop.permute.xlu0 %4138
        %4140 = vrot.lane.b32.xlu0 %v4120, 96
        %v4141 = vpop.permute.xlu0 %4140
        %4142 = vrot.lane.b32.xlu0 %v4121, 96
        %v4143 = vpop.permute.xlu0 %4142
        %4144 = vrot.lane.b32.xlu0 %v4122, 96
        %v4145 = vpop.permute.xlu0 %4144
        %4146 = vrot.lane.b32.xlu0 %v4123, 96
        %v4147 = vpop.permute.xlu0 %4146
        %4148 = vrot.lane.b32.xlu0 %v4124, 96
        %v4149 = vpop.permute.xlu0 %4148
        %4150 = vrot.lane.b32.xlu0 %v4125, 96
        %v4151 = vpop.permute.xlu0 %4150
        %4152 = vrot.lane.b32.xlu0 %v4126, 96
        %v4153 = vpop.permute.xlu0 %4152
        %4154 = vrot.lane.b32.xlu0 %v4127, 96
        %v4155 = vpop.permute.xlu0 %4154
        %4156 = vrot.lane.b32.xlu0 %v4128, 96
        %v4157 = vpop.permute.xlu0 %4156
        %4158 = vrot.lane.b32.xlu0 %v4129, 96
        %v4159 = vpop.permute.xlu0 %4158
        %4160 = vrot.lane.b32.xlu0 %v4130, 96
        %v4161 = vpop.permute.xlu0 %4160
        %4162 = vrot.lane.b32.xlu0 %v4131, 96
        %v4163 = vpop.permute.xlu0 %4162
        %4180 = vst.msk [vmem:[#allocation3 + $0x8] sm:$0xff] %vm2626, %v4133
        %4181 = vst.msk [vmem:[#allocation3 + $0x20] sm:$0xff] %vm2626, %v4135
        %4182 = vst.msk [vmem:[#allocation3 + $0x38] sm:$0xff] %vm2626, %v4137
        %4183 = vst.msk [vmem:[#allocation3 + $0x50] sm:$0xff] %vm2626, %v4139
        %4184 = vst.msk [vmem:[#allocation3 + $0x68] sm:$0xff] %vm2626, %v4141
        %4185 = vst.msk [vmem:[#allocation3 + $0x80] sm:$0xff] %vm2626, %v4143
        %4186 = vst.msk [vmem:[#allocation3 + $0x98] sm:$0xff] %vm2626, %v4145
        %4187 = vst.msk [vmem:[#allocation3 + $0xb0] sm:$0xff] %vm2626, %v4147
        %4188 = vst.msk [vmem:[#allocation3 + $0xc8] sm:$0xff] %vm2626, %v4149
        %4189 = vst.msk [vmem:[#allocation3 + $0xe0] sm:$0xff] %vm2626, %v4151
        %4190 = vst.msk [vmem:[#allocation3 + $0xf8] sm:$0xff] %vm2626, %v4153
        %4191 = vst.msk [vmem:[#allocation3 + $0x110] sm:$0xff] %vm2626, %v4155
        %4192 = vst.msk [vmem:[#allocation3 + $0x128] sm:$0xff] %vm2626, %v4157
        %4193 = vst.msk [vmem:[#allocation3 + $0x140] sm:$0xff] %vm2626, %v4159
        %4194 = vst.msk [vmem:[#allocation3 + $0x158] sm:$0xff] %vm2626, %v4161
        %4195 = vst.msk [vmem:[#allocation3 + $0x170] sm:$0xff] %vm2626, %v4163
        %v4196 = vld [vmem:[%s3475] sm:$0xe]
        %v4197 = vld [vmem:[%s3475 + $0x4] sm:$0xf]
        %v4198 = vld [vmem:[%s3475 + $0x8] sm:$0x1]
        %v4199 = vld [vmem:[%s3475 + $0xc] sm:$0xe]
        %v4200 = vld [vmem:[%s3475 + $0x10] sm:$0xf]
        %v4201 = vld [vmem:[%s3475 + $0x14] sm:$0x1]
        %v4202 = vld [vmem:[%s3475 + $0x18] sm:$0xe]
        %v4203 = vld [vmem:[%s3475 + $0x1c] sm:$0xf]
        %v4204 = vld [vmem:[%s3475 + $0x20] sm:$0x1]
        %v4205 = vld [vmem:[%s3475 + $0x24] sm:$0xe]
        %v4206 = vld [vmem:[%s3475 + $0x28] sm:$0xf]
        %v4207 = vld [vmem:[%s3475 + $0x2c] sm:$0x1]
        %v4208 = vld [vmem:[%s3475 + $0x30] sm:$0xe]
        %v4209 = vld [vmem:[%s3475 + $0x34] sm:$0xf]
        %v4210 = vld [vmem:[%s3475 + $0x38] sm:$0x1]
        %v4211 = vld [vmem:[%s3475 + $0x3c] sm:$0xe]
        %v4212 = vld [vmem:[%s3475 + $0x40] sm:$0xf]
        %v4213 = vld [vmem:[%s3475 + $0x44] sm:$0x1]
        %v4214 = vld [vmem:[%s3475 + $0x48] sm:$0xe]
        %v4215 = vld [vmem:[%s3475 + $0x4c] sm:$0xf]
        %v4216 = vld [vmem:[%s3475 + $0x50] sm:$0x1]
        %v4217 = vld [vmem:[%s3475 + $0x54] sm:$0xe]
        %v4218 = vld [vmem:[%s3475 + $0x58] sm:$0xf]
        %v4219 = vld [vmem:[%s3475 + $0x5c] sm:$0x1]
        %v4220 = vld [vmem:[%s3475 + $0x60] sm:$0xe]
        %v4221 = vld [vmem:[%s3475 + $0x64] sm:$0xf]
        %v4222 = vld [vmem:[%s3475 + $0x68] sm:$0x1]
        %v4223 = vld [vmem:[%s3475 + $0x6c] sm:$0xe]
        %v4224 = vld [vmem:[%s3475 + $0x70] sm:$0xf]
        %v4225 = vld [vmem:[%s3475 + $0x74] sm:$0x1]
        %v4226 = vld [vmem:[%s3475 + $0x78] sm:$0xe]
        %v4227 = vld [vmem:[%s3475 + $0x7c] sm:$0xf]
        %v4228 = vld [vmem:[%s3475 + $0x80] sm:$0x1]
        %v4229 = vld [vmem:[%s3475 + $0x84] sm:$0xe]
        %v4230 = vld [vmem:[%s3475 + $0x88] sm:$0xf]
        %v4231 = vld [vmem:[%s3475 + $0x8c] sm:$0x1]
        %v4232 = vld [vmem:[%s3475 + $0x90] sm:$0xe]
        %v4233 = vld [vmem:[%s3475 + $0x94] sm:$0xf]
        %v4234 = vld [vmem:[%s3475 + $0x98] sm:$0x1]
        %v4235 = vld [vmem:[%s3475 + $0x9c] sm:$0xe]
        %v4236 = vld [vmem:[%s3475 + $0xa0] sm:$0xf]
        %v4237 = vld [vmem:[%s3475 + $0xa4] sm:$0x1]
        %v4238 = vld [vmem:[%s3475 + $0xa8] sm:$0xe]
        %v4239 = vld [vmem:[%s3475 + $0xac] sm:$0xf]
        %v4240 = vld [vmem:[%s3475 + $0xb0] sm:$0x1]
        %v4241 = vld [vmem:[%s3475 + $0xb4] sm:$0xe]
        %v4242 = vld [vmem:[%s3475 + $0xb8] sm:$0xf]
        %v4243 = vld [vmem:[%s3475 + $0xbc] sm:$0x1]
        %v4292 = vrot.slane %v4196, 5
        %v4293 = vrot.slane %v4292, 4
        %v4294 = vrot.slane %v4197, 5
        %v4295 = vsel %vm2240, %v4293, %v4294
        %v4296 = vrot.slane %v4294, 4
        %v4297 = vrot.slane %v4198, 5
        %v4298 = vsel %vm2240, %v4296, %v4297
        %v4299 = vrot.slane %v4199, 5
        %v4300 = vrot.slane %v4299, 4
        %v4301 = vrot.slane %v4200, 5
        %v4302 = vsel %vm2240, %v4300, %v4301
        %v4303 = vrot.slane %v4301, 4
        %v4304 = vrot.slane %v4201, 5
        %v4305 = vsel %vm2240, %v4303, %v4304
        %v4306 = vrot.slane %v4202, 5
        %v4307 = vrot.slane %v4306, 4
        %v4308 = vrot.slane %v4203, 5
        %v4309 = vsel %vm2240, %v4307, %v4308
        %v4310 = vrot.slane %v4308, 4
        %v4311 = vrot.slane %v4204, 5
        %v4312 = vsel %vm2240, %v4310, %v4311
        %v4313 = vrot.slane %v4205, 5
        %v4314 = vrot.slane %v4313, 4
        %v4315 = vrot.slane %v4206, 5
        %v4316 = vsel %vm2240, %v4314, %v4315
        %v4317 = vrot.slane %v4315, 4
        %v4318 = vrot.slane %v4207, 5
        %v4319 = vsel %vm2240, %v4317, %v4318
        %v4320 = vrot.slane %v4208, 5
        %v4321 = vrot.slane %v4320, 4
        %v4322 = vrot.slane %v4209, 5
        %v4323 = vsel %vm2240, %v4321, %v4322
        %v4324 = vrot.slane %v4322, 4
        %v4325 = vrot.slane %v4210, 5
        %v4326 = vsel %vm2240, %v4324, %v4325
        %v4327 = vrot.slane %v4211, 5
        %v4328 = vrot.slane %v4327, 4
        %v4329 = vrot.slane %v4212, 5
        %v4330 = vsel %vm2240, %v4328, %v4329
        %v4331 = vrot.slane %v4329, 4
        %v4332 = vrot.slane %v4213, 5
        %v4333 = vsel %vm2240, %v4331, %v4332
        %v4334 = vrot.slane %v4214, 5
        %v4335 = vrot.slane %v4334, 4
        %v4336 = vrot.slane %v4215, 5
        %v4337 = vsel %vm2240, %v4335, %v4336
        %v4338 = vrot.slane %v4336, 4
        %v4339 = vrot.slane %v4216, 5
        %v4340 = vsel %vm2240, %v4338, %v4339
        %v4341 = vrot.slane %v4217, 5
        %v4342 = vrot.slane %v4341, 4
        %v4343 = vrot.slane %v4218, 5
        %v4344 = vsel %vm2240, %v4342, %v4343
        %v4345 = vrot.slane %v4343, 4
        %v4346 = vrot.slane %v4219, 5
        %v4347 = vsel %vm2240, %v4345, %v4346
        %v4348 = vrot.slane %v4220, 5
        %v4349 = vrot.slane %v4348, 4
        %v4350 = vrot.slane %v4221, 5
        %v4351 = vsel %vm2240, %v4349, %v4350
        %v4352 = vrot.slane %v4350, 4
        %v4353 = vrot.slane %v4222, 5
        %v4354 = vsel %vm2240, %v4352, %v4353
        %v4355 = vrot.slane %v4223, 5
        %v4356 = vrot.slane %v4355, 4
        %v4357 = vrot.slane %v4224, 5
        %v4358 = vsel %vm2240, %v4356, %v4357
        %v4359 = vrot.slane %v4357, 4
        %v4360 = vrot.slane %v4225, 5
        %v4361 = vsel %vm2240, %v4359, %v4360
        %v4362 = vrot.slane %v4226, 5
        %v4363 = vrot.slane %v4362, 4
        %v4364 = vrot.slane %v4227, 5
        %v4365 = vsel %vm2240, %v4363, %v4364
        %v4366 = vrot.slane %v4364, 4
        %v4367 = vrot.slane %v4228, 5
        %v4368 = vsel %vm2240, %v4366, %v4367
        %v4369 = vrot.slane %v4229, 5
        %v4370 = vrot.slane %v4369, 4
        %v4371 = vrot.slane %v4230, 5
        %v4372 = vsel %vm2240, %v4370, %v4371
        %v4373 = vrot.slane %v4371, 4
        %v4374 = vrot.slane %v4231, 5
        %v4375 = vsel %vm2240, %v4373, %v4374
        %v4376 = vrot.slane %v4232, 5
        %v4377 = vrot.slane %v4376, 4
        %v4378 = vrot.slane %v4233, 5
        %v4379 = vsel %vm2240, %v4377, %v4378
        %v4380 = vrot.slane %v4378, 4
        %v4381 = vrot.slane %v4234, 5
        %v4382 = vsel %vm2240, %v4380, %v4381
        %v4383 = vrot.slane %v4235, 5
        %v4384 = vrot.slane %v4383, 4
        %v4385 = vrot.slane %v4236, 5
        %v4386 = vsel %vm2240, %v4384, %v4385
        %v4387 = vrot.slane %v4385, 4
        %v4388 = vrot.slane %v4237, 5
        %v4389 = vsel %vm2240, %v4387, %v4388
        %v4390 = vrot.slane %v4238, 5
        %v4391 = vrot.slane %v4390, 4
        %v4392 = vrot.slane %v4239, 5
        %v4393 = vsel %vm2240, %v4391, %v4392
        %v4394 = vrot.slane %v4392, 4
        %v4395 = vrot.slane %v4240, 5
        %v4396 = vsel %vm2240, %v4394, %v4395
        %v4397 = vrot.slane %v4241, 5
        %v4398 = vrot.slane %v4397, 4
        %v4399 = vrot.slane %v4242, 5
        %v4400 = vsel %vm2240, %v4398, %v4399
        %v4401 = vrot.slane %v4399, 4
        %v4402 = vrot.slane %v4243, 5
        %v4403 = vsel %vm2240, %v4401, %v4402
        %v4404 = vunpack.c.l.b16 %v4295
        %v4405 = vunpack.c.l.b16 %v4298
        %v4406 = vunpack.c.l.b16 %v4302
        %v4407 = vunpack.c.l.b16 %v4305
        %v4408 = vunpack.c.l.b16 %v4309
        %v4409 = vunpack.c.l.b16 %v4312
        %v4410 = vunpack.c.l.b16 %v4316
        %v4411 = vunpack.c.l.b16 %v4319
        %v4412 = vunpack.c.l.b16 %v4323
        %v4413 = vunpack.c.l.b16 %v4326
        %v4414 = vunpack.c.l.b16 %v4330
        %v4415 = vunpack.c.l.b16 %v4333
        %v4416 = vunpack.c.l.b16 %v4337
        %v4417 = vunpack.c.l.b16 %v4340
        %v4418 = vunpack.c.l.b16 %v4344
        %v4419 = vunpack.c.l.b16 %v4347
        %v4420 = vunpack.c.l.b16 %v4351
        %v4421 = vunpack.c.l.b16 %v4354
        %v4422 = vunpack.c.l.b16 %v4358
        %v4423 = vunpack.c.l.b16 %v4361
        %v4424 = vunpack.c.l.b16 %v4365
        %v4425 = vunpack.c.l.b16 %v4368
        %v4426 = vunpack.c.l.b16 %v4372
        %v4427 = vunpack.c.l.b16 %v4375
        %v4428 = vunpack.c.l.b16 %v4379
        %v4429 = vunpack.c.l.b16 %v4382
        %v4430 = vunpack.c.l.b16 %v4386
        %v4431 = vunpack.c.l.b16 %v4389
        %v4432 = vunpack.c.l.b16 %v4393
        %v4433 = vunpack.c.l.b16 %v4396
        %v4434 = vunpack.c.l.b16 %v4400
        %v4435 = vunpack.c.l.b16 %v4403
        %v4436 = vpack.c.b16 %v4405, %v4404
        %v4437 = vpack.c.b16 %v4407, %v4406
        %v4438 = vpack.c.b16 %v4409, %v4408
        %v4439 = vpack.c.b16 %v4411, %v4410
        %v4440 = vpack.c.b16 %v4413, %v4412
        %v4441 = vpack.c.b16 %v4415, %v4414
        %v4442 = vpack.c.b16 %v4417, %v4416
        %v4443 = vpack.c.b16 %v4419, %v4418
        %v4444 = vpack.c.b16 %v4421, %v4420
        %v4445 = vpack.c.b16 %v4423, %v4422
        %v4446 = vpack.c.b16 %v4425, %v4424
        %v4447 = vpack.c.b16 %v4427, %v4426
        %v4448 = vpack.c.b16 %v4429, %v4428
        %v4449 = vpack.c.b16 %v4431, %v4430
        %v4450 = vpack.c.b16 %v4433, %v4432
        %v4451 = vpack.c.b16 %v4435, %v4434
        %4468 = vst.msk [vmem:[#allocation3 + $0x10] sm:$0xff] %vm487, %v4436
        %4469 = vst.msk [vmem:[#allocation3 + $0x28] sm:$0xff] %vm487, %v4437
        %4470 = vst.msk [vmem:[#allocation3 + $0x40] sm:$0xff] %vm487, %v4438
        %4471 = vst.msk [vmem:[#allocation3 + $0x58] sm:$0xff] %vm487, %v4439
        %4472 = vst.msk [vmem:[#allocation3 + $0x70] sm:$0xff] %vm487, %v4440
        %4473 = vst.msk [vmem:[#allocation3 + $0x88] sm:$0xff] %vm487, %v4441
        %4474 = vst.msk [vmem:[#allocation3 + $0xa0] sm:$0xff] %vm487, %v4442
        %4475 = vst.msk [vmem:[#allocation3 + $0xb8] sm:$0xff] %vm487, %v4443
        %4476 = vst.msk [vmem:[#allocation3 + $0xd0] sm:$0xff] %vm487, %v4444
        %4477 = vst.msk [vmem:[#allocation3 + $0xe8] sm:$0xff] %vm487, %v4445
        %4478 = vst.msk [vmem:[#allocation3 + $0x100] sm:$0xff] %vm487, %v4446
        %4479 = vst.msk [vmem:[#allocation3 + $0x118] sm:$0xff] %vm487, %v4447
        %4480 = vst.msk [vmem:[#allocation3 + $0x130] sm:$0xff] %vm487, %v4448
        %4481 = vst.msk [vmem:[#allocation3 + $0x148] sm:$0xff] %vm487, %v4449
        %4482 = vst.msk [vmem:[#allocation3 + $0x160] sm:$0xff] %vm487, %v4450
        %4483 = vst.msk [vmem:[#allocation3 + $0x178] sm:$0xff] %vm487, %v4451
        %v4484 = vld [vmem:[#allocation3] sm:$0xff]
        %v4485 = vld [vmem:[#allocation3 + $0x8] sm:$0xff]
        %v4486 = vld [vmem:[#allocation3 + $0x10] sm:$0xff]
        %v4487 = vld [vmem:[#allocation3 + $0x18] sm:$0xff]
        %v4488 = vld [vmem:[#allocation3 + $0x20] sm:$0xff]
        %v4489 = vld [vmem:[#allocation3 + $0x28] sm:$0xff]
        %v4490 = vld [vmem:[#allocation3 + $0x30] sm:$0xff]
        %v4491 = vld [vmem:[#allocation3 + $0x38] sm:$0xff]
        %v4492 = vld [vmem:[#allocation3 + $0x40] sm:$0xff]
        %v4493 = vld [vmem:[#allocation3 + $0x48] sm:$0xff]
        %v4494 = vld [vmem:[#allocation3 + $0x50] sm:$0xff]
        %v4495 = vld [vmem:[#allocation3 + $0x58] sm:$0xff]
        %v4496 = vld [vmem:[#allocation3 + $0x60] sm:$0xff]
        %v4497 = vld [vmem:[#allocation3 + $0x68] sm:$0xff]
        %v4498 = vld [vmem:[#allocation3 + $0x70] sm:$0xff]
        %v4499 = vld [vmem:[#allocation3 + $0x78] sm:$0xff]
        %v4500 = vld [vmem:[#allocation3 + $0x80] sm:$0xff]
        %v4501 = vld [vmem:[#allocation3 + $0x88] sm:$0xff]
        %v4502 = vld [vmem:[#allocation3 + $0x90] sm:$0xff]
        %v4503 = vld [vmem:[#allocation3 + $0x98] sm:$0xff]
        %v4504 = vld [vmem:[#allocation3 + $0xa0] sm:$0xff]
        %v4505 = vld [vmem:[#allocation3 + $0xa8] sm:$0xff]
        %v4506 = vld [vmem:[#allocation3 + $0xb0] sm:$0xff]
        %v4507 = vld [vmem:[#allocation3 + $0xb8] sm:$0xff]
        %v4508 = vld [vmem:[#allocation3 + $0xc0] sm:$0xff]
        %v4509 = vld [vmem:[#allocation3 + $0xc8] sm:$0xff]
        %v4510 = vld [vmem:[#allocation3 + $0xd0] sm:$0xff]
        %v4511 = vld [vmem:[#allocation3 + $0xd8] sm:$0xff]
        %v4512 = vld [vmem:[#allocation3 + $0xe0] sm:$0xff]
        %v4513 = vld [vmem:[#allocation3 + $0xe8] sm:$0xff]
        %v4514 = vld [vmem:[#allocation3 + $0xf0] sm:$0xff]
        %v4515 = vld [vmem:[#allocation3 + $0xf8] sm:$0xff]
        %v4516 = vld [vmem:[#allocation3 + $0x100] sm:$0xff]
        %v4517 = vld [vmem:[#allocation3 + $0x108] sm:$0xff]
        %v4518 = vld [vmem:[#allocation3 + $0x110] sm:$0xff]
        %v4519 = vld [vmem:[#allocation3 + $0x118] sm:$0xff]
        %v4520 = vld [vmem:[#allocation3 + $0x120] sm:$0xff]
        %v4521 = vld [vmem:[#allocation3 + $0x128] sm:$0xff]
        %v4522 = vld [vmem:[#allocation3 + $0x130] sm:$0xff]
        %v4523 = vld [vmem:[#allocation3 + $0x138] sm:$0xff]
        %v4524 = vld [vmem:[#allocation3 + $0x140] sm:$0xff]
        %v4525 = vld [vmem:[#allocation3 + $0x148] sm:$0xff]
        %v4526 = vld [vmem:[#allocation3 + $0x150] sm:$0xff]
        %v4527 = vld [vmem:[#allocation3 + $0x158] sm:$0xff]
        %v4528 = vld [vmem:[#allocation3 + $0x160] sm:$0xff]
        %v4529 = vld [vmem:[#allocation3 + $0x168] sm:$0xff]
        %v4530 = vld [vmem:[#allocation3 + $0x170] sm:$0xff]
        %v4531 = vld [vmem:[#allocation3 + $0x178] sm:$0xff]
        %v4532 = vld [vmem:[%s4] sm:$0xf]
        %v4533 = vld [vmem:[%s4 + $0x4] sm:$0xf]
        %v4534 = vld [vmem:[%s4 + $0x8] sm:$0xf]
        %v4535 = vld [vmem:[%s4 + $0xc] sm:$0xf]
        %v4536 = vld [vmem:[%s4 + $0x10] sm:$0xf]
        %v4537 = vld [vmem:[%s4 + $0x14] sm:$0xf]
        %v4538 = vld [vmem:[%s4 + $0x18] sm:$0xf]
        %v4539 = vld [vmem:[%s4 + $0x1c] sm:$0xf]
        %v4540 = vld [vmem:[%s4 + $0x20] sm:$0xf]
        %v4541 = vld [vmem:[%s4 + $0x24] sm:$0xf]
        %v4542 = vld [vmem:[%s4 + $0x28] sm:$0xf]
        %v4543 = vld [vmem:[%s4 + $0x2c] sm:$0xf]
        %v4544 = vld [vmem:[%s4 + $0x30] sm:$0xf]
        %v4545 = vld [vmem:[%s4 + $0x34] sm:$0xf]
        %v4546 = vld [vmem:[%s4 + $0x38] sm:$0xf]
        %v4547 = vld [vmem:[%s4 + $0x3c] sm:$0xf]
        %v4548 = vld [vmem:[%s4 + $0x40] sm:$0xf]
        %v4549 = vld [vmem:[%s4 + $0x44] sm:$0xf]
        %v4550 = vld [vmem:[%s4 + $0x48] sm:$0xf]
        %v4551 = vld [vmem:[%s4 + $0x4c] sm:$0xf]
        %v4552 = vld [vmem:[%s4 + $0x50] sm:$0xf]
        %v4553 = vld [vmem:[%s4 + $0x54] sm:$0xf]
        %v4554 = vld [vmem:[%s4 + $0x58] sm:$0xf]
        %v4555 = vld [vmem:[%s4 + $0x5c] sm:$0xf]
        %v4556 = vld [vmem:[%s4 + $0x60] sm:$0xf]
        %v4557 = vld [vmem:[%s4 + $0x64] sm:$0xf]
        %v4558 = vld [vmem:[%s4 + $0x68] sm:$0xf]
        %v4559 = vld [vmem:[%s4 + $0x6c] sm:$0xf]
        %v4560 = vld [vmem:[%s4 + $0x70] sm:$0xf]
        %v4561 = vld [vmem:[%s4 + $0x74] sm:$0xf]
        %v4562 = vld [vmem:[%s4 + $0x78] sm:$0xf]
        %v4563 = vld [vmem:[%s4 + $0x7c] sm:$0xf]
        %v4564 = vld [vmem:[%s4 + $0x80] sm:$0xf]
        %v4565 = vld [vmem:[%s4 + $0x84] sm:$0xf]
        %v4566 = vld [vmem:[%s4 + $0x88] sm:$0xf]
        %v4567 = vld [vmem:[%s4 + $0x8c] sm:$0xf]
        %v4604 = vunpack.c.l.b16 %v4532
        %v4605 = vunpack.c.l.b16 %v4533
        %v4606 = vunpack.c.l.b16 %v4534
        %v4607 = vunpack.c.l.b16 %v4535
        %v4608 = vunpack.c.l.b16 %v4536
        %v4609 = vunpack.c.l.b16 %v4537
        %v4610 = vunpack.c.l.b16 %v4538
        %v4611 = vunpack.c.l.b16 %v4539
        %v4612 = vunpack.c.l.b16 %v4540
        %v4613 = vunpack.c.l.b16 %v4541
        %v4614 = vunpack.c.l.b16 %v4542
        %v4615 = vunpack.c.l.b16 %v4543
        %v4616 = vunpack.c.l.b16 %v4544
        %v4617 = vunpack.c.l.b16 %v4545
        %v4618 = vunpack.c.l.b16 %v4546
        %v4619 = vunpack.c.l.b16 %v4547
        %v4620 = vunpack.c.l.b16 %v4548
        %v4621 = vunpack.c.l.b16 %v4549
        %v4622 = vunpack.c.l.b16 %v4550
        %v4623 = vunpack.c.l.b16 %v4551
        %v4624 = vunpack.c.l.b16 %v4552
        %v4625 = vunpack.c.l.b16 %v4553
        %v4626 = vunpack.c.l.b16 %v4554
        %v4627 = vunpack.c.l.b16 %v4555
        %v4628 = vunpack.c.l.b16 %v4556
        %v4629 = vunpack.c.l.b16 %v4557
        %v4630 = vunpack.c.l.b16 %v4558
        %v4631 = vunpack.c.l.b16 %v4559
        %v4632 = vunpack.c.l.b16 %v4560
        %v4633 = vunpack.c.l.b16 %v4561
        %v4634 = vunpack.c.l.b16 %v4562
        %v4635 = vunpack.c.l.b16 %v4563
        %v4636 = vunpack.c.l.b16 %v4564
        %v4637 = vunpack.c.l.b16 %v4565
        %v4638 = vunpack.c.l.b16 %v4566
        %v4639 = vunpack.c.l.b16 %v4567
        %v4640 = vpack.c.b16 %v4605, %v4604
        %v4641 = vpack.c.b16 %v4607, %v4606
        %v4642 = vpack.c.b16 %v4609, %v4608
        %v4643 = vpack.c.b16 %v4611, %v4610
        %v4644 = vpack.c.b16 %v4613, %v4612
        %v4645 = vpack.c.b16 %v4615, %v4614
        %v4646 = vpack.c.b16 %v4617, %v4616
        %v4647 = vpack.c.b16 %v4619, %v4618
        %v4648 = vpack.c.b16 %v4621, %v4620
        %v4649 = vpack.c.b16 %v4623, %v4622
        %v4650 = vpack.c.b16 %v4625, %v4624
        %v4651 = vpack.c.b16 %v4627, %v4626
        %v4652 = vpack.c.b16 %v4629, %v4628
        %v4653 = vpack.c.b16 %v4631, %v4630
        %v4654 = vpack.c.b16 %v4633, %v4632
        %v4655 = vpack.c.b16 %v4635, %v4634
        %v4656 = vpack.c.b16 %v4637, %v4636
        %v4657 = vpack.c.b16 %v4639, %v4638
        %v4677 = vsel %vm487, %v4486, 0
        %v4680 = vsel %vm487, %v4489, 0
        %v4683 = vsel %vm487, %v4492, 0
        %v4686 = vsel %vm487, %v4495, 0
        %v4689 = vsel %vm487, %v4498, 0
        %v4692 = vsel %vm487, %v4501, 0
        %v4695 = vsel %vm487, %v4504, 0
        %v4698 = vsel %vm487, %v4507, 0
        %v4701 = vsel %vm487, %v4510, 0
        %v4704 = vsel %vm487, %v4513, 0
        %v4707 = vsel %vm487, %v4516, 0
        %v4710 = vsel %vm487, %v4519, 0
        %v4713 = vsel %vm487, %v4522, 0
        %v4716 = vsel %vm487, %v4525, 0
        %v4719 = vsel %vm487, %v4528, 0
        %v4722 = vsel %vm487, %v4531, 0
        %4724 = vmatprep.subr.bf16.mxu0 0
        %4725 = vmatpush1.bf16.msra.mxu0 %v4640
        %4726 = vmatprep.subr.bf16.mxu0 0
        %4727 = vmatpush1.bf16.msra.mxu0 %v4641
        %4728 = vmatprep.subr.bf16.mxu0 0
        %4729 = vmatpush1.bf16.msra.mxu0 %v4642
        %4730 = vmatprep.subr.bf16.mxu0 0
        %4731 = vmatpush1.bf16.msra.mxu0 %v4643
        %4732 = vmatprep.subr.bf16.mxu0 0
        %4733 = vmatpush1.bf16.msra.mxu0 %v4644
        %4734 = vmatprep.subr.bf16.mxu0 0
        %4735 = vmatpush1.bf16.msra.mxu0 %v4645
        %4736 = vmatprep.subr.bf16.mxu0 0
        %4737 = vmatpush1.bf16.msra.mxu0 %v4646
        %4738 = vmatprep.subr.bf16.mxu0 0
        %4739 = vmatpush1.bf16.msra.mxu0 %v4647
        %4740 = vmatprep.subr.bf16.mxu0 0
        %4741 = vmatpush1.bf16.msra.mxu0 %v4648
        %4742 = vmatprep.subr.bf16.mxu0 0
        %4743 = vmatpush1.bf16.msra.mxu0 %v4649
        %4744 = vmatprep.subr.bf16.mxu0 0
        %4745 = vmatpush1.bf16.msra.mxu0 %v4650
        %4746 = vmatprep.subr.bf16.mxu0 0
        %4747 = vmatpush1.bf16.msra.mxu0 %v4651
        %4748 = vmatprep.subr.bf16.mxu0 0
        %4749 = vmatpush1.bf16.msra.mxu0 %v4652
        %4750 = vmatprep.subr.bf16.mxu0 0
        %4751 = vmatpush1.bf16.msra.mxu0 %v4653
        %4752 = vmatprep.subr.bf16.mxu0 0
        %4753 = vmatpush1.bf16.msra.mxu0 %v4654
        %4754 = vmatprep.subr.bf16.mxu0 0
        %4755 = vmatpush1.bf16.msra.mxu0 %v4655
        %4756 = vmatprep.mubr.bf16.mxu0 %v4485
        %4757 = vmatmul.mubr.bf16.gmra.mrb[0].mxu0 %v4484
        %v4758 = vpop.f32.mrb[0].mxu0
        %v4759 = vadd.f32 0.0, %v4758
        %v4760 = vpop.f32.mrb[0].mxu0
        %v4761 = vpop.f32.mrb[0].mxu0
        %v4762 = vadd.f32 0.0, %v4761
        %v4763 = vpop.f32.mrb[0].mxu0
        %4764 = vmatprep.mubr.bf16.mxu0 %v4488
        %4765 = vmatmul.mubr.bf16.gmra.mrb[0].mxu0 %v4487
        %v4766 = vpop.f32.mrb[0].mxu0
        %v4767 = vadd.f32 0.0, %v4766
        %v4768 = vpop.f32.mrb[0].mxu0
        %v4769 = vpop.f32.mrb[0].mxu0
        %v4770 = vadd.f32 0.0, %v4769
        %v4771 = vpop.f32.mrb[0].mxu0
        %4772 = vmatprep.mubr.bf16.mxu0 %v4491
        %4773 = vmatmul.mubr.bf16.gmra.mrb[0].mxu0 %v4490
        %v4774 = vpop.f32.mrb[0].mxu0
        %v4775 = vadd.f32 0.0, %v4774
        %v4776 = vpop.f32.mrb[0].mxu0
        %v4777 = vpop.f32.mrb[0].mxu0
        %v4778 = vadd.f32 0.0, %v4777
        %v4779 = vpop.f32.mrb[0].mxu0
        %4780 = vmatprep.mubr.bf16.mxu0 %v4494
        %4781 = vmatmul.mubr.bf16.gmra.mrb[0].mxu0 %v4493
        %v4782 = vpop.f32.mrb[0].mxu0
        %v4783 = vadd.f32 0.0, %v4782
        %v4784 = vpop.f32.mrb[0].mxu0
        %v4785 = vpop.f32.mrb[0].mxu0
        %v4786 = vadd.f32 0.0, %v4785
        %v4787 = vpop.f32.mrb[0].mxu0
        %4788 = vmatprep.mubr.bf16.mxu0 %v4497
        %4789 = vmatmul.mubr.bf16.gmra.mrb[0].mxu0 %v4496
        %v4790 = vpop.f32.mrb[0].mxu0
        %v4791 = vadd.f32 0.0, %v4790
        %v4792 = vpop.f32.mrb[0].mxu0
        %v4793 = vpop.f32.mrb[0].mxu0
        %v4794 = vadd.f32 0.0, %v4793
        %v4795 = vpop.f32.mrb[0].mxu0
        %4796 = vmatprep.mubr.bf16.mxu0 %v4500
        %4797 = vmatmul.mubr.bf16.gmra.mrb[0].mxu0 %v4499
        %v4798 = vpop.f32.mrb[0].mxu0
        %v4799 = vadd.f32 0.0, %v4798
        %v4800 = vpop.f32.mrb[0].mxu0
        %v4801 = vpop.f32.mrb[0].mxu0
        %v4802 = vadd.f32 0.0, %v4801
        %v4803 = vpop.f32.mrb[0].mxu0
        %4804 = vmatprep.mubr.bf16.mxu0 %v4503
        %4805 = vmatmul.mubr.bf16.gmra.mrb[0].mxu0 %v4502
        %v4806 = vpop.f32.mrb[0].mxu0
        %v4807 = vadd.f32 0.0, %v4806
        %v4808 = vpop.f32.mrb[0].mxu0
        %v4809 = vpop.f32.mrb[0].mxu0
        %v4810 = vadd.f32 0.0, %v4809
        %v4811 = vpop.f32.mrb[0].mxu0
        %4812 = vmatprep.mubr.bf16.mxu0 %v4506
        %4813 = vmatmul.mubr.bf16.gmra.mrb[0].mxu0 %v4505
        %v4814 = vpop.f32.mrb[0].mxu0
        %v4815 = vadd.f32 0.0, %v4814
        %v4816 = vpop.f32.mrb[0].mxu0
        %v4817 = vpop.f32.mrb[0].mxu0
        %v4818 = vadd.f32 0.0, %v4817
        %v4819 = vpop.f32.mrb[0].mxu0
        %4820 = vmatprep.mubr.bf16.mxu0 %v4509
        %4821 = vmatmul.mubr.bf16.gmra.mrb[0].mxu0 %v4508
        %v4822 = vpop.f32.mrb[0].mxu0
        %v4823 = vadd.f32 0.0, %v4822
        %v4824 = vpop.f32.mrb[0].mxu0
        %v4825 = vpop.f32.mrb[0].mxu0
        %v4826 = vadd.f32 0.0, %v4825
        %v4827 = vpop.f32.mrb[0].mxu0
        %4828 = vmatprep.mubr.bf16.mxu0 %v4512
        %4829 = vmatmul.mubr.bf16.gmra.mrb[0].mxu0 %v4511
        %v4830 = vpop.f32.mrb[0].mxu0
        %v4831 = vadd.f32 0.0, %v4830
        %v4832 = vpop.f32.mrb[0].mxu0
        %v4833 = vpop.f32.mrb[0].mxu0
        %v4834 = vadd.f32 0.0, %v4833
        %v4835 = vpop.f32.mrb[0].mxu0
        %4836 = vmatprep.mubr.bf16.mxu0 %v4515
        %4837 = vmatmul.mubr.bf16.gmra.mrb[0].mxu0 %v4514
        %v4838 = vpop.f32.mrb[0].mxu0
        %v4839 = vadd.f32 0.0, %v4838
        %v4840 = vpop.f32.mrb[0].mxu0
        %v4841 = vpop.f32.mrb[0].mxu0
        %v4842 = vadd.f32 0.0, %v4841
        %v4843 = vpop.f32.mrb[0].mxu0
        %4844 = vmatprep.mubr.bf16.mxu0 %v4518
        %4845 = vmatmul.mubr.bf16.gmra.mrb[0].mxu0 %v4517
        %v4846 = vpop.f32.mrb[0].mxu0
        %v4847 = vadd.f32 0.0, %v4846
        %v4848 = vpop.f32.mrb[0].mxu0
        %v4849 = vpop.f32.mrb[0].mxu0
        %v4850 = vadd.f32 0.0, %v4849
        %v4851 = vpop.f32.mrb[0].mxu0
        %4852 = vmatprep.mubr.bf16.mxu0 %v4521
        %4853 = vmatmul.mubr.bf16.gmra.mrb[0].mxu0 %v4520
        %v4854 = vpop.f32.mrb[0].mxu0
        %v4855 = vadd.f32 0.0, %v4854
        %v4856 = vpop.f32.mrb[0].mxu0
        %v4857 = vpop.f32.mrb[0].mxu0
        %v4858 = vadd.f32 0.0, %v4857
        %v4859 = vpop.f32.mrb[0].mxu0
        %4860 = vmatprep.mubr.bf16.mxu0 %v4524
        %4861 = vmatmul.mubr.bf16.gmra.mrb[0].mxu0 %v4523
        %v4862 = vpop.f32.mrb[0].mxu0
        %v4863 = vadd.f32 0.0, %v4862
        %v4864 = vpop.f32.mrb[0].mxu0
        %v4865 = vpop.f32.mrb[0].mxu0
        %v4866 = vadd.f32 0.0, %v4865
        %v4867 = vpop.f32.mrb[0].mxu0
        %4868 = vmatprep.mubr.bf16.mxu0 %v4527
        %4869 = vmatmul.mubr.bf16.gmra.mrb[0].mxu0 %v4526
        %v4870 = vpop.f32.mrb[0].mxu0
        %v4871 = vadd.f32 0.0, %v4870
        %v4872 = vpop.f32.mrb[0].mxu0
        %v4873 = vpop.f32.mrb[0].mxu0
        %v4874 = vadd.f32 0.0, %v4873
        %v4875 = vpop.f32.mrb[0].mxu0
        %4876 = vmatprep.mubr.bf16.mxu0 %v4530
        %4877 = vmatmul.mubr.bf16.gmra.mrb[0].mxu0 %v4529
        %v4878 = vpop.f32.mrb[0].mxu0
        %v4879 = vadd.f32 0.0, %v4878
        %v4880 = vpop.f32.mrb[0].mxu0
        %v4881 = vpop.f32.mrb[0].mxu0
        %v4882 = vadd.f32 0.0, %v4881
        %v4883 = vpop.f32.mrb[0].mxu0
        %4884 = vdwg.mxu0
        %4885 = vmatprep.subr.bf16.mxu0 0
        %4886 = vmatpush1.bf16.msra.mxu0 %v4656
        %4887 = vmatprep.subr.bf16.mxu0 0
        %4888 = vmatpush1.bf16.msra.mxu0 %v4657
        %4889 = vmatprep.subr.bf16.mxu0 0
        %4890 = vmatpush1.bf16.msra.mxu0 0
        %4891 = vmatprep.subr.bf16.mxu0 0
        %4892 = vmatpush1.bf16.msra.mxu0 0
        %4893 = vmatprep.subr.bf16.mxu0 0
        %4894 = vmatpush1.bf16.msra.mxu0 0
        %4895 = vmatprep.subr.bf16.mxu0 0
        %4896 = vmatpush1.bf16.msra.mxu0 0
        %4897 = vmatprep.subr.bf16.mxu0 0
        %4898 = vmatpush1.bf16.msra.mxu0 0
        %4899 = vmatprep.subr.bf16.mxu0 0
        %4900 = vmatpush1.bf16.msra.mxu0 0
        %4901 = vmatprep.subr.bf16.mxu0 0
        %4902 = vmatpush1.bf16.msra.mxu0 0
        %4903 = vmatprep.subr.bf16.mxu0 0
        %4904 = vmatpush1.bf16.msra.mxu0 0
        %4905 = vmatprep.subr.bf16.mxu0 0
        %4906 = vmatpush1.bf16.msra.mxu0 0
        %4907 = vmatprep.subr.bf16.mxu0 0
        %4908 = vmatpush1.bf16.msra.mxu0 0
        %4909 = vmatprep.subr.bf16.mxu0 0
        %4910 = vmatpush1.bf16.msra.mxu0 0
        %4911 = vmatprep.subr.bf16.mxu0 0
        %4912 = vmatpush1.bf16.msra.mxu0 0
        %4913 = vmatprep.subr.bf16.mxu0 0
        %4914 = vmatpush1.bf16.msra.mxu0 0
        %4915 = vmatprep.subr.bf16.mxu0 0
        %4916 = vmatpush1.bf16.msra.mxu0 0
        %4917 = vmatprep.mubr.bf16.mxu0 0
        %4918 = vmatmul.mubr.bf16.gmra.mrb[0].mxu0 %v4677
        %v4919 = vpop.f32.mrb[0].mxu0
        %v4920 = vadd.f32 %v4759, %v4919
        %v4921 = vpop.f32.mrb[0].mxu0
        %v4922 = vpop.f32.mrb[0].mxu0
        %v4923 = vadd.f32 %v4762, %v4922
        %v4924 = vpop.f32.mrb[0].mxu0
        %4925 = vmatprep.mubr.bf16.mxu0 0
        %4926 = vmatmul.mubr.bf16.gmra.mrb[0].mxu0 %v4680
        %v4927 = vpop.f32.mrb[0].mxu0
        %v4928 = vadd.f32 %v4767, %v4927
        %v4929 = vpop.f32.mrb[0].mxu0
        %v4930 = vpop.f32.mrb[0].mxu0
        %v4931 = vadd.f32 %v4770, %v4930
        %v4932 = vpop.f32.mrb[0].mxu0
        %4933 = vmatprep.mubr.bf16.mxu0 0
        %4934 = vmatmul.mubr.bf16.gmra.mrb[0].mxu0 %v4683
        %v4935 = vpop.f32.mrb[0].mxu0
        %v4936 = vadd.f32 %v4775, %v4935
        %v4937 = vpop.f32.mrb[0].mxu0
        %v4938 = vpop.f32.mrb[0].mxu0
        %v4939 = vadd.f32 %v4778, %v4938
        %v4940 = vpop.f32.mrb[0].mxu0
        %4941 = vmatprep.mubr.bf16.mxu0 0
        %4942 = vmatmul.mubr.bf16.gmra.mrb[0].mxu0 %v4686
        %v4943 = vpop.f32.mrb[0].mxu0
        %v4944 = vadd.f32 %v4783, %v4943
        %v4945 = vpop.f32.mrb[0].mxu0
        %v4946 = vpop.f32.mrb[0].mxu0
        %v4947 = vadd.f32 %v4786, %v4946
        %v4948 = vpop.f32.mrb[0].mxu0
        %4949 = vmatprep.mubr.bf16.mxu0 0
        %4950 = vmatmul.mubr.bf16.gmra.mrb[0].mxu0 %v4689
        %v4951 = vpop.f32.mrb[0].mxu0
        %v4952 = vadd.f32 %v4791, %v4951
        %v4953 = vpop.f32.mrb[0].mxu0
        %v4954 = vpop.f32.mrb[0].mxu0
        %v4955 = vadd.f32 %v4794, %v4954
        %v4956 = vpop.f32.mrb[0].mxu0
        %4957 = vmatprep.mubr.bf16.mxu0 0
        %4958 = vmatmul.mubr.bf16.gmra.mrb[0].mxu0 %v4692
        %v4959 = vpop.f32.mrb[0].mxu0
        %v4960 = vadd.f32 %v4799, %v4959
        %v4961 = vpop.f32.mrb[0].mxu0
        %v4962 = vpop.f32.mrb[0].mxu0
        %v4963 = vadd.f32 %v4802, %v4962
        %v4964 = vpop.f32.mrb[0].mxu0
        %4965 = vmatprep.mubr.bf16.mxu0 0
        %4966 = vmatmul.mubr.bf16.gmra.mrb[0].mxu0 %v4695
        %v4967 = vpop.f32.mrb[0].mxu0
        %v4968 = vadd.f32 %v4807, %v4967
        %v4969 = vpop.f32.mrb[0].mxu0
        %v4970 = vpop.f32.mrb[0].mxu0
        %v4971 = vadd.f32 %v4810, %v4970
        %v4972 = vpop.f32.mrb[0].mxu0
        %4973 = vmatprep.mubr.bf16.mxu0 0
        %4974 = vmatmul.mubr.bf16.gmra.mrb[0].mxu0 %v4698
        %v4975 = vpop.f32.mrb[0].mxu0
        %v4976 = vadd.f32 %v4815, %v4975
        %v4977 = vpop.f32.mrb[0].mxu0
        %v4978 = vpop.f32.mrb[0].mxu0
        %v4979 = vadd.f32 %v4818, %v4978
        %v4980 = vpop.f32.mrb[0].mxu0
        %4981 = vmatprep.mubr.bf16.mxu0 0
        %4982 = vmatmul.mubr.bf16.gmra.mrb[0].mxu0 %v4701
        %v4983 = vpop.f32.mrb[0].mxu0
        %v4984 = vadd.f32 %v4823, %v4983
        %v4985 = vpop.f32.mrb[0].mxu0
        %v4986 = vpop.f32.mrb[0].mxu0
        %v4987 = vadd.f32 %v4826, %v4986
        %v4988 = vpop.f32.mrb[0].mxu0
        %4989 = vmatprep.mubr.bf16.mxu0 0
        %4990 = vmatmul.mubr.bf16.gmra.mrb[0].mxu0 %v4704
        %v4991 = vpop.f32.mrb[0].mxu0
        %v4992 = vadd.f32 %v4831, %v4991
        %v4993 = vpop.f32.mrb[0].mxu0
        %v4994 = vpop.f32.mrb[0].mxu0
        %v4995 = vadd.f32 %v4834, %v4994
        %v4996 = vpop.f32.mrb[0].mxu0
        %4997 = vmatprep.mubr.bf16.mxu0 0
        %4998 = vmatmul.mubr.bf16.gmra.mrb[0].mxu0 %v4707
        %v4999 = vpop.f32.mrb[0].mxu0
        %v5000 = vadd.f32 %v4839, %v4999
        %v5001 = vpop.f32.mrb[0].mxu0
        %v5002 = vpop.f32.mrb[0].mxu0
        %v5003 = vadd.f32 %v4842, %v5002
        %v5004 = vpop.f32.mrb[0].mxu0
        %5005 = vmatprep.mubr.bf16.mxu0 0
        %5006 = vmatmul.mubr.bf16.gmra.mrb[0].mxu0 %v4710
        %v5007 = vpop.f32.mrb[0].mxu0
        %v5008 = vadd.f32 %v4847, %v5007
        %v5009 = vpop.f32.mrb[0].mxu0
        %v5010 = vpop.f32.mrb[0].mxu0
        %v5011 = vadd.f32 %v4850, %v5010
        %v5012 = vpop.f32.mrb[0].mxu0
        %5013 = vmatprep.mubr.bf16.mxu0 0
        %5014 = vmatmul.mubr.bf16.gmra.mrb[0].mxu0 %v4713
        %v5015 = vpop.f32.mrb[0].mxu0
        %v5016 = vadd.f32 %v4855, %v5015
        %v5017 = vpop.f32.mrb[0].mxu0
        %v5018 = vpop.f32.mrb[0].mxu0
        %v5019 = vadd.f32 %v4858, %v5018
        %v5020 = vpop.f32.mrb[0].mxu0
        %5021 = vmatprep.mubr.bf16.mxu0 0
        %5022 = vmatmul.mubr.bf16.gmra.mrb[0].mxu0 %v4716
        %v5023 = vpop.f32.mrb[0].mxu0
        %v5024 = vadd.f32 %v4863, %v5023
        %v5025 = vpop.f32.mrb[0].mxu0
        %v5026 = vpop.f32.mrb[0].mxu0
        %v5027 = vadd.f32 %v4866, %v5026
        %v5028 = vpop.f32.mrb[0].mxu0
        %5029 = vmatprep.mubr.bf16.mxu0 0
        %5030 = vmatmul.mubr.bf16.gmra.mrb[0].mxu0 %v4719
        %v5031 = vpop.f32.mrb[0].mxu0
        %v5032 = vadd.f32 %v4871, %v5031
        %v5033 = vpop.f32.mrb[0].mxu0
        %v5034 = vpop.f32.mrb[0].mxu0
        %v5035 = vadd.f32 %v4874, %v5034
        %v5036 = vpop.f32.mrb[0].mxu0
        %5037 = vmatprep.mubr.bf16.mxu0 0
        %5038 = vmatmul.mubr.bf16.gmra.mrb[0].mxu0 %v4722
        %v5039 = vpop.f32.mrb[0].mxu0
        %v5040 = vadd.f32 %v4879, %v5039
        %v5041 = vpop.f32.mrb[0].mxu0
        %v5042 = vpop.f32.mrb[0].mxu0
        %v5043 = vadd.f32 %v4882, %v5042
        %v5044 = vpop.f32.mrb[0].mxu0
        %5045 = vdwg.mxu0
        %v5046 = vld [vmem:[%s5] sm:$0x1]
        %v5048 = vlaneseq
        %v5049 = vshrl.u32 %v5048, 7
        %v5050 = vsub.s32 0, %v5049
        %v5051 = vrot.slane %v5046, %v5050
        %v5053 = vmul.f32 %v4920, %v5051
        %v5054 = vmul.f32 %v4923, %v5051
        %v5055 = vmul.f32 %v4928, %v5051
        %v5056 = vmul.f32 %v4931, %v5051
        %v5057 = vmul.f32 %v4936, %v5051
        %v5058 = vmul.f32 %v4939, %v5051
        %v5059 = vmul.f32 %v4944, %v5051
        %v5060 = vmul.f32 %v4947, %v5051
        %v5061 = vmul.f32 %v4952, %v5051
        %v5062 = vmul.f32 %v4955, %v5051
        %v5063 = vmul.f32 %v4960, %v5051
        %v5064 = vmul.f32 %v4963, %v5051
        %v5065 = vmul.f32 %v4968, %v5051
        %v5066 = vmul.f32 %v4971, %v5051
        %v5067 = vmul.f32 %v4976, %v5051
        %v5068 = vmul.f32 %v4979, %v5051
        %v5069 = vmul.f32 %v4984, %v5051
        %v5070 = vmul.f32 %v4987, %v5051
        %v5071 = vmul.f32 %v4992, %v5051
        %v5072 = vmul.f32 %v4995, %v5051
        %v5073 = vmul.f32 %v5000, %v5051
        %v5074 = vmul.f32 %v5003, %v5051
        %v5075 = vmul.f32 %v5008, %v5051
        %v5076 = vmul.f32 %v5011, %v5051
        %v5077 = vmul.f32 %v5016, %v5051
        %v5078 = vmul.f32 %v5019, %v5051
        %v5079 = vmul.f32 %v5024, %v5051
        %v5080 = vmul.f32 %v5027, %v5051
        %v5081 = vmul.f32 %v5032, %v5051
        %v5082 = vmul.f32 %v5035, %v5051
        %v5083 = vmul.f32 %v5040, %v5051
        %v5084 = vmul.f32 %v5043, %v5051
        %v5085 = vld [vmem:[%s6] sm:$0x1]
        %v5087 = vlaneseq
        %v5088 = vshrl.u32 %v5087, 7
        %v5089 = vsub.s32 0, %v5088
        %v5090 = vrot.slane %v5085, %v5089
        %v5092 = vadd.f32 %v5053, %v5090
        %v5093 = vadd.f32 %v5054, %v5090
        %v5094 = vadd.f32 %v5055, %v5090
        %v5095 = vadd.f32 %v5056, %v5090
        %v5096 = vadd.f32 %v5057, %v5090
        %v5097 = vadd.f32 %v5058, %v5090
        %v5098 = vadd.f32 %v5059, %v5090
        %v5099 = vadd.f32 %v5060, %v5090
        %v5100 = vadd.f32 %v5061, %v5090
        %v5101 = vadd.f32 %v5062, %v5090
        %v5102 = vadd.f32 %v5063, %v5090
        %v5103 = vadd.f32 %v5064, %v5090
        %v5104 = vadd.f32 %v5065, %v5090
        %v5105 = vadd.f32 %v5066, %v5090
        %v5106 = vadd.f32 %v5067, %v5090
        %v5107 = vadd.f32 %v5068, %v5090
        %v5108 = vadd.f32 %v5069, %v5090
        %v5109 = vadd.f32 %v5070, %v5090
        %v5110 = vadd.f32 %v5071, %v5090
        %v5111 = vadd.f32 %v5072, %v5090
        %v5112 = vadd.f32 %v5073, %v5090
        %v5113 = vadd.f32 %v5074, %v5090
        %v5114 = vadd.f32 %v5075, %v5090
        %v5115 = vadd.f32 %v5076, %v5090
        %v5116 = vadd.f32 %v5077, %v5090
        %v5117 = vadd.f32 %v5078, %v5090
        %v5118 = vadd.f32 %v5079, %v5090
        %v5119 = vadd.f32 %v5080, %v5090
        %v5120 = vadd.f32 %v5081, %v5090
        %v5121 = vadd.f32 %v5082, %v5090
        %v5122 = vadd.f32 %v5083, %v5090
        %v5123 = vadd.f32 %v5084, %v5090
        %v5124 = vmax.f32 %v5092, 0.0
        %v5125 = vmax.f32 %v5093, 0.0
        %v5126 = vmax.f32 %v5094, 0.0
        %v5127 = vmax.f32 %v5095, 0.0
        %v5128 = vmax.f32 %v5096, 0.0
        %v5129 = vmax.f32 %v5097, 0.0
        %v5130 = vmax.f32 %v5098, 0.0
        %v5131 = vmax.f32 %v5099, 0.0
        %v5132 = vmax.f32 %v5100, 0.0
        %v5133 = vmax.f32 %v5101, 0.0
        %v5134 = vmax.f32 %v5102, 0.0
        %v5135 = vmax.f32 %v5103, 0.0
        %v5136 = vmax.f32 %v5104, 0.0
        %v5137 = vmax.f32 %v5105, 0.0
        %v5138 = vmax.f32 %v5106, 0.0
        %v5139 = vmax.f32 %v5107, 0.0
        %v5140 = vmax.f32 %v5108, 0.0
        %v5141 = vmax.f32 %v5109, 0.0
        %v5142 = vmax.f32 %v5110, 0.0
        %v5143 = vmax.f32 %v5111, 0.0
        %v5144 = vmax.f32 %v5112, 0.0
        %v5145 = vmax.f32 %v5113, 0.0
        %v5146 = vmax.f32 %v5114, 0.0
        %v5147 = vmax.f32 %v5115, 0.0
        %v5148 = vmax.f32 %v5116, 0.0
        %v5149 = vmax.f32 %v5117, 0.0
        %v5150 = vmax.f32 %v5118, 0.0
        %v5151 = vmax.f32 %v5119, 0.0
        %v5152 = vmax.f32 %v5120, 0.0
        %v5153 = vmax.f32 %v5121, 0.0
        %v5154 = vmax.f32 %v5122, 0.0
        %v5155 = vmax.f32 %v5123, 0.0
        %v5156 = vpack.c.bf16 %v5125, %v5124
        %v5157 = vpack.c.bf16 %v5127, %v5126
        %v5158 = vpack.c.bf16 %v5129, %v5128
        %v5159 = vpack.c.bf16 %v5131, %v5130
        %v5160 = vpack.c.bf16 %v5133, %v5132
        %v5161 = vpack.c.bf16 %v5135, %v5134
        %v5162 = vpack.c.bf16 %v5137, %v5136
        %v5163 = vpack.c.bf16 %v5139, %v5138
        %v5164 = vpack.c.bf16 %v5141, %v5140
        %v5165 = vpack.c.bf16 %v5143, %v5142
        %v5166 = vpack.c.bf16 %v5145, %v5144
        %v5167 = vpack.c.bf16 %v5147, %v5146
        %v5168 = vpack.c.bf16 %v5149, %v5148
        %v5169 = vpack.c.bf16 %v5151, %v5150
        %v5170 = vpack.c.bf16 %v5153, %v5152
        %v5171 = vpack.c.bf16 %v5155, %v5154
        %v5172 = vld [vmem:[%s7] sm:$0xf]
        %v5173 = vld [vmem:[%s7 + $0x4] sm:$0xf]
        %v5174 = vld [vmem:[%s7 + $0x8] sm:$0xf]
        %v5175 = vld [vmem:[%s7 + $0xc] sm:$0xf]
        %v5180 = vunpack.c.l.b16 %v5172
        %v5181 = vunpack.c.l.b16 %v5173
        %v5182 = vunpack.c.l.b16 %v5174
        %v5183 = vunpack.c.l.b16 %v5175
        %v5184 = vpack.c.b16 %v5181, %v5180
        %v5185 = vpack.c.b16 %v5183, %v5182
        %v5189 = vsel %vm487, %v5156, 0
        %v5192 = vsel %vm487, %v5157, 0
        %v5195 = vsel %vm487, %v5158, 0
        %v5198 = vsel %vm487, %v5159, 0
        %v5201 = vsel %vm487, %v5160, 0
        %v5204 = vsel %vm487, %v5161, 0
        %v5207 = vsel %vm487, %v5162, 0
        %v5210 = vsel %vm487, %v5163, 0
        %v5213 = vsel %vm487, %v5164, 0
        %v5216 = vsel %vm487, %v5165, 0
        %v5219 = vsel %vm487, %v5166, 0
        %v5222 = vsel %vm487, %v5167, 0
        %v5225 = vsel %vm487, %v5168, 0
        %v5228 = vsel %vm487, %v5169, 0
        %v5231 = vsel %vm487, %v5170, 0
        %v5234 = vsel %vm487, %v5171, 0
        %5236 = vmatprep.subr.bf16.mxu0 0
        %5237 = vmatpush1.bf16.msra.mxu0 %v5184
        %5238 = vmatprep.subr.bf16.mxu0 0
        %5239 = vmatpush1.bf16.msra.mxu0 %v5185
        %5240 = vmatprep.subr.bf16.mxu0 0
        %5241 = vmatpush1.bf16.msra.mxu0 0
        %5242 = vmatprep.subr.bf16.mxu0 0
        %5243 = vmatpush1.bf16.msra.mxu0 0
        %5244 = vmatprep.subr.bf16.mxu0 0
        %5245 = vmatpush1.bf16.msra.mxu0 0
        %5246 = vmatprep.subr.bf16.mxu0 0
        %5247 = vmatpush1.bf16.msra.mxu0 0
        %5248 = vmatprep.subr.bf16.mxu0 0
        %5249 = vmatpush1.bf16.msra.mxu0 0
        %5250 = vmatprep.subr.bf16.mxu0 0
        %5251 = vmatpush1.bf16.msra.mxu0 0
        %5252 = vmatprep.subr.bf16.mxu0 0
        %5253 = vmatpush1.bf16.msra.mxu0 0
        %5254 = vmatprep.subr.bf16.mxu0 0
        %5255 = vmatpush1.bf16.msra.mxu0 0
        %5256 = vmatprep.subr.bf16.mxu0 0
        %5257 = vmatpush1.bf16.msra.mxu0 0
        %5258 = vmatprep.subr.bf16.mxu0 0
        %5259 = vmatpush1.bf16.msra.mxu0 0
        %5260 = vmatprep.subr.bf16.mxu0 0
        %5261 = vmatpush1.bf16.msra.mxu0 0
        %5262 = vmatprep.subr.bf16.mxu0 0
        %5263 = vmatpush1.bf16.msra.mxu0 0
        %5264 = vmatprep.subr.bf16.mxu0 0
        %5265 = vmatpush1.bf16.msra.mxu0 0
        %5266 = vmatprep.subr.bf16.mxu0 0
        %5267 = vmatpush1.bf16.msra.mxu0 0
        %5268 = vmatprep.mubr.bf16.mxu0 0
        %5269 = vmatmul.mubr.bf16.gmra.mrb[0].mxu0 %v5189
        %v5270 = vpop.f32.mrb[0].mxu0
        %v5271 = vadd.f32 0.0, %v5270
        %v5272 = vpop.f32.mrb[0].mxu0
        %v5273 = vpop.f32.mrb[0].mxu0
        %v5274 = vadd.f32 0.0, %v5273
        %v5275 = vpop.f32.mrb[0].mxu0
        %5276 = vmatprep.mubr.bf16.mxu0 0
        %5277 = vmatmul.mubr.bf16.gmra.mrb[0].mxu0 %v5192
        %v5278 = vpop.f32.mrb[0].mxu0
        %v5279 = vadd.f32 0.0, %v5278
        %v5280 = vpop.f32.mrb[0].mxu0
        %v5281 = vpop.f32.mrb[0].mxu0
        %v5282 = vadd.f32 0.0, %v5281
        %v5283 = vpop.f32.mrb[0].mxu0
        %5284 = vmatprep.mubr.bf16.mxu0 0
        %5285 = vmatmul.mubr.bf16.gmra.mrb[0].mxu0 %v5195
        %v5286 = vpop.f32.mrb[0].mxu0
        %v5287 = vadd.f32 0.0, %v5286
        %v5288 = vpop.f32.mrb[0].mxu0
        %v5289 = vpop.f32.mrb[0].mxu0
        %v5290 = vadd.f32 0.0, %v5289
        %v5291 = vpop.f32.mrb[0].mxu0
        %5292 = vmatprep.mubr.bf16.mxu0 0
        %5293 = vmatmul.mubr.bf16.gmra.mrb[0].mxu0 %v5198
        %v5294 = vpop.f32.mrb[0].mxu0
        %v5295 = vadd.f32 0.0, %v5294
        %v5296 = vpop.f32.mrb[0].mxu0
        %v5297 = vpop.f32.mrb[0].mxu0
        %v5298 = vadd.f32 0.0, %v5297
        %v5299 = vpop.f32.mrb[0].mxu0
        %5300 = vmatprep.mubr.bf16.mxu0 0
        %5301 = vmatmul.mubr.bf16.gmra.mrb[0].mxu0 %v5201
        %v5302 = vpop.f32.mrb[0].mxu0
        %v5303 = vadd.f32 0.0, %v5302
        %v5304 = vpop.f32.mrb[0].mxu0
        %v5305 = vpop.f32.mrb[0].mxu0
        %v5306 = vadd.f32 0.0, %v5305
        %v5307 = vpop.f32.mrb[0].mxu0
        %5308 = vmatprep.mubr.bf16.mxu0 0
        %5309 = vmatmul.mubr.bf16.gmra.mrb[0].mxu0 %v5204
        %v5310 = vpop.f32.mrb[0].mxu0
        %v5311 = vadd.f32 0.0, %v5310
        %v5312 = vpop.f32.mrb[0].mxu0
        %v5313 = vpop.f32.mrb[0].mxu0
        %v5314 = vadd.f32 0.0, %v5313
        %v5315 = vpop.f32.mrb[0].mxu0
        %5316 = vmatprep.mubr.bf16.mxu0 0
        %5317 = vmatmul.mubr.bf16.gmra.mrb[0].mxu0 %v5207
        %v5318 = vpop.f32.mrb[0].mxu0
        %v5319 = vadd.f32 0.0, %v5318
        %v5320 = vpop.f32.mrb[0].mxu0
        %v5321 = vpop.f32.mrb[0].mxu0
        %v5322 = vadd.f32 0.0, %v5321
        %v5323 = vpop.f32.mrb[0].mxu0
        %5324 = vmatprep.mubr.bf16.mxu0 0
        %5325 = vmatmul.mubr.bf16.gmra.mrb[0].mxu0 %v5210
        %v5326 = vpop.f32.mrb[0].mxu0
        %v5327 = vadd.f32 0.0, %v5326
        %v5328 = vpop.f32.mrb[0].mxu0
        %v5329 = vpop.f32.mrb[0].mxu0
        %v5330 = vadd.f32 0.0, %v5329
        %v5331 = vpop.f32.mrb[0].mxu0
        %5332 = vmatprep.mubr.bf16.mxu0 0
        %5333 = vmatmul.mubr.bf16.gmra.mrb[0].mxu0 %v5213
        %v5334 = vpop.f32.mrb[0].mxu0
        %v5335 = vadd.f32 0.0, %v5334
        %v5336 = vpop.f32.mrb[0].mxu0
        %v5337 = vpop.f32.mrb[0].mxu0
        %v5338 = vadd.f32 0.0, %v5337
        %v5339 = vpop.f32.mrb[0].mxu0
        %5340 = vmatprep.mubr.bf16.mxu0 0
        %5341 = vmatmul.mubr.bf16.gmra.mrb[0].mxu0 %v5216
        %v5342 = vpop.f32.mrb[0].mxu0
        %v5343 = vadd.f32 0.0, %v5342
        %v5344 = vpop.f32.mrb[0].mxu0
        %v5345 = vpop.f32.mrb[0].mxu0
        %v5346 = vadd.f32 0.0, %v5345
        %v5347 = vpop.f32.mrb[0].mxu0
        %5348 = vmatprep.mubr.bf16.mxu0 0
        %5349 = vmatmul.mubr.bf16.gmra.mrb[0].mxu0 %v5219
        %v5350 = vpop.f32.mrb[0].mxu0
        %v5351 = vadd.f32 0.0, %v5350
        %v5352 = vpop.f32.mrb[0].mxu0
        %v5353 = vpop.f32.mrb[0].mxu0
        %v5354 = vadd.f32 0.0, %v5353
        %v5355 = vpop.f32.mrb[0].mxu0
        %5356 = vmatprep.mubr.bf16.mxu0 0
        %5357 = vmatmul.mubr.bf16.gmra.mrb[0].mxu0 %v5222
        %v5358 = vpop.f32.mrb[0].mxu0
        %v5359 = vadd.f32 0.0, %v5358
        %v5360 = vpop.f32.mrb[0].mxu0
        %v5361 = vpop.f32.mrb[0].mxu0
        %v5362 = vadd.f32 0.0, %v5361
        %v5363 = vpop.f32.mrb[0].mxu0
        %5364 = vmatprep.mubr.bf16.mxu0 0
        %5365 = vmatmul.mubr.bf16.gmra.mrb[0].mxu0 %v5225
        %v5366 = vpop.f32.mrb[0].mxu0
        %v5367 = vadd.f32 0.0, %v5366
        %v5368 = vpop.f32.mrb[0].mxu0
        %v5369 = vpop.f32.mrb[0].mxu0
        %v5370 = vadd.f32 0.0, %v5369
        %v5371 = vpop.f32.mrb[0].mxu0
        %5372 = vmatprep.mubr.bf16.mxu0 0
        %5373 = vmatmul.mubr.bf16.gmra.mrb[0].mxu0 %v5228
        %v5374 = vpop.f32.mrb[0].mxu0
        %v5375 = vadd.f32 0.0, %v5374
        %v5376 = vpop.f32.mrb[0].mxu0
        %v5377 = vpop.f32.mrb[0].mxu0
        %v5378 = vadd.f32 0.0, %v5377
        %v5379 = vpop.f32.mrb[0].mxu0
        %5380 = vmatprep.mubr.bf16.mxu0 0
        %5381 = vmatmul.mubr.bf16.gmra.mrb[0].mxu0 %v5231
        %v5382 = vpop.f32.mrb[0].mxu0
        %v5383 = vadd.f32 0.0, %v5382
        %v5384 = vpop.f32.mrb[0].mxu0
        %v5385 = vpop.f32.mrb[0].mxu0
        %v5386 = vadd.f32 0.0, %v5385
        %v5387 = vpop.f32.mrb[0].mxu0
        %5388 = vmatprep.mubr.bf16.mxu0 0
        %5389 = vmatmul.mubr.bf16.gmra.mrb[0].mxu0 %v5234
        %v5390 = vpop.f32.mrb[0].mxu0
        %v5391 = vadd.f32 0.0, %v5390
        %v5392 = vpop.f32.mrb[0].mxu0
        %v5393 = vpop.f32.mrb[0].mxu0
        %v5394 = vadd.f32 0.0, %v5393
        %v5395 = vpop.f32.mrb[0].mxu0
        %5396 = vdwg.mxu0
        %v5397 = vld [vmem:[%s8] sm:$0x1]
        %v5399 = vlaneseq
        %v5400 = vshrl.u32 %v5399, 7
        %v5401 = vsub.s32 0, %v5400
        %v5402 = vrot.slane %v5397, %v5401
        %v5404 = vmul.f32 %v5271, %v5402
        %v5405 = vmul.f32 %v5274, %v5402
        %v5406 = vmul.f32 %v5279, %v5402
        %v5407 = vmul.f32 %v5282, %v5402
        %v5408 = vmul.f32 %v5287, %v5402
        %v5409 = vmul.f32 %v5290, %v5402
        %v5410 = vmul.f32 %v5295, %v5402
        %v5411 = vmul.f32 %v5298, %v5402
        %v5412 = vmul.f32 %v5303, %v5402
        %v5413 = vmul.f32 %v5306, %v5402
        %v5414 = vmul.f32 %v5311, %v5402
        %v5415 = vmul.f32 %v5314, %v5402
        %v5416 = vmul.f32 %v5319, %v5402
        %v5417 = vmul.f32 %v5322, %v5402
        %v5418 = vmul.f32 %v5327, %v5402
        %v5419 = vmul.f32 %v5330, %v5402
        %v5420 = vmul.f32 %v5335, %v5402
        %v5421 = vmul.f32 %v5338, %v5402
        %v5422 = vmul.f32 %v5343, %v5402
        %v5423 = vmul.f32 %v5346, %v5402
        %v5424 = vmul.f32 %v5351, %v5402
        %v5425 = vmul.f32 %v5354, %v5402
        %v5426 = vmul.f32 %v5359, %v5402
        %v5427 = vmul.f32 %v5362, %v5402
        %v5428 = vmul.f32 %v5367, %v5402
        %v5429 = vmul.f32 %v5370, %v5402
        %v5430 = vmul.f32 %v5375, %v5402
        %v5431 = vmul.f32 %v5378, %v5402
        %v5432 = vmul.f32 %v5383, %v5402
        %v5433 = vmul.f32 %v5386, %v5402
        %v5434 = vmul.f32 %v5391, %v5402
        %v5435 = vmul.f32 %v5394, %v5402
        %v5436 = vld [vmem:[%s9] sm:$0x1]
        %v5438 = vlaneseq
        %v5439 = vshrl.u32 %v5438, 7
        %v5440 = vsub.s32 0, %v5439
        %v5441 = vrot.slane %v5436, %v5440
        %v5443 = vadd.f32 %v5404, %v5441
        %v5444 = vadd.f32 %v5405, %v5441
        %v5445 = vadd.f32 %v5406, %v5441
        %v5446 = vadd.f32 %v5407, %v5441
        %v5447 = vadd.f32 %v5408, %v5441
        %v5448 = vadd.f32 %v5409, %v5441
        %v5449 = vadd.f32 %v5410, %v5441
        %v5450 = vadd.f32 %v5411, %v5441
        %v5451 = vadd.f32 %v5412, %v5441
        %v5452 = vadd.f32 %v5413, %v5441
        %v5453 = vadd.f32 %v5414, %v5441
        %v5454 = vadd.f32 %v5415, %v5441
        %v5455 = vadd.f32 %v5416, %v5441
        %v5456 = vadd.f32 %v5417, %v5441
        %v5457 = vadd.f32 %v5418, %v5441
        %v5458 = vadd.f32 %v5419, %v5441
        %v5459 = vadd.f32 %v5420, %v5441
        %v5460 = vadd.f32 %v5421, %v5441
        %v5461 = vadd.f32 %v5422, %v5441
        %v5462 = vadd.f32 %v5423, %v5441
        %v5463 = vadd.f32 %v5424, %v5441
        %v5464 = vadd.f32 %v5425, %v5441
        %v5465 = vadd.f32 %v5426, %v5441
        %v5466 = vadd.f32 %v5427, %v5441
        %v5467 = vadd.f32 %v5428, %v5441
        %v5468 = vadd.f32 %v5429, %v5441
        %v5469 = vadd.f32 %v5430, %v5441
        %v5470 = vadd.f32 %v5431, %v5441
        %v5471 = vadd.f32 %v5432, %v5441
        %v5472 = vadd.f32 %v5433, %v5441
        %v5473 = vadd.f32 %v5434, %v5441
        %v5474 = vadd.f32 %v5435, %v5441
        %v5475 = vunpack.c.l.bf16 %v359
        %v5476 = vunpack.c.l.bf16 %v360
        %v5477 = vunpack.c.l.bf16 %v361
        %v5478 = vunpack.c.l.bf16 %v362
        %v5479 = vunpack.c.l.bf16 %v363
        %v5480 = vunpack.c.l.bf16 %v364
        %v5481 = vunpack.c.l.bf16 %v365
        %v5482 = vunpack.c.l.bf16 %v366
        %v5483 = vunpack.c.l.bf16 %v367
        %v5484 = vunpack.c.l.bf16 %v368
        %v5485 = vunpack.c.l.bf16 %v369
        %v5486 = vunpack.c.l.bf16 %v370
        %v5487 = vunpack.c.l.bf16 %v371
        %v5488 = vunpack.c.l.bf16 %v372
        %v5489 = vunpack.c.l.bf16 %v373
        %v5490 = vunpack.c.l.bf16 %v374
        %v5491 = vunpack.c.l.bf16 %v375
        %v5492 = vunpack.c.l.bf16 %v376
        %v5493 = vunpack.c.l.bf16 %v377
        %v5494 = vunpack.c.l.bf16 %v378
        %v5495 = vunpack.c.l.bf16 %v379
        %v5496 = vunpack.c.l.bf16 %v380
        %v5497 = vunpack.c.l.bf16 %v381
        %v5498 = vunpack.c.l.bf16 %v382
        %v5499 = vunpack.c.l.bf16 %v383
        %v5500 = vunpack.c.l.bf16 %v384
        %v5501 = vunpack.c.l.bf16 %v385
        %v5502 = vunpack.c.l.bf16 %v386
        %v5503 = vunpack.c.l.bf16 %v387
        %v5504 = vunpack.c.l.bf16 %v388
        %v5505 = vunpack.c.l.bf16 %v389
        %v5506 = vunpack.c.l.bf16 %v390
        %v5507 = vadd.f32 %v5443, %v5475
        %v5508 = vadd.f32 %v5444, %v5476
        %v5509 = vadd.f32 %v5445, %v5477
        %v5510 = vadd.f32 %v5446, %v5478
        %v5511 = vadd.f32 %v5447, %v5479
        %v5512 = vadd.f32 %v5448, %v5480
        %v5513 = vadd.f32 %v5449, %v5481
        %v5514 = vadd.f32 %v5450, %v5482
        %v5515 = vadd.f32 %v5451, %v5483
        %v5516 = vadd.f32 %v5452, %v5484
        %v5517 = vadd.f32 %v5453, %v5485
        %v5518 = vadd.f32 %v5454, %v5486
        %v5519 = vadd.f32 %v5455, %v5487
        %v5520 = vadd.f32 %v5456, %v5488
        %v5521 = vadd.f32 %v5457, %v5489
        %v5522 = vadd.f32 %v5458, %v5490
        %v5523 = vadd.f32 %v5459, %v5491
        %v5524 = vadd.f32 %v5460, %v5492
        %v5525 = vadd.f32 %v5461, %v5493
        %v5526 = vadd.f32 %v5462, %v5494
        %v5527 = vadd.f32 %v5463, %v5495
        %v5528 = vadd.f32 %v5464, %v5496
        %v5529 = vadd.f32 %v5465, %v5497
        %v5530 = vadd.f32 %v5466, %v5498
        %v5531 = vadd.f32 %v5467, %v5499
        %v5532 = vadd.f32 %v5468, %v5500
        %v5533 = vadd.f32 %v5469, %v5501
        %v5534 = vadd.f32 %v5470, %v5502
        %v5535 = vadd.f32 %v5471, %v5503
        %v5536 = vadd.f32 %v5472, %v5504
        %v5537 = vadd.f32 %v5473, %v5505
        %v5538 = vadd.f32 %v5474, %v5506
        %v5539 = vmax.f32 %v5507, 0.0
        %v5540 = vmax.f32 %v5508, 0.0
        %v5541 = vmax.f32 %v5509, 0.0
        %v5542 = vmax.f32 %v5510, 0.0
        %v5543 = vmax.f32 %v5511, 0.0
        %v5544 = vmax.f32 %v5512, 0.0
        %v5545 = vmax.f32 %v5513, 0.0
        %v5546 = vmax.f32 %v5514, 0.0
        %v5547 = vmax.f32 %v5515, 0.0
        %v5548 = vmax.f32 %v5516, 0.0
        %v5549 = vmax.f32 %v5517, 0.0
        %v5550 = vmax.f32 %v5518, 0.0
        %v5551 = vmax.f32 %v5519, 0.0
        %v5552 = vmax.f32 %v5520, 0.0
        %v5553 = vmax.f32 %v5521, 0.0
        %v5554 = vmax.f32 %v5522, 0.0
        %v5555 = vmax.f32 %v5523, 0.0
        %v5556 = vmax.f32 %v5524, 0.0
        %v5557 = vmax.f32 %v5525, 0.0
        %v5558 = vmax.f32 %v5526, 0.0
        %v5559 = vmax.f32 %v5527, 0.0
        %v5560 = vmax.f32 %v5528, 0.0
        %v5561 = vmax.f32 %v5529, 0.0
        %v5562 = vmax.f32 %v5530, 0.0
        %v5563 = vmax.f32 %v5531, 0.0
        %v5564 = vmax.f32 %v5532, 0.0
        %v5565 = vmax.f32 %v5533, 0.0
        %v5566 = vmax.f32 %v5534, 0.0
        %v5567 = vmax.f32 %v5535, 0.0
        %v5568 = vmax.f32 %v5536, 0.0
        %v5569 = vmax.f32 %v5537, 0.0
        %v5570 = vmax.f32 %v5538, 0.0
        %5571 = vst.msk [vmem:[%s352] sm:$0xff] %vm487, %v5539
        %5572 = vst.msk [vmem:[%s352 + $0x8] sm:$0xff] %vm487, %v5540
        %5573 = vst.msk [vmem:[%s352 + $0x10] sm:$0xff] %vm487, %v5541
        %5574 = vst.msk [vmem:[%s352 + $0x18] sm:$0xff] %vm487, %v5542
        %5575 = vst.msk [vmem:[%s352 + $0x20] sm:$0xff] %vm487, %v5543
        %5576 = vst.msk [vmem:[%s352 + $0x28] sm:$0xff] %vm487, %v5544
        %5577 = vst.msk [vmem:[%s352 + $0x30] sm:$0xff] %vm487, %v5545
        %5578 = vst.msk [vmem:[%s352 + $0x38] sm:$0xff] %vm487, %v5546
        %5579 = vst.msk [vmem:[%s352 + $0x40] sm:$0xff] %vm487, %v5547
        %5580 = vst.msk [vmem:[%s352 + $0x48] sm:$0xff] %vm487, %v5548
        %5581 = vst.msk [vmem:[%s352 + $0x50] sm:$0xff] %vm487, %v5549
        %5582 = vst.msk [vmem:[%s352 + $0x58] sm:$0xff] %vm487, %v5550
        %5583 = vst.msk [vmem:[%s352 + $0x60] sm:$0xff] %vm487, %v5551
        %5584 = vst.msk [vmem:[%s352 + $0x68] sm:$0xff] %vm487, %v5552
        %5585 = vst.msk [vmem:[%s352 + $0x70] sm:$0xff] %vm487, %v5553
        %5586 = vst.msk [vmem:[%s352 + $0x78] sm:$0xff] %vm487, %v5554
        %5587 = vst.msk [vmem:[%s352 + $0x80] sm:$0xff] %vm487, %v5555
        %5588 = vst.msk [vmem:[%s352 + $0x88] sm:$0xff] %vm487, %v5556
        %5589 = vst.msk [vmem:[%s352 + $0x90] sm:$0xff] %vm487, %v5557
        %5590 = vst.msk [vmem:[%s352 + $0x98] sm:$0xff] %vm487, %v5558
        %5591 = vst.msk [vmem:[%s352 + $0xa0] sm:$0xff] %vm487, %v5559
        %5592 = vst.msk [vmem:[%s352 + $0xa8] sm:$0xff] %vm487, %v5560
        %5593 = vst.msk [vmem:[%s352 + $0xb0] sm:$0xff] %vm487, %v5561
        %5594 = vst.msk [vmem:[%s352 + $0xb8] sm:$0xff] %vm487, %v5562
        %5595 = vst.msk [vmem:[%s352 + $0xc0] sm:$0xff] %vm487, %v5563
        %5596 = vst.msk [vmem:[%s352 + $0xc8] sm:$0xff] %vm487, %v5564
        %5597 = vst.msk [vmem:[%s352 + $0xd0] sm:$0xff] %vm487, %v5565
        %5598 = vst.msk [vmem:[%s352 + $0xd8] sm:$0xff] %vm487, %v5566
        %5599 = vst.msk [vmem:[%s352 + $0xe0] sm:$0xff] %vm487, %v5567
        %5600 = vst.msk [vmem:[%s352 + $0xe8] sm:$0xff] %vm487, %v5568
        %5601 = vst.msk [vmem:[%s352 + $0xf0] sm:$0xff] %vm487, %v5569
        %5602 = vst.msk [vmem:[%s352 + $0xf8] sm:$0xff] %vm487, %v5570
        %s5603 = sand.u32 %s247, 1
        %s5604 = scalar_lea.sflag [#allocation5], %s5603
        %s5605 = sand.u32 %s247, 1
        %s5606 = smul.addr %s5605, 256
        %s5607 = scalar_lea.vmem [#allocation4], %s5606
        // Predicated region
        $region61: #{residual_block50.1} parent=59 // pred_check
          %p5608 = pneg %p257
        $region62: #{residual_block50.1} parent=59 // pred_check_branch
          %5610 = sbr.rel (%p5608) target = $region64
        $region63: #{residual_block50.1} parent=59 // pred_region
          %s5612 = ssub.s32 4096, 4096
          %5613 = vsyncadd %s5604, %s5612
          %s5614 = smul.addr %s24, 32
          %s5615 = smul.addr %s5614, 128
          %s5616 = scalar_lea.hbm %s10, %s5615
          %s5617 = sshll.u32 %s5607, 4
          %s5618 = int_to_ptr.vmem [resolvable:$true] %s5617
          %5623 = dma.vmem_to_hbm [thread:$0]  %s5618, 4096, %s5616, %s5604, 128, 128, 8
        $region64: #{residual_block50.1} parent=59 // pred_fallthru
          _
      $region60: #{residual_block50.1} parent=5 // pred_fallthru
        _
      %p5624 = scmp.le.s32.totalorder 2, %s19
      // Predicated region
      $region65: #{residual_block50.1} parent=5 // pred_check
        %p5625 = pneg %p5624
      $region66: #{residual_block50.1} parent=5 // pred_check_branch
        %5627 = sbr.rel (%p5625) target = $region68
      $region67: #{residual_block50.1} parent=5 // pred_region
        %s5628 = ssub.s32 %s19, 2
        // Predicated region
        $region69: #{residual_block50.1} parent=67 // pred_check
          %p5629 = pneg %p263
        $region70: #{residual_block50.1} parent=67 // pred_check_branch
          %5631 = sbr.rel (%p5629) target = $region72
        $region71: #{residual_block50.1} parent=67 // pred_region
          %s5632 = sand.u32 %s248, 1
          %s5633 = scalar_lea.sflag [#allocation5], %s5632
          %s5634 = sand.u32 %s248, 1
          %s5635 = smul.addr %s5634, 256
          %s5636 = scalar_lea.vmem [#allocation4], %s5635
          %5637 = dma.done %s5633, 4096
        $region72: #{residual_block50.1} parent=67 // pred_fallthru
          _
      $region68: #{residual_block50.1} parent=5 // pred_fallthru
        _
    $region6: #{residual_block50.1} parent=1 // loop_footer
      %s23 = sadd.s32 1, %s19
    $region7: #{residual_block50.1} parent=1 // loop_footer_branch
      %18 = sbr.rel target = $region3
    $region8: #{residual_block50.1} parent=1 // loop_exit
      _
    %5638 = vsyncpa [#allocation5], 1
    %s5639 = scalar_lea.sflag [#allocation5], 1
    %5640 = vsyncpa %s5639, 1

</llo_original>
